<compile_context>
chip_gen: v6e
topology: v6e:2x2x1
jax: 0.10.0
libtpu: 0.0.40
codegen_flags: <defaults>
</compile_context>

<pallas_src>
import jax
import jax.numpy as jnp
from jax.experimental import pallas as pl
from jax.experimental.pallas import tpu as pltpu

# (in_features, out_features) of the four nn.Linear layers (PyTorch logical sizes).
LAYER_DIMS = [(784, 600), (600, 500), (500, 250), (250, 10)]
# Lane-aligned (multiple-of-128) padded widths used inside the kernel.
PADDED_IN = [784, 640, 512, 256]
PADDED_OUT = [640, 512, 256, 128]


def _round_up(x, m):
    return ((x + m - 1) // m) * m


def fnet_kernel(x_ref, w1_ref, b1_ref, w2_ref, b2_ref,
                w3_ref, b3_ref, w4_ref, b4_ref, o_ref):
    # Four MXU matmuls (bf16 inputs, f32 accumulation) + f32 bias/ReLU epilogues,
    # fully fused. Weights/biases are zero-padded so padded lanes stay exactly 0.
    x = x_ref[...].astype(jnp.bfloat16)
    h = jnp.dot(x, w1_ref[...], preferred_element_type=jnp.float32) + b1_ref[...]
    h = jnp.maximum(h, 0.0)
    h = jnp.dot(h.astype(jnp.bfloat16), w2_ref[...],
                preferred_element_type=jnp.float32) + b2_ref[...]
    h = jnp.maximum(h, 0.0)
    h = jnp.dot(h.astype(jnp.bfloat16), w3_ref[...],
                preferred_element_type=jnp.float32) + b3_ref[...]
    h = jnp.maximum(h, 0.0)
    o_ref[...] = (jnp.dot(h.astype(jnp.bfloat16), w4_ref[...],
                          preferred_element_type=jnp.float32)
                  + b4_ref[...]).astype(o_ref.dtype)


def prepare_params(params):
    """One-time (outside the hot path): transpose PyTorch (out,in) weights to
    (in,out), zero-pad to lane-aligned widths, cast weights to bf16."""
    prepped = {}
    for i, (in_f, out_f) in enumerate(LAYER_DIMS, start=1):
        in_p, out_p = PADDED_IN[i - 1], PADDED_OUT[i - 1]
        w = params[f"w{i}"].T  # (in, out)
        w = jnp.pad(w, ((0, in_p - in_f), (0, out_p - out_f)))
        prepped[f"w{i}"] = w.astype(jnp.bfloat16)
        b = params[f"b{i}"].reshape(1, -1).astype(jnp.float32)
        prepped[f"b{i}"] = jnp.pad(b, ((0, 0), (0, out_p - out_f)))
    return prepped


def fnet_forward(x_nchw, prepped, *, tile_b=128):
    """x_nchw: (B, 1, 28, 28) float32. prepped: output of prepare_params().
    tile_b: batch tile (128 matches v5e/v6e MXU; use 256 on v7x for large B)."""
    B = x_nchw.shape[0]
    x2d = x_nchw.reshape(B, 784).astype(jnp.float32)

    if B <= tile_b:
        tb, bp = B, B                     # single full-batch block (legal: equals full dim)
    else:
        tb = tile_b
        bp = _round_up(B, tb)
        if bp != B:
            x2d = jnp.pad(x2d, ((0, bp - B), (0, 0)))
    grid = (bp // tb,)

    def _const(i):      # weights / biases stay resident in VMEM across the grid
        return (0, 0)

    in_specs = [pl.BlockSpec((tb, 784), lambda i: (i, 0))]
    for layer in range(4):
        in_specs.append(pl.BlockSpec((PADDED_IN[layer], PADDED_OUT[layer]), _const))
        in_specs.append(pl.BlockSpec((1, PADDED_OUT[layer]), _const))
    out_spec = pl.BlockSpec((tb, PADDED_OUT[-1]), lambda i: (i, 0))

    flops = 2 * B * sum(fi * fo for fi, fo in LAYER_DIMS)
    bytes_accessed = (
        x2d.size * 4
        + sum(int(prepped[f"w{k}"].size) * 2 + int(prepped[f"b{k}"].size) * 4
              for k in (1, 2, 3, 4))
        + bp * PADDED_OUT[-1] * 4)

    out = pl.pallas_call(
        fnet_kernel,
        out_shape=jax.ShapeDtypeStruct((bp, PADDED_OUT[-1]), jnp.float32),
        grid_spec=pltpu.PrefetchScalarGridSpec(
            num_scalar_prefetch=0,
            grid=grid,
            in_specs=in_specs,
            out_specs=out_spec),
        compiler_params=pltpu.CompilerParams(
            dimension_semantics=("parallel",)),
        cost_estimate=pl.CostEstimate(
            flops=flops, transcendentals=0, bytes_accessed=bytes_accessed),
    )(x2d,
      prepped["w1"], prepped["b1"], prepped["w2"], prepped["b2"],
      prepped["w3"], prepped["b3"], prepped["w4"], prepped["b4"])

    return out[:B, :10]   # strip batch padding + padded logits lanes


def init_params(key):
    """Deterministic init with PyTorch nn.Linear shapes: weight (out, in), bias (out,)."""
    params = {}
    for i, (in_f, out_f) in enumerate(LAYER_DIMS, start=1):
        key, kw, kb = jax.random.split(key, 3)
        bound = 1.0 / (in_f ** 0.5)  # PyTorch default uniform bound
        params[f"w{i}"] = jax.random.uniform(
            kw, (out_f, in_f), jnp.float32, minval=-bound, maxval=bound)
        params[f"b{i}"] = jax.random.uniform(
            kb, (out_f,), jnp.float32, minval=-bound, maxval=bound)
    return params


if __name__ == "__main__":
    key = jax.random.PRNGKey(0)
    pkey, xkey = jax.random.split(key)
    params = init_params(pkey)
    prepped = prepare_params(params)

    # Small MNIST-like batch: (batch=4, channels=1, 28, 28) -> flattens to (4, 784).
    x = jax.random.normal(xkey, (4, 1, 28, 28), dtype=jnp.float32)

    out = fnet_forward(x, prepped)
    out = jax.block_until_ready(out)

    # Reference matching the kernel's numerics (bf16 matmul operands, f32 accumulation),
    # built from the original PyTorch-layout params.
    def ref(x_nchw, p):
        h = x_nchw.reshape(x_nchw.shape[0], 784).astype(jnp.float32)
        for i in range(1, 5):
            w = p[f"w{i}"].T.astype(jnp.bfloat16)
            h = jnp.dot(h.astype(jnp.bfloat16), w,
                        preferred_element_type=jnp.float32) + p[f"b{i}"]
            if i < 4:
                h = jnp.maximum(h, 0.0)
        return h

    expected = ref(x, params)
    assert out.shape == (4, 10), out.shape
    assert jnp.allclose(out, expected, atol=1e-2, rtol=1e-2), \
        float(jnp.max(jnp.abs(out - expected)))
    print("KERNEL_OK")
</pallas_src>

<mosaic_0001>
module attributes {stable_mosaic.version = 11 : i64} {
  func.func @fnet_kernel(%arg0: i32, %arg1: memref<4x784xf32, #tpu.memory_space<vmem>>, %arg2: memref<784x640xbf16, #tpu.memory_space<vmem>>, %arg3: memref<1x640xf32, #tpu.memory_space<vmem>>, %arg4: memref<640x512xbf16, #tpu.memory_space<vmem>>, %arg5: memref<1x512xf32, #tpu.memory_space<vmem>>, %arg6: memref<512x256xbf16, #tpu.memory_space<vmem>>, %arg7: memref<1x256xf32, #tpu.memory_space<vmem>>, %arg8: memref<256x128xbf16, #tpu.memory_space<vmem>>, %arg9: memref<1x128xf32, #tpu.memory_space<vmem>>, %arg10: memref<4x128xf32, #tpu.memory_space<vmem>>) attributes {dimension_semantics = [#tpu.dimension_semantics<parallel>], iteration_bounds = array<i64: 1>, scalar_prefetch = 0 : i64, scratch_operands = 0 : i64, tpu.core_type = #tpu.core_type<tc>, window_params = [{transform_indices = @transform_0, window_bounds = array<i64: 4, 784>}, {pipeline_mode = #tpu.pipeline_mode<synchronous>, transform_indices = @transform_1, window_bounds = array<i64: 784, 640>}, {pipeline_mode = #tpu.pipeline_mode<synchronous>, transform_indices = @transform_2, window_bounds = array<i64: 1, 640>}, {pipeline_mode = #tpu.pipeline_mode<synchronous>, transform_indices = @transform_3, window_bounds = array<i64: 640, 512>}, {pipeline_mode = #tpu.pipeline_mode<synchronous>, transform_indices = @transform_4, window_bounds = array<i64: 1, 512>}, {pipeline_mode = #tpu.pipeline_mode<synchronous>, transform_indices = @transform_5, window_bounds = array<i64: 512, 256>}, {pipeline_mode = #tpu.pipeline_mode<synchronous>, transform_indices = @transform_6, window_bounds = array<i64: 1, 256>}, {pipeline_mode = #tpu.pipeline_mode<synchronous>, transform_indices = @transform_7, window_bounds = array<i64: 256, 128>}, {pipeline_mode = #tpu.pipeline_mode<synchronous>, transform_indices = @transform_8, window_bounds = array<i64: 1, 128>}, {transform_indices = @transform_9, window_bounds = array<i64: 4, 128>}]} {
    %c0 = arith.constant 0 : index
    %c0_0 = arith.constant 0 : index
    %0 = vector.load %arg1[%c0, %c0_0] : memref<4x784xf32, #tpu.memory_space<vmem>>, vector<4x784xf32>
    %1 = arith.truncf %0 : vector<4x784xf32> to vector<4x784xbf16>
    %c0_1 = arith.constant 0 : index
    %c0_2 = arith.constant 0 : index
    %2 = vector.load %arg2[%c0_1, %c0_2] : memref<784x640xbf16, #tpu.memory_space<vmem>>, vector<784x640xbf16>
    %cst = arith.constant dense<0.000000e+00> : vector<4x640xf32>
    %3 = tpu.matmul %1, %2, %cst {dimension_numbers = #tpu.dot_dimension_numbers<[1], [0], [0], [1], [0, 0, 1, 1], [], []>} : vector<4x784xbf16>, vector<784x640xbf16>, vector<4x640xf32> -> vector<4x640xf32>
    %c0_3 = arith.constant 0 : index
    %c0_4 = arith.constant 0 : index
    %4 = vector.load %arg3[%c0_3, %c0_4] : memref<1x640xf32, #tpu.memory_space<vmem>>, vector<1x640xf32>
    %5 = vector.broadcast %4 : vector<1x640xf32> to vector<4x640xf32>
    %6 = arith.addf %3, %5 : vector<4x640xf32>
    %cst_5 = arith.constant 0.000000e+00 : f32
    %7 = vector.broadcast %cst_5 : f32 to vector<4x640xf32>
    %8 = arith.maximumf %6, %7 : vector<4x640xf32>
    %9 = arith.truncf %8 : vector<4x640xf32> to vector<4x640xbf16>
    %c0_6 = arith.constant 0 : index
    %c0_7 = arith.constant 0 : index
    %10 = vector.load %arg4[%c0_6, %c0_7] : memref<640x512xbf16, #tpu.memory_space<vmem>>, vector<640x512xbf16>
    %cst_8 = arith.constant dense<0.000000e+00> : vector<4x512xf32>
    %11 = tpu.matmul %9, %10, %cst_8 {dimension_numbers = #tpu.dot_dimension_numbers<[1], [0], [0], [1], [0, 0, 1, 1], [], []>} : vector<4x640xbf16>, vector<640x512xbf16>, vector<4x512xf32> -> vector<4x512xf32>
    %c0_9 = arith.constant 0 : index
    %c0_10 = arith.constant 0 : index
    %12 = vector.load %arg5[%c0_9, %c0_10] : memref<1x512xf32, #tpu.memory_space<vmem>>, vector<1x512xf32>
    %13 = vector.broadcast %12 : vector<1x512xf32> to vector<4x512xf32>
    %14 = arith.addf %11, %13 : vector<4x512xf32>
    %cst_11 = arith.constant 0.000000e+00 : f32
    %15 = vector.broadcast %cst_11 : f32 to vector<4x512xf32>
    %16 = arith.maximumf %14, %15 : vector<4x512xf32>
    %17 = arith.truncf %16 : vector<4x512xf32> to vector<4x512xbf16>
    %c0_12 = arith.constant 0 : index
    %c0_13 = arith.constant 0 : index
    %18 = vector.load %arg6[%c0_12, %c0_13] : memref<512x256xbf16, #tpu.memory_space<vmem>>, vector<512x256xbf16>
    %cst_14 = arith.constant dense<0.000000e+00> : vector<4x256xf32>
    %19 = tpu.matmul %17, %18, %cst_14 {dimension_numbers = #tpu.dot_dimension_numbers<[1], [0], [0], [1], [0, 0, 1, 1], [], []>} : vector<4x512xbf16>, vector<512x256xbf16>, vector<4x256xf32> -> vector<4x256xf32>
    %c0_15 = arith.constant 0 : index
    %c0_16 = arith.constant 0 : index
    %20 = vector.load %arg7[%c0_15, %c0_16] : memref<1x256xf32, #tpu.memory_space<vmem>>, vector<1x256xf32>
    %21 = vector.broadcast %20 : vector<1x256xf32> to vector<4x256xf32>
    %22 = arith.addf %19, %21 : vector<4x256xf32>
    %cst_17 = arith.constant 0.000000e+00 : f32
    %23 = vector.broadcast %cst_17 : f32 to vector<4x256xf32>
    %24 = arith.maximumf %22, %23 : vector<4x256xf32>
    %25 = arith.truncf %24 : vector<4x256xf32> to vector<4x256xbf16>
    %c0_18 = arith.constant 0 : index
    %c0_19 = arith.constant 0 : index
    %26 = vector.load %arg8[%c0_18, %c0_19] : memref<256x128xbf16, #tpu.memory_space<vmem>>, vector<256x128xbf16>
    %cst_20 = arith.constant dense<0.000000e+00> : vector<4x128xf32>
    %27 = tpu.matmul %25, %26, %cst_20 {dimension_numbers = #tpu.dot_dimension_numbers<[1], [0], [0], [1], [0, 0, 1, 1], [], []>} : vector<4x256xbf16>, vector<256x128xbf16>, vector<4x128xf32> -> vector<4x128xf32>
    %c0_21 = arith.constant 0 : index
    %c0_22 = arith.constant 0 : index
    %28 = vector.load %arg9[%c0_21, %c0_22] : memref<1x128xf32, #tpu.memory_space<vmem>>, vector<1x128xf32>
    %29 = vector.broadcast %28 : vector<1x128xf32> to vector<4x128xf32>
    %30 = arith.addf %27, %29 : vector<4x128xf32>
    %c0_23 = arith.constant 0 : index
    %c0_24 = arith.constant 0 : index
    %31 = vector.load %arg10[%c0_23, %c0_24] : memref<4x128xf32, #tpu.memory_space<vmem>>, vector<4x128xf32>
    tpu.vector_store %arg10[%c0_23, %c0_24], %30 {strides = array<i32>} : memref<4x128xf32, #tpu.memory_space<vmem>>, vector<4x128xf32>,
    return
  }
  func.func @transform_0(%arg0: i32) -> (i32, i32) {
    %c0_i32 = arith.constant 0 : i32
    %c0_i32_0 = arith.constant 0 : i32
    return %arg0, %c0_i32 : i32, i32
  }
  func.func @transform_1(%arg0: i32) -> (i32, i32) {
    %c0_i32 = arith.constant 0 : i32
    %c0_i32_0 = arith.constant 0 : i32
    %c0_i32_1 = arith.constant 0 : i32
    return %c0_i32, %c0_i32_0 : i32, i32
  }
  func.func @transform_2(%arg0: i32) -> (i32, i32) {
    %c0_i32 = arith.constant 0 : i32
    %c0_i32_0 = arith.constant 0 : i32
    %c0_i32_1 = arith.constant 0 : i32
    return %c0_i32, %c0_i32_0 : i32, i32
  }
  func.func @transform_3(%arg0: i32) -> (i32, i32) {
    %c0_i32 = arith.constant 0 : i32
    %c0_i32_0 = arith.constant 0 : i32
    %c0_i32_1 = arith.constant 0 : i32
    return %c0_i32, %c0_i32_0 : i32, i32
  }
  func.func @transform_4(%arg0: i32) -> (i32, i32) {
    %c0_i32 = arith.constant 0 : i32
    %c0_i32_0 = arith.constant 0 : i32
    %c0_i32_1 = arith.constant 0 : i32
    return %c0_i32, %c0_i32_0 : i32, i32
  }
  func.func @transform_5(%arg0: i32) -> (i32, i32) {
    %c0_i32 = arith.constant 0 : i32
    %c0_i32_0 = arith.constant 0 : i32
    %c0_i32_1 = arith.constant 0 : i32
    return %c0_i32, %c0_i32_0 : i32, i32
  }
  func.func @transform_6(%arg0: i32) -> (i32, i32) {
    %c0_i32 = arith.constant 0 : i32
    %c0_i32_0 = arith.constant 0 : i32
    %c0_i32_1 = arith.constant 0 : i32
    return %c0_i32, %c0_i32_0 : i32, i32
  }
  func.func @transform_7(%arg0: i32) -> (i32, i32) {
    %c0_i32 = arith.constant 0 : i32
    %c0_i32_0 = arith.constant 0 : i32
    %c0_i32_1 = arith.constant 0 : i32
    return %c0_i32, %c0_i32_0 : i32, i32
  }
  func.func @transform_8(%arg0: i32) -> (i32, i32) {
    %c0_i32 = arith.constant 0 : i32
    %c0_i32_0 = arith.constant 0 : i32
    %c0_i32_1 = arith.constant 0 : i32
    return %c0_i32, %c0_i32_0 : i32, i32
  }
  func.func @transform_9(%arg0: i32) -> (i32, i32) {
    %c0_i32 = arith.constant 0 : i32
    %c0_i32_0 = arith.constant 0 : i32
    return %arg0, %c0_i32 : i32, i32
  }
}

</mosaic_0001>

<llo_original>
// kernel: tpu_custom_call.1
$region0: #{tpu_custom_call.1}
  #allocation0 [shape = 'u32[]', space=smem, size = 0x4, offset = 0x4, fixed_abs, tag = 'smem constant byte address 0x4 - core index']
  #allocation1 [shape = 'u32[144,128]{1,0:T(1,128)}', space=vmem, size = 0x12000, scoped, tag = 'internal scratch']
  %s0 = inlined_call_operand.hbm [shape: f32[4,784], index: 0, kind: input, shape index: {}]
  %s1 = inlined_call_operand.hbm [shape: bf16[784,640], index: 1, kind: input, shape index: {}]
  %s2 = inlined_call_operand.hbm [shape: f32[1,640], index: 2, kind: input, shape index: {}]
  %s3 = inlined_call_operand.hbm [shape: bf16[640,512], index: 3, kind: input, shape index: {}]
  %s4 = inlined_call_operand.vmem [shape: f32[1,512], index: 4, kind: input, shape index: {}]
  %s5 = inlined_call_operand.hbm [shape: bf16[512,256], index: 5, kind: input, shape index: {}]
  %s6 = inlined_call_operand.vmem [shape: f32[1,256], index: 6, kind: input, shape index: {}]
  %s7 = inlined_call_operand.hbm [shape: bf16[256,128], index: 7, kind: input, shape index: {}]
  %s8 = inlined_call_operand.vmem [shape: f32[1,128], index: 8, kind: input, shape index: {}]
  %s9 = inlined_call_operand.hbm [shape: f32[4,128], index: 9, kind: output, shape index: {}]
  %s10 = sld [smem:[#allocation0]]
  $region70: #{tpu_custom_call.1} parent=0
    _
  %s12 = ssub.s32 1, %s10
  %s13 = scalar_select 0, %s12, %s10
  $region1: #{tpu_custom_call.1} parent=0
    #allocation2 [shape = 'u8[14336]{0}', space=vmem, size = 0x3800, scoped, tag = 'input window, operand 0, single buffered']
    #allocation3 [shape = 's32[1]{0}', space=sflag, size = 0x4, scoped, tag = 'scoped memory for tpu_custom_call.1']
    #allocation4 [shape = 's32[1]{0}', space=sflag, size = 0x4, scoped, tag = 'scoped memory for tpu_custom_call.1']
    #allocation5 [shape = 'u8[1003520]{0}', space=vmem, size = 0xf5000, scoped, tag = 'input window, operand 1, single buffered']
    #allocation6 [shape = 's32[1]{0}', space=sflag, size = 0x4, scoped, tag = 'scoped memory for tpu_custom_call.1']
    #allocation7 [shape = 'u8[2560]{0}', space=vmem, size = 0xc00, scoped, tag = 'input window, operand 2, single buffered']
    #allocation8 [shape = 'u8[655360]{0}', space=vmem, size = 0xa0000, scoped, tag = 'input window, operand 3, single buffered']
    #allocation9 [shape = 's32[1]{0}', space=sflag, size = 0x4, scoped, tag = 'scoped memory for tpu_custom_call.1']
    #allocation10 [shape = 'u8[262144]{0}', space=vmem, size = 0x40000, scoped, tag = 'input window, operand 5, single buffered']
    #allocation11 [shape = 'u8[65536]{0}', space=vmem, size = 0x10000, scoped, tag = 'input window, operand 7, single buffered']
    #allocation12 [shape = 's32[1]{0}', space=sflag, size = 0x4, scoped, tag = 'scoped memory for tpu_custom_call.1']
    #allocation13 [shape = 'u8[2048]{0}', space=vmem, size = 0x800, scoped, tag = 'output window, operand 0, single buffered']
    %14 = vsyncpa [#allocation3], 0
    %15 = vsyncpa [#allocation6], 0
    %16 = vsyncpa [#allocation9], 0
    %17 = vsyncpa [#allocation12], 0
    %18 = vsyncpa [#allocation4], 0
    // Predicated region
    $region2: #{tpu_custom_call.1} parent=1 // pred_check
      _
    $region3: #{tpu_custom_call.1} parent=1 // pred_check_branch
      %20 = sbr.rel (0) target = $region5
    $region4: #{tpu_custom_call.1} parent=1 // pred_region
      %s22 = ssub.s32 448, 448
      %23 = vsyncadd [#allocation3], %s22
      %s25 = sshll.u32 [#allocation2], 4
      %s26 = int_to_ptr.vmem [resolvable:$true] %s25
      %28 = dma.hbm_to_vmem [thread:$0]  %s0, 448, %s26, [#allocation3]
    $region5: #{tpu_custom_call.1} parent=1 // pred_fallthru
      _
    // Predicated region
    $region6: #{tpu_custom_call.1} parent=1 // pred_check
      _
    $region7: #{tpu_custom_call.1} parent=1 // pred_check_branch
      %30 = sbr.rel (0) target = $region9
    $region8: #{tpu_custom_call.1} parent=1 // pred_region
      %s32 = ssub.s32 31360, 31360
      %33 = vsyncadd [#allocation6], %s32
      %s34 = sshll.u32 [#allocation5], 4
      %s35 = int_to_ptr.vmem [resolvable:$true] %s34
      %40 = dma.hbm_to_vmem [thread:$0]  %s1, 31360, %s35, [#allocation6], 320, 320, 20
    $region9: #{tpu_custom_call.1} parent=1 // pred_fallthru
      _
    // Predicated region
    $region10: #{tpu_custom_call.1} parent=1 // pred_check
      _
    $region11: #{tpu_custom_call.1} parent=1 // pred_check_branch
      %42 = sbr.rel (0) target = $region13
    $region12: #{tpu_custom_call.1} parent=1 // pred_region
      %s44 = ssub.s32 80, 80
      %45 = vsyncadd [#allocation6], %s44
      %s47 = sshll.u32 [#allocation7], 4
      %s48 = int_to_ptr.vmem [resolvable:$true] %s47
      %50 = dma.hbm_to_vmem [thread:$0]  %s2, 80, %s48, [#allocation6]
    $region13: #{tpu_custom_call.1} parent=1 // pred_fallthru
      _
    // Predicated region
    $region14: #{tpu_custom_call.1} parent=1 // pred_check
      _
    $region15: #{tpu_custom_call.1} parent=1 // pred_check_branch
      %52 = sbr.rel (0) target = $region17
    $region16: #{tpu_custom_call.1} parent=1 // pred_region
      %s54 = ssub.s32 20480, 20480
      %55 = vsyncadd [#allocation9], %s54
      %s56 = sshll.u32 [#allocation8], 4
      %s57 = int_to_ptr.vmem [resolvable:$true] %s56
      %62 = dma.hbm_to_vmem [thread:$0]  %s3, 20480, %s57, [#allocation9], 256, 256, 16
    $region17: #{tpu_custom_call.1} parent=1 // pred_fallthru
      _
    // Predicated region
    $region18: #{tpu_custom_call.1} parent=1 // pred_check
      _
    $region19: #{tpu_custom_call.1} parent=1 // pred_check_branch
      %64 = sbr.rel (0) target = $region21
    $region20: #{tpu_custom_call.1} parent=1 // pred_region
      _
    $region21: #{tpu_custom_call.1} parent=1 // pred_fallthru
      _
    // Predicated region
    $region22: #{tpu_custom_call.1} parent=1 // pred_check
      _
    $region23: #{tpu_custom_call.1} parent=1 // pred_check_branch
      %66 = sbr.rel (0) target = $region25
    $region24: #{tpu_custom_call.1} parent=1 // pred_region
      %s68 = ssub.s32 8192, 8192
      %69 = vsyncadd [#allocation9], %s68
      %s70 = sshll.u32 [#allocation10], 4
      %s71 = int_to_ptr.vmem [resolvable:$true] %s70
      %76 = dma.hbm_to_vmem [thread:$0]  %s5, 8192, %s71, [#allocation9], 128, 128, 8
    $region25: #{tpu_custom_call.1} parent=1 // pred_fallthru
      _
    // Predicated region
    $region26: #{tpu_custom_call.1} parent=1 // pred_check
      _
    $region27: #{tpu_custom_call.1} parent=1 // pred_check_branch
      %78 = sbr.rel (0) target = $region29
    $region28: #{tpu_custom_call.1} parent=1 // pred_region
      _
    $region29: #{tpu_custom_call.1} parent=1 // pred_fallthru
      _
    // Predicated region
    $region30: #{tpu_custom_call.1} parent=1 // pred_check
      _
    $region31: #{tpu_custom_call.1} parent=1 // pred_check_branch
      %80 = sbr.rel (0) target = $region33
    $region32: #{tpu_custom_call.1} parent=1 // pred_region
      %s82 = ssub.s32 2048, 2048
      %83 = vsyncadd [#allocation12], %s82
      %s84 = sshll.u32 [#allocation11], 4
      %s85 = int_to_ptr.vmem [resolvable:$true] %s84
      %90 = dma.hbm_to_vmem [thread:$0]  %s7, 2048, %s85, [#allocation12], 64, 64, 4
    $region33: #{tpu_custom_call.1} parent=1 // pred_fallthru
      _
    // Predicated region
    $region34: #{tpu_custom_call.1} parent=1 // pred_check
      _
    $region35: #{tpu_custom_call.1} parent=1 // pred_check_branch
      %92 = sbr.rel (0) target = $region37
    $region36: #{tpu_custom_call.1} parent=1 // pred_region
      _
    $region37: #{tpu_custom_call.1} parent=1 // pred_fallthru
      _
    // Predicated region
    $region38: #{tpu_custom_call.1} parent=1 // pred_check
      _
    $region39: #{tpu_custom_call.1} parent=1 // pred_check_branch
      %94 = sbr.rel (0) target = $region41
    $region40: #{tpu_custom_call.1} parent=1 // pred_region
      %95 = dma.done [#allocation3], 448
    $region41: #{tpu_custom_call.1} parent=1 // pred_fallthru
      _
    // Predicated region
    $region42: #{tpu_custom_call.1} parent=1 // pred_check
      _
    $region43: #{tpu_custom_call.1} parent=1 // pred_check_branch
      %97 = sbr.rel (0) target = $region45
    $region44: #{tpu_custom_call.1} parent=1 // pred_region
      %98 = dma.done [#allocation6], 31360
    $region45: #{tpu_custom_call.1} parent=1 // pred_fallthru
      _
    // Predicated region
    $region46: #{tpu_custom_call.1} parent=1 // pred_check
      _
    $region47: #{tpu_custom_call.1} parent=1 // pred_check_branch
      %100 = sbr.rel (0) target = $region49
    $region48: #{tpu_custom_call.1} parent=1 // pred_region
      %101 = dma.done [#allocation6], 80
    $region49: #{tpu_custom_call.1} parent=1 // pred_fallthru
      _
    // Predicated region
    $region50: #{tpu_custom_call.1} parent=1 // pred_check
      _
    $region51: #{tpu_custom_call.1} parent=1 // pred_check_branch
      %103 = sbr.rel (0) target = $region53
    $region52: #{tpu_custom_call.1} parent=1 // pred_region
      %104 = dma.done [#allocation9], 20480
    $region53: #{tpu_custom_call.1} parent=1 // pred_fallthru
      _
    // Predicated region
    $region54: #{tpu_custom_call.1} parent=1 // pred_check
      _
    $region55: #{tpu_custom_call.1} parent=1 // pred_check_branch
      %106 = sbr.rel (0) target = $region57
    $region56: #{tpu_custom_call.1} parent=1 // pred_region
      %107 = dma.done [#allocation9], 8192
    $region57: #{tpu_custom_call.1} parent=1 // pred_fallthru
      _
    // Predicated region
    $region58: #{tpu_custom_call.1} parent=1 // pred_check
      _
    $region59: #{tpu_custom_call.1} parent=1 // pred_check_branch
      %109 = sbr.rel (0) target = $region61
    $region60: #{tpu_custom_call.1} parent=1 // pred_region
      %110 = dma.done [#allocation12], 2048
    $region61: #{tpu_custom_call.1} parent=1 // pred_fallthru
      _
    %v112 = vld [vmem:[#allocation2] sm:$0xff]
    %v113 = vld [vmem:[#allocation2 + $0x8] sm:$0xff]
    %v114 = vld [vmem:[#allocation2 + $0x10] sm:$0xff]
    %v115 = vld [vmem:[#allocation2 + $0x18] sm:$0xf]
    %v119 = vcombine.high %v112, %v112
    %v120 = vcombine.high %v113, %v113
    %v121 = vcombine.high %v114, %v114
    %v125 = vpack.c.bf16 %v112, %v112
    %v126 = vpack.c.bf16 %v119, %v119
    %v127 = vpack.c.bf16 %v113, %v113
    %v128 = vpack.c.bf16 %v120, %v120
    %v129 = vpack.c.bf16 %v114, %v114
    %v130 = vpack.c.bf16 %v121, %v121
    %v131 = vpack.c.bf16 %v115, %v115
    %v132 = vld [vmem:[#allocation5] sm:$0xff]
    %v133 = vld [vmem:[#allocation5 + $0x8] sm:$0xff]
    %v134 = vld [vmem:[#allocation5 + $0x10] sm:$0xf]
    %v135 = vld [vmem:[#allocation5 + $0x14] sm:$0xff]
    %v136 = vld [vmem:[#allocation5 + $0x1c] sm:$0xff]
    %v137 = vld [vmem:[#allocation5 + $0x24] sm:$0xf]
    %v138 = vld [vmem:[#allocation5 + $0x28] sm:$0xff]
    %v139 = vld [vmem:[#allocation5 + $0x30] sm:$0xff]
    %v140 = vld [vmem:[#allocation5 + $0x38] sm:$0xf]
    %v141 = vld [vmem:[#allocation5 + $0x3c] sm:$0xff]
    %v142 = vld [vmem:[#allocation5 + $0x44] sm:$0xff]
    %v143 = vld [vmem:[#allocation5 + $0x4c] sm:$0xf]
    %v144 = vld [vmem:[#allocation5 + $0x50] sm:$0xff]
    %v145 = vld [vmem:[#allocation5 + $0x58] sm:$0xff]
    %v146 = vld [vmem:[#allocation5 + $0x60] sm:$0xf]
    %v147 = vld [vmem:[#allocation5 + $0x64] sm:$0xff]
    %v148 = vld [vmem:[#allocation5 + $0x6c] sm:$0xff]
    %v149 = vld [vmem:[#allocation5 + $0x74] sm:$0xf]
    %v150 = vld [vmem:[#allocation5 + $0x78] sm:$0xff]
    %v151 = vld [vmem:[#allocation5 + $0x80] sm:$0xff]
    %v152 = vld [vmem:[#allocation5 + $0x88] sm:$0xf]
    %v153 = vld [vmem:[#allocation5 + $0x8c] sm:$0xff]
    %v154 = vld [vmem:[#allocation5 + $0x94] sm:$0xff]
    %v155 = vld [vmem:[#allocation5 + $0x9c] sm:$0xf]
    %v156 = vld [vmem:[#allocation5 + $0xa0] sm:$0xff]
    %v157 = vld [vmem:[#allocation5 + $0xa8] sm:$0xff]
    %v158 = vld [vmem:[#allocation5 + $0xb0] sm:$0xf]
    %v159 = vld [vmem:[#allocation5 + $0xb4] sm:$0xff]
    %v160 = vld [vmem:[#allocation5 + $0xbc] sm:$0xff]
    %v161 = vld [vmem:[#allocation5 + $0xc4] sm:$0xf]
    %v162 = vld [vmem:[#allocation5 + $0xc8] sm:$0xff]
    %v163 = vld [vmem:[#allocation5 + $0xd0] sm:$0xff]
    %v164 = vld [vmem:[#allocation5 + $0xd8] sm:$0xf]
    %v165 = vld [vmem:[#allocation5 + $0xdc] sm:$0xff]
    %v166 = vld [vmem:[#allocation5 + $0xe4] sm:$0xff]
    %v167 = vld [vmem:[#allocation5 + $0xec] sm:$0xf]
    %v168 = vld [vmem:[#allocation5 + $0xf0] sm:$0xff]
    %v169 = vld [vmem:[#allocation5 + $0xf8] sm:$0xff]
    %v170 = vld [vmem:[#allocation5 + $0x100] sm:$0xf]
    %v171 = vld [vmem:[#allocation5 + $0x104] sm:$0xff]
    %v172 = vld [vmem:[#allocation5 + $0x10c] sm:$0xff]
    %v173 = vld [vmem:[#allocation5 + $0x114] sm:$0xf]
    %v174 = vld [vmem:[#allocation5 + $0x118] sm:$0xff]
    %v175 = vld [vmem:[#allocation5 + $0x120] sm:$0xff]
    %v176 = vld [vmem:[#allocation5 + $0x128] sm:$0xf]
    %v177 = vld [vmem:[#allocation5 + $0x12c] sm:$0xff]
    %v178 = vld [vmem:[#allocation5 + $0x134] sm:$0xff]
    %v179 = vld [vmem:[#allocation5 + $0x13c] sm:$0xf]
    %v180 = vld [vmem:[#allocation5 + $0x140] sm:$0xff]
    %v181 = vld [vmem:[#allocation5 + $0x148] sm:$0xff]
    %v182 = vld [vmem:[#allocation5 + $0x150] sm:$0xf]
    %v183 = vld [vmem:[#allocation5 + $0x154] sm:$0xff]
    %v184 = vld [vmem:[#allocation5 + $0x15c] sm:$0xff]
    %v185 = vld [vmem:[#allocation5 + $0x164] sm:$0xf]
    %v186 = vld [vmem:[#allocation5 + $0x168] sm:$0xff]
    %v187 = vld [vmem:[#allocation5 + $0x170] sm:$0xff]
    %v188 = vld [vmem:[#allocation5 + $0x178] sm:$0xf]
    %v189 = vld [vmem:[#allocation5 + $0x17c] sm:$0xff]
    %v190 = vld [vmem:[#allocation5 + $0x184] sm:$0xff]
    %v191 = vld [vmem:[#allocation5 + $0x18c] sm:$0xf]
    %v192 = vld [vmem:[#allocation5 + $0x190] sm:$0xff]
    %v193 = vld [vmem:[#allocation5 + $0x198] sm:$0xff]
    %v194 = vld [vmem:[#allocation5 + $0x1a0] sm:$0xf]
    %v195 = vld [vmem:[#allocation5 + $0x1a4] sm:$0xff]
    %v196 = vld [vmem:[#allocation5 + $0x1ac] sm:$0xff]
    %v197 = vld [vmem:[#allocation5 + $0x1b4] sm:$0xf]
    %v198 = vld [vmem:[#allocation5 + $0x1b8] sm:$0xff]
    %v199 = vld [vmem:[#allocation5 + $0x1c0] sm:$0xff]
    %v200 = vld [vmem:[#allocation5 + $0x1c8] sm:$0xf]
    %v201 = vld [vmem:[#allocation5 + $0x1cc] sm:$0xff]
    %v202 = vld [vmem:[#allocation5 + $0x1d4] sm:$0xff]
    %v203 = vld [vmem:[#allocation5 + $0x1dc] sm:$0xf]
    %v204 = vld [vmem:[#allocation5 + $0x1e0] sm:$0xff]
    %v205 = vld [vmem:[#allocation5 + $0x1e8] sm:$0xff]
    %v206 = vld [vmem:[#allocation5 + $0x1f0] sm:$0xf]
    %v207 = vld [vmem:[#allocation5 + $0x1f4] sm:$0xff]
    %v208 = vld [vmem:[#allocation5 + $0x1fc] sm:$0xff]
    %v209 = vld [vmem:[#allocation5 + $0x204] sm:$0xf]
    %v210 = vld [vmem:[#allocation5 + $0x208] sm:$0xff]
    %v211 = vld [vmem:[#allocation5 + $0x210] sm:$0xff]
    %v212 = vld [vmem:[#allocation5 + $0x218] sm:$0xf]
    %v213 = vld [vmem:[#allocation5 + $0x21c] sm:$0xff]
    %v214 = vld [vmem:[#allocation5 + $0x224] sm:$0xff]
    %v215 = vld [vmem:[#allocation5 + $0x22c] sm:$0xf]
    %v216 = vld [vmem:[#allocation5 + $0x230] sm:$0xff]
    %v217 = vld [vmem:[#allocation5 + $0x238] sm:$0xff]
    %v218 = vld [vmem:[#allocation5 + $0x240] sm:$0xf]
    %v219 = vld [vmem:[#allocation5 + $0x244] sm:$0xff]
    %v220 = vld [vmem:[#allocation5 + $0x24c] sm:$0xff]
    %v221 = vld [vmem:[#allocation5 + $0x254] sm:$0xf]
    %v222 = vld [vmem:[#allocation5 + $0x258] sm:$0xff]
    %v223 = vld [vmem:[#allocation5 + $0x260] sm:$0xff]
    %v224 = vld [vmem:[#allocation5 + $0x268] sm:$0xf]
    %v225 = vld [vmem:[#allocation5 + $0x26c] sm:$0xff]
    %v226 = vld [vmem:[#allocation5 + $0x274] sm:$0xff]
    %v227 = vld [vmem:[#allocation5 + $0x27c] sm:$0xf]
    %v228 = vld [vmem:[#allocation5 + $0x280] sm:$0xff]
    %v229 = vld [vmem:[#allocation5 + $0x288] sm:$0xff]
    %v230 = vld [vmem:[#allocation5 + $0x290] sm:$0xf]
    %v231 = vld [vmem:[#allocation5 + $0x294] sm:$0xff]
    %v232 = vld [vmem:[#allocation5 + $0x29c] sm:$0xff]
    %v233 = vld [vmem:[#allocation5 + $0x2a4] sm:$0xf]
    %v234 = vld [vmem:[#allocation5 + $0x2a8] sm:$0xff]
    %v235 = vld [vmem:[#allocation5 + $0x2b0] sm:$0xff]
    %v236 = vld [vmem:[#allocation5 + $0x2b8] sm:$0xf]
    %v237 = vld [vmem:[#allocation5 + $0x2bc] sm:$0xff]
    %v238 = vld [vmem:[#allocation5 + $0x2c4] sm:$0xff]
    %v239 = vld [vmem:[#allocation5 + $0x2cc] sm:$0xf]
    %v240 = vld [vmem:[#allocation5 + $0x2d0] sm:$0xff]
    %v241 = vld [vmem:[#allocation5 + $0x2d8] sm:$0xff]
    %v242 = vld [vmem:[#allocation5 + $0x2e0] sm:$0xf]
    %v243 = vld [vmem:[#allocation5 + $0x2e4] sm:$0xff]
    %v244 = vld [vmem:[#allocation5 + $0x2ec] sm:$0xff]
    %v245 = vld [vmem:[#allocation5 + $0x2f4] sm:$0xf]
    %v246 = vld [vmem:[#allocation5 + $0x2f8] sm:$0xff]
    %v247 = vld [vmem:[#allocation5 + $0x300] sm:$0xff]
    %v248 = vld [vmem:[#allocation5 + $0x308] sm:$0xf]
    %v249 = vld [vmem:[#allocation5 + $0x30c] sm:$0xff]
    %v250 = vld [vmem:[#allocation5 + $0x314] sm:$0xff]
    %v251 = vld [vmem:[#allocation5 + $0x31c] sm:$0xf]
    %v252 = vld [vmem:[#allocation5 + $0x320] sm:$0xff]
    %v253 = vld [vmem:[#allocation5 + $0x328] sm:$0xff]
    %v254 = vld [vmem:[#allocation5 + $0x330] sm:$0xf]
    %v255 = vld [vmem:[#allocation5 + $0x334] sm:$0xff]
    %v256 = vld [vmem:[#allocation5 + $0x33c] sm:$0xff]
    %v257 = vld [vmem:[#allocation5 + $0x344] sm:$0xf]
    %v258 = vld [vmem:[#allocation5 + $0x348] sm:$0xff]
    %v259 = vld [vmem:[#allocation5 + $0x350] sm:$0xff]
    %v260 = vld [vmem:[#allocation5 + $0x358] sm:$0xf]
    %v261 = vld [vmem:[#allocation5 + $0x35c] sm:$0xff]
    %v262 = vld [vmem:[#allocation5 + $0x364] sm:$0xff]
    %v263 = vld [vmem:[#allocation5 + $0x36c] sm:$0xf]
    %v264 = vld [vmem:[#allocation5 + $0x370] sm:$0xff]
    %v265 = vld [vmem:[#allocation5 + $0x378] sm:$0xff]
    %v266 = vld [vmem:[#allocation5 + $0x380] sm:$0xf]
    %v267 = vld [vmem:[#allocation5 + $0x384] sm:$0xff]
    %v268 = vld [vmem:[#allocation5 + $0x38c] sm:$0xff]
    %v269 = vld [vmem:[#allocation5 + $0x394] sm:$0xf]
    %v270 = vld [vmem:[#allocation5 + $0x398] sm:$0xff]
    %v271 = vld [vmem:[#allocation5 + $0x3a0] sm:$0xff]
    %v272 = vld [vmem:[#allocation5 + $0x3a8] sm:$0xf]
    %v273 = vld [vmem:[#allocation5 + $0x3ac] sm:$0xff]
    %v274 = vld [vmem:[#allocation5 + $0x3b4] sm:$0xff]
    %v275 = vld [vmem:[#allocation5 + $0x3bc] sm:$0xf]
    %v276 = vld [vmem:[#allocation5 + $0x3c0] sm:$0xff]
    %v277 = vld [vmem:[#allocation5 + $0x3c8] sm:$0xff]
    %v278 = vld [vmem:[#allocation5 + $0x3d0] sm:$0xf]
    %v279 = vld [vmem:[#allocation5 + $0x3d4] sm:$0xff]
    %v280 = vld [vmem:[#allocation5 + $0x3dc] sm:$0xff]
    %v281 = vld [vmem:[#allocation5 + $0x3e4] sm:$0xf]
    %v282 = vld [vmem:[#allocation5 + $0x3e8] sm:$0xff]
    %v283 = vld [vmem:[#allocation5 + $0x3f0] sm:$0xff]
    %v284 = vld [vmem:[#allocation5 + $0x3f8] sm:$0xf]
    %v285 = vld [vmem:[#allocation5 + $0x3fc] sm:$0xff]
    %v286 = vld [vmem:[#allocation5 + $0x404] sm:$0xff]
    %v287 = vld [vmem:[#allocation5 + $0x40c] sm:$0xf]
    %v288 = vld [vmem:[#allocation5 + $0x410] sm:$0xff]
    %v289 = vld [vmem:[#allocation5 + $0x418] sm:$0xff]
    %v290 = vld [vmem:[#allocation5 + $0x420] sm:$0xf]
    %v291 = vld [vmem:[#allocation5 + $0x424] sm:$0xff]
    %v292 = vld [vmem:[#allocation5 + $0x42c] sm:$0xff]
    %v293 = vld [vmem:[#allocation5 + $0x434] sm:$0xf]
    %v294 = vld [vmem:[#allocation5 + $0x438] sm:$0xff]
    %v295 = vld [vmem:[#allocation5 + $0x440] sm:$0xff]
    %v296 = vld [vmem:[#allocation5 + $0x448] sm:$0xf]
    %v297 = vld [vmem:[#allocation5 + $0x44c] sm:$0xff]
    %v298 = vld [vmem:[#allocation5 + $0x454] sm:$0xff]
    %v299 = vld [vmem:[#allocation5 + $0x45c] sm:$0xf]
    %v300 = vld [vmem:[#allocation5 + $0x460] sm:$0xff]
    %v301 = vld [vmem:[#allocation5 + $0x468] sm:$0xff]
    %v302 = vld [vmem:[#allocation5 + $0x470] sm:$0xf]
    %v303 = vld [vmem:[#allocation5 + $0x474] sm:$0xff]
    %v304 = vld [vmem:[#allocation5 + $0x47c] sm:$0xff]
    %v305 = vld [vmem:[#allocation5 + $0x484] sm:$0xf]
    %v306 = vld [vmem:[#allocation5 + $0x488] sm:$0xff]
    %v307 = vld [vmem:[#allocation5 + $0x490] sm:$0xff]
    %v308 = vld [vmem:[#allocation5 + $0x498] sm:$0xf]
    %v309 = vld [vmem:[#allocation5 + $0x49c] sm:$0xff]
    %v310 = vld [vmem:[#allocation5 + $0x4a4] sm:$0xff]
    %v311 = vld [vmem:[#allocation5 + $0x4ac] sm:$0xf]
    %v312 = vld [vmem:[#allocation5 + $0x4b0] sm:$0xff]
    %v313 = vld [vmem:[#allocation5 + $0x4b8] sm:$0xff]
    %v314 = vld [vmem:[#allocation5 + $0x4c0] sm:$0xf]
    %v315 = vld [vmem:[#allocation5 + $0x4c4] sm:$0xff]
    %v316 = vld [vmem:[#allocation5 + $0x4cc] sm:$0xff]
    %v317 = vld [vmem:[#allocation5 + $0x4d4] sm:$0xf]
    %v318 = vld [vmem:[#allocation5 + $0x4d8] sm:$0xff]
    %v319 = vld [vmem:[#allocation5 + $0x4e0] sm:$0xff]
    %v320 = vld [vmem:[#allocation5 + $0x4e8] sm:$0xf]
    %v321 = vld [vmem:[#allocation5 + $0x4ec] sm:$0xff]
    %v322 = vld [vmem:[#allocation5 + $0x4f4] sm:$0xff]
    %v323 = vld [vmem:[#allocation5 + $0x4fc] sm:$0xf]
    %v324 = vld [vmem:[#allocation5 + $0x500] sm:$0xff]
    %v325 = vld [vmem:[#allocation5 + $0x508] sm:$0xff]
    %v326 = vld [vmem:[#allocation5 + $0x510] sm:$0xf]
    %v327 = vld [vmem:[#allocation5 + $0x514] sm:$0xff]
    %v328 = vld [vmem:[#allocation5 + $0x51c] sm:$0xff]
    %v329 = vld [vmem:[#allocation5 + $0x524] sm:$0xf]
    %v330 = vld [vmem:[#allocation5 + $0x528] sm:$0xff]
    %v331 = vld [vmem:[#allocation5 + $0x530] sm:$0xff]
    %v332 = vld [vmem:[#allocation5 + $0x538] sm:$0xf]
    %v333 = vld [vmem:[#allocation5 + $0x53c] sm:$0xff]
    %v334 = vld [vmem:[#allocation5 + $0x544] sm:$0xff]
    %v335 = vld [vmem:[#allocation5 + $0x54c] sm:$0xf]
    %v336 = vld [vmem:[#allocation5 + $0x550] sm:$0xff]
    %v337 = vld [vmem:[#allocation5 + $0x558] sm:$0xff]
    %v338 = vld [vmem:[#allocation5 + $0x560] sm:$0xf]
    %v339 = vld [vmem:[#allocation5 + $0x564] sm:$0xff]
    %v340 = vld [vmem:[#allocation5 + $0x56c] sm:$0xff]
    %v341 = vld [vmem:[#allocation5 + $0x574] sm:$0xf]
    %v342 = vld [vmem:[#allocation5 + $0x578] sm:$0xff]
    %v343 = vld [vmem:[#allocation5 + $0x580] sm:$0xff]
    %v344 = vld [vmem:[#allocation5 + $0x588] sm:$0xf]
    %v345 = vld [vmem:[#allocation5 + $0x58c] sm:$0xff]
    %v346 = vld [vmem:[#allocation5 + $0x594] sm:$0xff]
    %v347 = vld [vmem:[#allocation5 + $0x59c] sm:$0xf]
    %v348 = vld [vmem:[#allocation5 + $0x5a0] sm:$0xff]
    %v349 = vld [vmem:[#allocation5 + $0x5a8] sm:$0xff]
    %v350 = vld [vmem:[#allocation5 + $0x5b0] sm:$0xf]
    %v351 = vld [vmem:[#allocation5 + $0x5b4] sm:$0xff]
    %v352 = vld [vmem:[#allocation5 + $0x5bc] sm:$0xff]
    %v353 = vld [vmem:[#allocation5 + $0x5c4] sm:$0xf]
    %v354 = vld [vmem:[#allocation5 + $0x5c8] sm:$0xff]
    %v355 = vld [vmem:[#allocation5 + $0x5d0] sm:$0xff]
    %v356 = vld [vmem:[#allocation5 + $0x5d8] sm:$0xf]
    %v357 = vld [vmem:[#allocation5 + $0x5dc] sm:$0xff]
    %v358 = vld [vmem:[#allocation5 + $0x5e4] sm:$0xff]
    %v359 = vld [vmem:[#allocation5 + $0x5ec] sm:$0xf]
    %v360 = vld [vmem:[#allocation5 + $0x5f0] sm:$0xff]
    %v361 = vld [vmem:[#allocation5 + $0x5f8] sm:$0xff]
    %v362 = vld [vmem:[#allocation5 + $0x600] sm:$0xf]
    %v363 = vld [vmem:[#allocation5 + $0x604] sm:$0xff]
    %v364 = vld [vmem:[#allocation5 + $0x60c] sm:$0xff]
    %v365 = vld [vmem:[#allocation5 + $0x614] sm:$0xf]
    %v366 = vld [vmem:[#allocation5 + $0x618] sm:$0xff]
    %v367 = vld [vmem:[#allocation5 + $0x620] sm:$0xff]
    %v368 = vld [vmem:[#allocation5 + $0x628] sm:$0xf]
    %v369 = vld [vmem:[#allocation5 + $0x62c] sm:$0xff]
    %v370 = vld [vmem:[#allocation5 + $0x634] sm:$0xff]
    %v371 = vld [vmem:[#allocation5 + $0x63c] sm:$0xf]
    %v372 = vld [vmem:[#allocation5 + $0x640] sm:$0xff]
    %v373 = vld [vmem:[#allocation5 + $0x648] sm:$0xff]
    %v374 = vld [vmem:[#allocation5 + $0x650] sm:$0xf]
    %v375 = vld [vmem:[#allocation5 + $0x654] sm:$0xff]
    %v376 = vld [vmem:[#allocation5 + $0x65c] sm:$0xff]
    %v377 = vld [vmem:[#allocation5 + $0x664] sm:$0xf]
    %v378 = vld [vmem:[#allocation5 + $0x668] sm:$0xff]
    %v379 = vld [vmem:[#allocation5 + $0x670] sm:$0xff]
    %v380 = vld [vmem:[#allocation5 + $0x678] sm:$0xf]
    %v381 = vld [vmem:[#allocation5 + $0x67c] sm:$0xff]
    %v382 = vld [vmem:[#allocation5 + $0x684] sm:$0xff]
    %v383 = vld [vmem:[#allocation5 + $0x68c] sm:$0xf]
    %v384 = vld [vmem:[#allocation5 + $0x690] sm:$0xff]
    %v385 = vld [vmem:[#allocation5 + $0x698] sm:$0xff]
    %v386 = vld [vmem:[#allocation5 + $0x6a0] sm:$0xf]
    %v387 = vld [vmem:[#allocation5 + $0x6a4] sm:$0xff]
    %v388 = vld [vmem:[#allocation5 + $0x6ac] sm:$0xff]
    %v389 = vld [vmem:[#allocation5 + $0x6b4] sm:$0xf]
    %v390 = vld [vmem:[#allocation5 + $0x6b8] sm:$0xff]
    %v391 = vld [vmem:[#allocation5 + $0x6c0] sm:$0xff]
    %v392 = vld [vmem:[#allocation5 + $0x6c8] sm:$0xf]
    %v393 = vld [vmem:[#allocation5 + $0x6cc] sm:$0xff]
    %v394 = vld [vmem:[#allocation5 + $0x6d4] sm:$0xff]
    %v395 = vld [vmem:[#allocation5 + $0x6dc] sm:$0xf]
    %v396 = vld [vmem:[#allocation5 + $0x6e0] sm:$0xff]
    %v397 = vld [vmem:[#allocation5 + $0x6e8] sm:$0xff]
    %v398 = vld [vmem:[#allocation5 + $0x6f0] sm:$0xf]
    %v399 = vld [vmem:[#allocation5 + $0x6f4] sm:$0xff]
    %v400 = vld [vmem:[#allocation5 + $0x6fc] sm:$0xff]
    %v401 = vld [vmem:[#allocation5 + $0x704] sm:$0xf]
    %v402 = vld [vmem:[#allocation5 + $0x708] sm:$0xff]
    %v403 = vld [vmem:[#allocation5 + $0x710] sm:$0xff]
    %v404 = vld [vmem:[#allocation5 + $0x718] sm:$0xf]
    %v405 = vld [vmem:[#allocation5 + $0x71c] sm:$0xff]
    %v406 = vld [vmem:[#allocation5 + $0x724] sm:$0xff]
    %v407 = vld [vmem:[#allocation5 + $0x72c] sm:$0xf]
    %v408 = vld [vmem:[#allocation5 + $0x730] sm:$0xff]
    %v409 = vld [vmem:[#allocation5 + $0x738] sm:$0xff]
    %v410 = vld [vmem:[#allocation5 + $0x740] sm:$0xf]
    %v411 = vld [vmem:[#allocation5 + $0x744] sm:$0xff]
    %v412 = vld [vmem:[#allocation5 + $0x74c] sm:$0xff]
    %v413 = vld [vmem:[#allocation5 + $0x754] sm:$0xf]
    %v414 = vld [vmem:[#allocation5 + $0x758] sm:$0xff]
    %v415 = vld [vmem:[#allocation5 + $0x760] sm:$0xff]
    %v416 = vld [vmem:[#allocation5 + $0x768] sm:$0xf]
    %v417 = vld [vmem:[#allocation5 + $0x76c] sm:$0xff]
    %v418 = vld [vmem:[#allocation5 + $0x774] sm:$0xff]
    %v419 = vld [vmem:[#allocation5 + $0x77c] sm:$0xf]
    %v420 = vld [vmem:[#allocation5 + $0x780] sm:$0xff]
    %v421 = vld [vmem:[#allocation5 + $0x788] sm:$0xff]
    %v422 = vld [vmem:[#allocation5 + $0x790] sm:$0xf]
    %v423 = vld [vmem:[#allocation5 + $0x794] sm:$0xff]
    %v424 = vld [vmem:[#allocation5 + $0x79c] sm:$0xff]
    %v425 = vld [vmem:[#allocation5 + $0x7a4] sm:$0xf]
    %v426 = vld [vmem:[#allocation7] sm:$0x1f]
    %v428 = vlaneseq
    %v429 = vshrl.u32 %v428, 7
    %v430 = vsub.s32 0, %v429
    %v431 = vrot.slane %v426, %v430
    %v432 = vlaneseq
    %v433 = vshrl.u32 %v432, 7
    %v434 = vsub.s32 1, %v433
    %v435 = vrot.slane %v426, %v434
    %v436 = vlaneseq
    %v437 = vshrl.u32 %v436, 7
    %v438 = vsub.s32 2, %v437
    %v439 = vrot.slane %v426, %v438
    %v440 = vlaneseq
    %v441 = vshrl.u32 %v440, 7
    %v442 = vsub.s32 3, %v441
    %v443 = vrot.slane %v426, %v442
    %v444 = vlaneseq
    %v445 = vshrl.u32 %v444, 7
    %v446 = vsub.s32 4, %v445
    %v447 = vrot.slane %v426, %v446
    %v747 = vunpack.c.l.b16 %v132
    %v748 = vunpack.c.h.b16 %v132
    %v749 = vunpack.c.l.b16 %v133
    %v750 = vunpack.c.h.b16 %v133
    %v751 = vunpack.c.l.b16 %v134
    %v752 = vunpack.c.l.b16 %v135
    %v753 = vunpack.c.h.b16 %v135
    %v754 = vunpack.c.l.b16 %v136
    %v755 = vunpack.c.h.b16 %v136
    %v756 = vunpack.c.l.b16 %v137
    %v757 = vunpack.c.l.b16 %v138
    %v758 = vunpack.c.h.b16 %v138
    %v759 = vunpack.c.l.b16 %v139
    %v760 = vunpack.c.h.b16 %v139
    %v761 = vunpack.c.l.b16 %v140
    %v762 = vunpack.c.l.b16 %v141
    %v763 = vunpack.c.h.b16 %v141
    %v764 = vunpack.c.l.b16 %v142
    %v765 = vunpack.c.h.b16 %v142
    %v766 = vunpack.c.l.b16 %v143
    %v767 = vunpack.c.l.b16 %v144
    %v768 = vunpack.c.h.b16 %v144
    %v769 = vunpack.c.l.b16 %v145
    %v770 = vunpack.c.h.b16 %v145
    %v771 = vunpack.c.l.b16 %v146
    %v772 = vunpack.c.l.b16 %v147
    %v773 = vunpack.c.h.b16 %v147
    %v774 = vunpack.c.l.b16 %v148
    %v775 = vunpack.c.h.b16 %v148
    %v776 = vunpack.c.l.b16 %v149
    %v777 = vunpack.c.l.b16 %v150
    %v778 = vunpack.c.h.b16 %v150
    %v779 = vunpack.c.l.b16 %v151
    %v780 = vunpack.c.h.b16 %v151
    %v781 = vunpack.c.l.b16 %v152
    %v782 = vunpack.c.l.b16 %v153
    %v783 = vunpack.c.h.b16 %v153
    %v784 = vunpack.c.l.b16 %v154
    %v785 = vunpack.c.h.b16 %v154
    %v786 = vunpack.c.l.b16 %v155
    %v787 = vunpack.c.l.b16 %v156
    %v788 = vunpack.c.h.b16 %v156
    %v789 = vunpack.c.l.b16 %v157
    %v790 = vunpack.c.h.b16 %v157
    %v791 = vunpack.c.l.b16 %v158
    %v792 = vunpack.c.l.b16 %v159
    %v793 = vunpack.c.h.b16 %v159
    %v794 = vunpack.c.l.b16 %v160
    %v795 = vunpack.c.h.b16 %v160
    %v796 = vunpack.c.l.b16 %v161
    %v797 = vunpack.c.l.b16 %v162
    %v798 = vunpack.c.h.b16 %v162
    %v799 = vunpack.c.l.b16 %v163
    %v800 = vunpack.c.h.b16 %v163
    %v801 = vunpack.c.l.b16 %v164
    %v802 = vunpack.c.l.b16 %v165
    %v803 = vunpack.c.h.b16 %v165
    %v804 = vunpack.c.l.b16 %v166
    %v805 = vunpack.c.h.b16 %v166
    %v806 = vunpack.c.l.b16 %v167
    %v807 = vunpack.c.l.b16 %v168
    %v808 = vunpack.c.h.b16 %v168
    %v809 = vunpack.c.l.b16 %v169
    %v810 = vunpack.c.h.b16 %v169
    %v811 = vunpack.c.l.b16 %v170
    %v812 = vunpack.c.l.b16 %v171
    %v813 = vunpack.c.h.b16 %v171
    %v814 = vunpack.c.l.b16 %v172
    %v815 = vunpack.c.h.b16 %v172
    %v816 = vunpack.c.l.b16 %v173
    %v817 = vunpack.c.l.b16 %v174
    %v818 = vunpack.c.h.b16 %v174
    %v819 = vunpack.c.l.b16 %v175
    %v820 = vunpack.c.h.b16 %v175
    %v821 = vunpack.c.l.b16 %v176
    %v822 = vunpack.c.l.b16 %v177
    %v823 = vunpack.c.h.b16 %v177
    %v824 = vunpack.c.l.b16 %v178
    %v825 = vunpack.c.h.b16 %v178
    %v826 = vunpack.c.l.b16 %v179
    %v827 = vunpack.c.l.b16 %v180
    %v828 = vunpack.c.h.b16 %v180
    %v829 = vunpack.c.l.b16 %v181
    %v830 = vunpack.c.h.b16 %v181
    %v831 = vunpack.c.l.b16 %v182
    %v832 = vunpack.c.l.b16 %v183
    %v833 = vunpack.c.h.b16 %v183
    %v834 = vunpack.c.l.b16 %v184
    %v835 = vunpack.c.h.b16 %v184
    %v836 = vunpack.c.l.b16 %v185
    %v837 = vunpack.c.l.b16 %v186
    %v838 = vunpack.c.h.b16 %v186
    %v839 = vunpack.c.l.b16 %v187
    %v840 = vunpack.c.h.b16 %v187
    %v841 = vunpack.c.l.b16 %v188
    %v842 = vunpack.c.l.b16 %v189
    %v843 = vunpack.c.h.b16 %v189
    %v844 = vunpack.c.l.b16 %v190
    %v845 = vunpack.c.h.b16 %v190
    %v846 = vunpack.c.l.b16 %v191
    %v847 = vunpack.c.l.b16 %v192
    %v848 = vunpack.c.h.b16 %v192
    %v849 = vunpack.c.l.b16 %v193
    %v850 = vunpack.c.h.b16 %v193
    %v851 = vunpack.c.l.b16 %v194
    %v852 = vunpack.c.l.b16 %v195
    %v853 = vunpack.c.h.b16 %v195
    %v854 = vunpack.c.l.b16 %v196
    %v855 = vunpack.c.h.b16 %v196
    %v856 = vunpack.c.l.b16 %v197
    %v857 = vunpack.c.l.b16 %v198
    %v858 = vunpack.c.h.b16 %v198
    %v859 = vunpack.c.l.b16 %v199
    %v860 = vunpack.c.h.b16 %v199
    %v861 = vunpack.c.l.b16 %v200
    %v862 = vunpack.c.l.b16 %v201
    %v863 = vunpack.c.h.b16 %v201
    %v864 = vunpack.c.l.b16 %v202
    %v865 = vunpack.c.h.b16 %v202
    %v866 = vunpack.c.l.b16 %v203
    %v867 = vunpack.c.l.b16 %v204
    %v868 = vunpack.c.h.b16 %v204
    %v869 = vunpack.c.l.b16 %v205
    %v870 = vunpack.c.h.b16 %v205
    %v871 = vunpack.c.l.b16 %v206
    %v872 = vunpack.c.l.b16 %v207
    %v873 = vunpack.c.h.b16 %v207
    %v874 = vunpack.c.l.b16 %v208
    %v875 = vunpack.c.h.b16 %v208
    %v876 = vunpack.c.l.b16 %v209
    %v877 = vunpack.c.l.b16 %v210
    %v878 = vunpack.c.h.b16 %v210
    %v879 = vunpack.c.l.b16 %v211
    %v880 = vunpack.c.h.b16 %v211
    %v881 = vunpack.c.l.b16 %v212
    %v882 = vunpack.c.l.b16 %v213
    %v883 = vunpack.c.h.b16 %v213
    %v884 = vunpack.c.l.b16 %v214
    %v885 = vunpack.c.h.b16 %v214
    %v886 = vunpack.c.l.b16 %v215
    %v887 = vunpack.c.l.b16 %v216
    %v888 = vunpack.c.h.b16 %v216
    %v889 = vunpack.c.l.b16 %v217
    %v890 = vunpack.c.h.b16 %v217
    %v891 = vunpack.c.l.b16 %v218
    %v892 = vunpack.c.l.b16 %v219
    %v893 = vunpack.c.h.b16 %v219
    %v894 = vunpack.c.l.b16 %v220
    %v895 = vunpack.c.h.b16 %v220
    %v896 = vunpack.c.l.b16 %v221
    %v897 = vunpack.c.l.b16 %v222
    %v898 = vunpack.c.h.b16 %v222
    %v899 = vunpack.c.l.b16 %v223
    %v900 = vunpack.c.h.b16 %v223
    %v901 = vunpack.c.l.b16 %v224
    %v902 = vunpack.c.l.b16 %v225
    %v903 = vunpack.c.h.b16 %v225
    %v904 = vunpack.c.l.b16 %v226
    %v905 = vunpack.c.h.b16 %v226
    %v906 = vunpack.c.l.b16 %v227
    %v907 = vunpack.c.l.b16 %v228
    %v908 = vunpack.c.h.b16 %v228
    %v909 = vunpack.c.l.b16 %v229
    %v910 = vunpack.c.h.b16 %v229
    %v911 = vunpack.c.l.b16 %v230
    %v912 = vunpack.c.l.b16 %v231
    %v913 = vunpack.c.h.b16 %v231
    %v914 = vunpack.c.l.b16 %v232
    %v915 = vunpack.c.h.b16 %v232
    %v916 = vunpack.c.l.b16 %v233
    %v917 = vunpack.c.l.b16 %v234
    %v918 = vunpack.c.h.b16 %v234
    %v919 = vunpack.c.l.b16 %v235
    %v920 = vunpack.c.h.b16 %v235
    %v921 = vunpack.c.l.b16 %v236
    %v922 = vunpack.c.l.b16 %v237
    %v923 = vunpack.c.h.b16 %v237
    %v924 = vunpack.c.l.b16 %v238
    %v925 = vunpack.c.h.b16 %v238
    %v926 = vunpack.c.l.b16 %v239
    %v927 = vunpack.c.l.b16 %v240
    %v928 = vunpack.c.h.b16 %v240
    %v929 = vunpack.c.l.b16 %v241
    %v930 = vunpack.c.h.b16 %v241
    %v931 = vunpack.c.l.b16 %v242
    %v932 = vunpack.c.l.b16 %v243
    %v933 = vunpack.c.h.b16 %v243
    %v934 = vunpack.c.l.b16 %v244
    %v935 = vunpack.c.h.b16 %v244
    %v936 = vunpack.c.l.b16 %v245
    %v937 = vunpack.c.l.b16 %v246
    %v938 = vunpack.c.h.b16 %v246
    %v939 = vunpack.c.l.b16 %v247
    %v940 = vunpack.c.h.b16 %v247
    %v941 = vunpack.c.l.b16 %v248
    %v942 = vunpack.c.l.b16 %v249
    %v943 = vunpack.c.h.b16 %v249
    %v944 = vunpack.c.l.b16 %v250
    %v945 = vunpack.c.h.b16 %v250
    %v946 = vunpack.c.l.b16 %v251
    %v947 = vunpack.c.l.b16 %v252
    %v948 = vunpack.c.h.b16 %v252
    %v949 = vunpack.c.l.b16 %v253
    %v950 = vunpack.c.h.b16 %v253
    %v951 = vunpack.c.l.b16 %v254
    %v952 = vunpack.c.l.b16 %v255
    %v953 = vunpack.c.h.b16 %v255
    %v954 = vunpack.c.l.b16 %v256
    %v955 = vunpack.c.h.b16 %v256
    %v956 = vunpack.c.l.b16 %v257
    %v957 = vunpack.c.l.b16 %v258
    %v958 = vunpack.c.h.b16 %v258
    %v959 = vunpack.c.l.b16 %v259
    %v960 = vunpack.c.h.b16 %v259
    %v961 = vunpack.c.l.b16 %v260
    %v962 = vunpack.c.l.b16 %v261
    %v963 = vunpack.c.h.b16 %v261
    %v964 = vunpack.c.l.b16 %v262
    %v965 = vunpack.c.h.b16 %v262
    %v966 = vunpack.c.l.b16 %v263
    %v967 = vunpack.c.l.b16 %v264
    %v968 = vunpack.c.h.b16 %v264
    %v969 = vunpack.c.l.b16 %v265
    %v970 = vunpack.c.h.b16 %v265
    %v971 = vunpack.c.l.b16 %v266
    %v972 = vunpack.c.l.b16 %v267
    %v973 = vunpack.c.h.b16 %v267
    %v974 = vunpack.c.l.b16 %v268
    %v975 = vunpack.c.h.b16 %v268
    %v976 = vunpack.c.l.b16 %v269
    %v977 = vunpack.c.l.b16 %v270
    %v978 = vunpack.c.h.b16 %v270
    %v979 = vunpack.c.l.b16 %v271
    %v980 = vunpack.c.h.b16 %v271
    %v981 = vunpack.c.l.b16 %v272
    %v982 = vunpack.c.l.b16 %v273
    %v983 = vunpack.c.h.b16 %v273
    %v984 = vunpack.c.l.b16 %v274
    %v985 = vunpack.c.h.b16 %v274
    %v986 = vunpack.c.l.b16 %v275
    %v987 = vunpack.c.l.b16 %v276
    %v988 = vunpack.c.h.b16 %v276
    %v989 = vunpack.c.l.b16 %v277
    %v990 = vunpack.c.h.b16 %v277
    %v991 = vunpack.c.l.b16 %v278
    %v992 = vunpack.c.l.b16 %v279
    %v993 = vunpack.c.h.b16 %v279
    %v994 = vunpack.c.l.b16 %v280
    %v995 = vunpack.c.h.b16 %v280
    %v996 = vunpack.c.l.b16 %v281
    %v997 = vunpack.c.l.b16 %v282
    %v998 = vunpack.c.h.b16 %v282
    %v999 = vunpack.c.l.b16 %v283
    %v1000 = vunpack.c.h.b16 %v283
    %v1001 = vunpack.c.l.b16 %v284
    %v1002 = vunpack.c.l.b16 %v285
    %v1003 = vunpack.c.h.b16 %v285
    %v1004 = vunpack.c.l.b16 %v286
    %v1005 = vunpack.c.h.b16 %v286
    %v1006 = vunpack.c.l.b16 %v287
    %v1007 = vunpack.c.l.b16 %v288
    %v1008 = vunpack.c.h.b16 %v288
    %v1009 = vunpack.c.l.b16 %v289
    %v1010 = vunpack.c.h.b16 %v289
    %v1011 = vunpack.c.l.b16 %v290
    %v1012 = vunpack.c.l.b16 %v291
    %v1013 = vunpack.c.h.b16 %v291
    %v1014 = vunpack.c.l.b16 %v292
    %v1015 = vunpack.c.h.b16 %v292
    %v1016 = vunpack.c.l.b16 %v293
    %v1017 = vunpack.c.l.b16 %v294
    %v1018 = vunpack.c.h.b16 %v294
    %v1019 = vunpack.c.l.b16 %v295
    %v1020 = vunpack.c.h.b16 %v295
    %v1021 = vunpack.c.l.b16 %v296
    %v1022 = vunpack.c.l.b16 %v297
    %v1023 = vunpack.c.h.b16 %v297
    %v1024 = vunpack.c.l.b16 %v298
    %v1025 = vunpack.c.h.b16 %v298
    %v1026 = vunpack.c.l.b16 %v299
    %v1027 = vunpack.c.l.b16 %v300
    %v1028 = vunpack.c.h.b16 %v300
    %v1029 = vunpack.c.l.b16 %v301
    %v1030 = vunpack.c.h.b16 %v301
    %v1031 = vunpack.c.l.b16 %v302
    %v1032 = vunpack.c.l.b16 %v303
    %v1033 = vunpack.c.h.b16 %v303
    %v1034 = vunpack.c.l.b16 %v304
    %v1035 = vunpack.c.h.b16 %v304
    %v1036 = vunpack.c.l.b16 %v305
    %v1037 = vunpack.c.l.b16 %v306
    %v1038 = vunpack.c.h.b16 %v306
    %v1039 = vunpack.c.l.b16 %v307
    %v1040 = vunpack.c.h.b16 %v307
    %v1041 = vunpack.c.l.b16 %v308
    %v1042 = vunpack.c.l.b16 %v309
    %v1043 = vunpack.c.h.b16 %v309
    %v1044 = vunpack.c.l.b16 %v310
    %v1045 = vunpack.c.h.b16 %v310
    %v1046 = vunpack.c.l.b16 %v311
    %v1047 = vunpack.c.l.b16 %v312
    %v1048 = vunpack.c.h.b16 %v312
    %v1049 = vunpack.c.l.b16 %v313
    %v1050 = vunpack.c.h.b16 %v313
    %v1051 = vunpack.c.l.b16 %v314
    %v1052 = vunpack.c.l.b16 %v315
    %v1053 = vunpack.c.h.b16 %v315
    %v1054 = vunpack.c.l.b16 %v316
    %v1055 = vunpack.c.h.b16 %v316
    %v1056 = vunpack.c.l.b16 %v317
    %v1057 = vunpack.c.l.b16 %v318
    %v1058 = vunpack.c.h.b16 %v318
    %v1059 = vunpack.c.l.b16 %v319
    %v1060 = vunpack.c.h.b16 %v319
    %v1061 = vunpack.c.l.b16 %v320
    %v1062 = vunpack.c.l.b16 %v321
    %v1063 = vunpack.c.h.b16 %v321
    %v1064 = vunpack.c.l.b16 %v322
    %v1065 = vunpack.c.h.b16 %v322
    %v1066 = vunpack.c.l.b16 %v323
    %v1067 = vunpack.c.l.b16 %v324
    %v1068 = vunpack.c.h.b16 %v324
    %v1069 = vunpack.c.l.b16 %v325
    %v1070 = vunpack.c.h.b16 %v325
    %v1071 = vunpack.c.l.b16 %v326
    %v1072 = vunpack.c.l.b16 %v327
    %v1073 = vunpack.c.h.b16 %v327
    %v1074 = vunpack.c.l.b16 %v328
    %v1075 = vunpack.c.h.b16 %v328
    %v1076 = vunpack.c.l.b16 %v329
    %v1077 = vunpack.c.l.b16 %v330
    %v1078 = vunpack.c.h.b16 %v330
    %v1079 = vunpack.c.l.b16 %v331
    %v1080 = vunpack.c.h.b16 %v331
    %v1081 = vunpack.c.l.b16 %v332
    %v1082 = vunpack.c.l.b16 %v333
    %v1083 = vunpack.c.h.b16 %v333
    %v1084 = vunpack.c.l.b16 %v334
    %v1085 = vunpack.c.h.b16 %v334
    %v1086 = vunpack.c.l.b16 %v335
    %v1087 = vunpack.c.l.b16 %v336
    %v1088 = vunpack.c.h.b16 %v336
    %v1089 = vunpack.c.l.b16 %v337
    %v1090 = vunpack.c.h.b16 %v337
    %v1091 = vunpack.c.l.b16 %v338
    %v1092 = vunpack.c.l.b16 %v339
    %v1093 = vunpack.c.h.b16 %v339
    %v1094 = vunpack.c.l.b16 %v340
    %v1095 = vunpack.c.h.b16 %v340
    %v1096 = vunpack.c.l.b16 %v341
    %v1097 = vunpack.c.l.b16 %v342
    %v1098 = vunpack.c.h.b16 %v342
    %v1099 = vunpack.c.l.b16 %v343
    %v1100 = vunpack.c.h.b16 %v343
    %v1101 = vunpack.c.l.b16 %v344
    %v1102 = vunpack.c.l.b16 %v345
    %v1103 = vunpack.c.h.b16 %v345
    %v1104 = vunpack.c.l.b16 %v346
    %v1105 = vunpack.c.h.b16 %v346
    %v1106 = vunpack.c.l.b16 %v347
    %v1107 = vunpack.c.l.b16 %v348
    %v1108 = vunpack.c.h.b16 %v348
    %v1109 = vunpack.c.l.b16 %v349
    %v1110 = vunpack.c.h.b16 %v349
    %v1111 = vunpack.c.l.b16 %v350
    %v1112 = vunpack.c.l.b16 %v351
    %v1113 = vunpack.c.h.b16 %v351
    %v1114 = vunpack.c.l.b16 %v352
    %v1115 = vunpack.c.h.b16 %v352
    %v1116 = vunpack.c.l.b16 %v353
    %v1117 = vunpack.c.l.b16 %v354
    %v1118 = vunpack.c.h.b16 %v354
    %v1119 = vunpack.c.l.b16 %v355
    %v1120 = vunpack.c.h.b16 %v355
    %v1121 = vunpack.c.l.b16 %v356
    %v1122 = vunpack.c.l.b16 %v357
    %v1123 = vunpack.c.h.b16 %v357
    %v1124 = vunpack.c.l.b16 %v358
    %v1125 = vunpack.c.h.b16 %v358
    %v1126 = vunpack.c.l.b16 %v359
    %v1127 = vunpack.c.l.b16 %v360
    %v1128 = vunpack.c.h.b16 %v360
    %v1129 = vunpack.c.l.b16 %v361
    %v1130 = vunpack.c.h.b16 %v361
    %v1131 = vunpack.c.l.b16 %v362
    %v1132 = vunpack.c.l.b16 %v363
    %v1133 = vunpack.c.h.b16 %v363
    %v1134 = vunpack.c.l.b16 %v364
    %v1135 = vunpack.c.h.b16 %v364
    %v1136 = vunpack.c.l.b16 %v365
    %v1137 = vunpack.c.l.b16 %v366
    %v1138 = vunpack.c.h.b16 %v366
    %v1139 = vunpack.c.l.b16 %v367
    %v1140 = vunpack.c.h.b16 %v367
    %v1141 = vunpack.c.l.b16 %v368
    %v1142 = vunpack.c.l.b16 %v369
    %v1143 = vunpack.c.h.b16 %v369
    %v1144 = vunpack.c.l.b16 %v370
    %v1145 = vunpack.c.h.b16 %v370
    %v1146 = vunpack.c.l.b16 %v371
    %v1147 = vunpack.c.l.b16 %v372
    %v1148 = vunpack.c.h.b16 %v372
    %v1149 = vunpack.c.l.b16 %v373
    %v1150 = vunpack.c.h.b16 %v373
    %v1151 = vunpack.c.l.b16 %v374
    %v1152 = vunpack.c.l.b16 %v375
    %v1153 = vunpack.c.h.b16 %v375
    %v1154 = vunpack.c.l.b16 %v376
    %v1155 = vunpack.c.h.b16 %v376
    %v1156 = vunpack.c.l.b16 %v377
    %v1157 = vunpack.c.l.b16 %v378
    %v1158 = vunpack.c.h.b16 %v378
    %v1159 = vunpack.c.l.b16 %v379
    %v1160 = vunpack.c.h.b16 %v379
    %v1161 = vunpack.c.l.b16 %v380
    %v1162 = vunpack.c.l.b16 %v381
    %v1163 = vunpack.c.h.b16 %v381
    %v1164 = vunpack.c.l.b16 %v382
    %v1165 = vunpack.c.h.b16 %v382
    %v1166 = vunpack.c.l.b16 %v383
    %v1167 = vunpack.c.l.b16 %v384
    %v1168 = vunpack.c.h.b16 %v384
    %v1169 = vunpack.c.l.b16 %v385
    %v1170 = vunpack.c.h.b16 %v385
    %v1171 = vunpack.c.l.b16 %v386
    %v1172 = vunpack.c.l.b16 %v387
    %v1173 = vunpack.c.h.b16 %v387
    %v1174 = vunpack.c.l.b16 %v388
    %v1175 = vunpack.c.h.b16 %v388
    %v1176 = vunpack.c.l.b16 %v389
    %v1177 = vunpack.c.l.b16 %v390
    %v1178 = vunpack.c.h.b16 %v390
    %v1179 = vunpack.c.l.b16 %v391
    %v1180 = vunpack.c.h.b16 %v391
    %v1181 = vunpack.c.l.b16 %v392
    %v1182 = vunpack.c.l.b16 %v393
    %v1183 = vunpack.c.h.b16 %v393
    %v1184 = vunpack.c.l.b16 %v394
    %v1185 = vunpack.c.h.b16 %v394
    %v1186 = vunpack.c.l.b16 %v395
    %v1187 = vunpack.c.l.b16 %v396
    %v1188 = vunpack.c.h.b16 %v396
    %v1189 = vunpack.c.l.b16 %v397
    %v1190 = vunpack.c.h.b16 %v397
    %v1191 = vunpack.c.l.b16 %v398
    %v1192 = vunpack.c.l.b16 %v399
    %v1193 = vunpack.c.h.b16 %v399
    %v1194 = vunpack.c.l.b16 %v400
    %v1195 = vunpack.c.h.b16 %v400
    %v1196 = vunpack.c.l.b16 %v401
    %v1197 = vunpack.c.l.b16 %v402
    %v1198 = vunpack.c.h.b16 %v402
    %v1199 = vunpack.c.l.b16 %v403
    %v1200 = vunpack.c.h.b16 %v403
    %v1201 = vunpack.c.l.b16 %v404
    %v1202 = vunpack.c.l.b16 %v405
    %v1203 = vunpack.c.h.b16 %v405
    %v1204 = vunpack.c.l.b16 %v406
    %v1205 = vunpack.c.h.b16 %v406
    %v1206 = vunpack.c.l.b16 %v407
    %v1207 = vunpack.c.l.b16 %v408
    %v1208 = vunpack.c.h.b16 %v408
    %v1209 = vunpack.c.l.b16 %v409
    %v1210 = vunpack.c.h.b16 %v409
    %v1211 = vunpack.c.l.b16 %v410
    %v1212 = vunpack.c.l.b16 %v411
    %v1213 = vunpack.c.h.b16 %v411
    %v1214 = vunpack.c.l.b16 %v412
    %v1215 = vunpack.c.h.b16 %v412
    %v1216 = vunpack.c.l.b16 %v413
    %v1217 = vunpack.c.l.b16 %v414
    %v1218 = vunpack.c.h.b16 %v414
    %v1219 = vunpack.c.l.b16 %v415
    %v1220 = vunpack.c.h.b16 %v415
    %v1221 = vunpack.c.l.b16 %v416
    %v1222 = vunpack.c.l.b16 %v417
    %v1223 = vunpack.c.h.b16 %v417
    %v1224 = vunpack.c.l.b16 %v418
    %v1225 = vunpack.c.h.b16 %v418
    %v1226 = vunpack.c.l.b16 %v419
    %v1227 = vunpack.c.l.b16 %v420
    %v1228 = vunpack.c.h.b16 %v420
    %v1229 = vunpack.c.l.b16 %v421
    %v1230 = vunpack.c.h.b16 %v421
    %v1231 = vunpack.c.l.b16 %v422
    %v1232 = vunpack.c.l.b16 %v423
    %v1233 = vunpack.c.h.b16 %v423
    %v1234 = vunpack.c.l.b16 %v424
    %v1235 = vunpack.c.h.b16 %v424
    %v1236 = vunpack.c.l.b16 %v425
    %v1237 = vpack.c.b16 %v752, %v747
    %v1238 = vpack.c.b16 %v753, %v748
    %v1239 = vpack.c.b16 %v754, %v749
    %v1240 = vpack.c.b16 %v755, %v750
    %v1241 = vpack.c.b16 %v756, %v751
    %v1242 = vpack.c.b16 %v762, %v757
    %v1243 = vpack.c.b16 %v763, %v758
    %v1244 = vpack.c.b16 %v764, %v759
    %v1245 = vpack.c.b16 %v765, %v760
    %v1246 = vpack.c.b16 %v766, %v761
    %v1247 = vpack.c.b16 %v772, %v767
    %v1248 = vpack.c.b16 %v773, %v768
    %v1249 = vpack.c.b16 %v774, %v769
    %v1250 = vpack.c.b16 %v775, %v770
    %v1251 = vpack.c.b16 %v776, %v771
    %v1252 = vpack.c.b16 %v782, %v777
    %v1253 = vpack.c.b16 %v783, %v778
    %v1254 = vpack.c.b16 %v784, %v779
    %v1255 = vpack.c.b16 %v785, %v780
    %v1256 = vpack.c.b16 %v786, %v781
    %v1257 = vpack.c.b16 %v792, %v787
    %v1258 = vpack.c.b16 %v793, %v788
    %v1259 = vpack.c.b16 %v794, %v789
    %v1260 = vpack.c.b16 %v795, %v790
    %v1261 = vpack.c.b16 %v796, %v791
    %v1262 = vpack.c.b16 %v802, %v797
    %v1263 = vpack.c.b16 %v803, %v798
    %v1264 = vpack.c.b16 %v804, %v799
    %v1265 = vpack.c.b16 %v805, %v800
    %v1266 = vpack.c.b16 %v806, %v801
    %v1267 = vpack.c.b16 %v812, %v807
    %v1268 = vpack.c.b16 %v813, %v808
    %v1269 = vpack.c.b16 %v814, %v809
    %v1270 = vpack.c.b16 %v815, %v810
    %v1271 = vpack.c.b16 %v816, %v811
    %v1272 = vpack.c.b16 %v822, %v817
    %v1273 = vpack.c.b16 %v823, %v818
    %v1274 = vpack.c.b16 %v824, %v819
    %v1275 = vpack.c.b16 %v825, %v820
    %v1276 = vpack.c.b16 %v826, %v821
    %v1277 = vpack.c.b16 %v832, %v827
    %v1278 = vpack.c.b16 %v833, %v828
    %v1279 = vpack.c.b16 %v834, %v829
    %v1280 = vpack.c.b16 %v835, %v830
    %v1281 = vpack.c.b16 %v836, %v831
    %v1282 = vpack.c.b16 %v842, %v837
    %v1283 = vpack.c.b16 %v843, %v838
    %v1284 = vpack.c.b16 %v844, %v839
    %v1285 = vpack.c.b16 %v845, %v840
    %v1286 = vpack.c.b16 %v846, %v841
    %v1287 = vpack.c.b16 %v852, %v847
    %v1288 = vpack.c.b16 %v853, %v848
    %v1289 = vpack.c.b16 %v854, %v849
    %v1290 = vpack.c.b16 %v855, %v850
    %v1291 = vpack.c.b16 %v856, %v851
    %v1292 = vpack.c.b16 %v862, %v857
    %v1293 = vpack.c.b16 %v863, %v858
    %v1294 = vpack.c.b16 %v864, %v859
    %v1295 = vpack.c.b16 %v865, %v860
    %v1296 = vpack.c.b16 %v866, %v861
    %v1297 = vpack.c.b16 %v872, %v867
    %v1298 = vpack.c.b16 %v873, %v868
    %v1299 = vpack.c.b16 %v874, %v869
    %v1300 = vpack.c.b16 %v875, %v870
    %v1301 = vpack.c.b16 %v876, %v871
    %v1302 = vpack.c.b16 %v882, %v877
    %v1303 = vpack.c.b16 %v883, %v878
    %v1304 = vpack.c.b16 %v884, %v879
    %v1305 = vpack.c.b16 %v885, %v880
    %v1306 = vpack.c.b16 %v886, %v881
    %v1307 = vpack.c.b16 %v892, %v887
    %v1308 = vpack.c.b16 %v893, %v888
    %v1309 = vpack.c.b16 %v894, %v889
    %v1310 = vpack.c.b16 %v895, %v890
    %v1311 = vpack.c.b16 %v896, %v891
    %v1312 = vpack.c.b16 %v902, %v897
    %v1313 = vpack.c.b16 %v903, %v898
    %v1314 = vpack.c.b16 %v904, %v899
    %v1315 = vpack.c.b16 %v905, %v900
    %v1316 = vpack.c.b16 %v906, %v901
    %v1317 = vpack.c.b16 %v912, %v907
    %v1318 = vpack.c.b16 %v913, %v908
    %v1319 = vpack.c.b16 %v914, %v909
    %v1320 = vpack.c.b16 %v915, %v910
    %v1321 = vpack.c.b16 %v916, %v911
    %v1322 = vpack.c.b16 %v922, %v917
    %v1323 = vpack.c.b16 %v923, %v918
    %v1324 = vpack.c.b16 %v924, %v919
    %v1325 = vpack.c.b16 %v925, %v920
    %v1326 = vpack.c.b16 %v926, %v921
    %v1327 = vpack.c.b16 %v932, %v927
    %v1328 = vpack.c.b16 %v933, %v928
    %v1329 = vpack.c.b16 %v934, %v929
    %v1330 = vpack.c.b16 %v935, %v930
    %v1331 = vpack.c.b16 %v936, %v931
    %v1332 = vpack.c.b16 %v942, %v937
    %v1333 = vpack.c.b16 %v943, %v938
    %v1334 = vpack.c.b16 %v944, %v939
    %v1335 = vpack.c.b16 %v945, %v940
    %v1336 = vpack.c.b16 %v946, %v941
    %v1337 = vpack.c.b16 %v952, %v947
    %v1338 = vpack.c.b16 %v953, %v948
    %v1339 = vpack.c.b16 %v954, %v949
    %v1340 = vpack.c.b16 %v955, %v950
    %v1341 = vpack.c.b16 %v956, %v951
    %v1342 = vpack.c.b16 %v962, %v957
    %v1343 = vpack.c.b16 %v963, %v958
    %v1344 = vpack.c.b16 %v964, %v959
    %v1345 = vpack.c.b16 %v965, %v960
    %v1346 = vpack.c.b16 %v966, %v961
    %v1347 = vpack.c.b16 %v972, %v967
    %v1348 = vpack.c.b16 %v973, %v968
    %v1349 = vpack.c.b16 %v974, %v969
    %v1350 = vpack.c.b16 %v975, %v970
    %v1351 = vpack.c.b16 %v976, %v971
    %v1352 = vpack.c.b16 %v982, %v977
    %v1353 = vpack.c.b16 %v983, %v978
    %v1354 = vpack.c.b16 %v984, %v979
    %v1355 = vpack.c.b16 %v985, %v980
    %v1356 = vpack.c.b16 %v986, %v981
    %v1357 = vpack.c.b16 %v992, %v987
    %v1358 = vpack.c.b16 %v993, %v988
    %v1359 = vpack.c.b16 %v994, %v989
    %v1360 = vpack.c.b16 %v995, %v990
    %v1361 = vpack.c.b16 %v996, %v991
    %v1362 = vpack.c.b16 %v1002, %v997
    %v1363 = vpack.c.b16 %v1003, %v998
    %v1364 = vpack.c.b16 %v1004, %v999
    %v1365 = vpack.c.b16 %v1005, %v1000
    %v1366 = vpack.c.b16 %v1006, %v1001
    %v1367 = vpack.c.b16 %v1012, %v1007
    %v1368 = vpack.c.b16 %v1013, %v1008
    %v1369 = vpack.c.b16 %v1014, %v1009
    %v1370 = vpack.c.b16 %v1015, %v1010
    %v1371 = vpack.c.b16 %v1016, %v1011
    %v1372 = vpack.c.b16 %v1022, %v1017
    %v1373 = vpack.c.b16 %v1023, %v1018
    %v1374 = vpack.c.b16 %v1024, %v1019
    %v1375 = vpack.c.b16 %v1025, %v1020
    %v1376 = vpack.c.b16 %v1026, %v1021
    %v1377 = vpack.c.b16 %v1032, %v1027
    %v1378 = vpack.c.b16 %v1033, %v1028
    %v1379 = vpack.c.b16 %v1034, %v1029
    %v1380 = vpack.c.b16 %v1035, %v1030
    %v1381 = vpack.c.b16 %v1036, %v1031
    %v1382 = vpack.c.b16 %v1042, %v1037
    %v1383 = vpack.c.b16 %v1043, %v1038
    %v1384 = vpack.c.b16 %v1044, %v1039
    %v1385 = vpack.c.b16 %v1045, %v1040
    %v1386 = vpack.c.b16 %v1046, %v1041
    %v1387 = vpack.c.b16 %v1052, %v1047
    %v1388 = vpack.c.b16 %v1053, %v1048
    %v1389 = vpack.c.b16 %v1054, %v1049
    %v1390 = vpack.c.b16 %v1055, %v1050
    %v1391 = vpack.c.b16 %v1056, %v1051
    %v1392 = vpack.c.b16 %v1062, %v1057
    %v1393 = vpack.c.b16 %v1063, %v1058
    %v1394 = vpack.c.b16 %v1064, %v1059
    %v1395 = vpack.c.b16 %v1065, %v1060
    %v1396 = vpack.c.b16 %v1066, %v1061
    %v1397 = vpack.c.b16 %v1072, %v1067
    %v1398 = vpack.c.b16 %v1073, %v1068
    %v1399 = vpack.c.b16 %v1074, %v1069
    %v1400 = vpack.c.b16 %v1075, %v1070
    %v1401 = vpack.c.b16 %v1076, %v1071
    %v1402 = vpack.c.b16 %v1082, %v1077
    %v1403 = vpack.c.b16 %v1083, %v1078
    %v1404 = vpack.c.b16 %v1084, %v1079
    %v1405 = vpack.c.b16 %v1085, %v1080
    %v1406 = vpack.c.b16 %v1086, %v1081
    %v1407 = vpack.c.b16 %v1092, %v1087
    %v1408 = vpack.c.b16 %v1093, %v1088
    %v1409 = vpack.c.b16 %v1094, %v1089
    %v1410 = vpack.c.b16 %v1095, %v1090
    %v1411 = vpack.c.b16 %v1096, %v1091
    %v1412 = vpack.c.b16 %v1102, %v1097
    %v1413 = vpack.c.b16 %v1103, %v1098
    %v1414 = vpack.c.b16 %v1104, %v1099
    %v1415 = vpack.c.b16 %v1105, %v1100
    %v1416 = vpack.c.b16 %v1106, %v1101
    %v1417 = vpack.c.b16 %v1112, %v1107
    %v1418 = vpack.c.b16 %v1113, %v1108
    %v1419 = vpack.c.b16 %v1114, %v1109
    %v1420 = vpack.c.b16 %v1115, %v1110
    %v1421 = vpack.c.b16 %v1116, %v1111
    %v1422 = vpack.c.b16 %v1122, %v1117
    %v1423 = vpack.c.b16 %v1123, %v1118
    %v1424 = vpack.c.b16 %v1124, %v1119
    %v1425 = vpack.c.b16 %v1125, %v1120
    %v1426 = vpack.c.b16 %v1126, %v1121
    %v1427 = vpack.c.b16 %v1132, %v1127
    %v1428 = vpack.c.b16 %v1133, %v1128
    %v1429 = vpack.c.b16 %v1134, %v1129
    %v1430 = vpack.c.b16 %v1135, %v1130
    %v1431 = vpack.c.b16 %v1136, %v1131
    %v1432 = vpack.c.b16 %v1142, %v1137
    %v1433 = vpack.c.b16 %v1143, %v1138
    %v1434 = vpack.c.b16 %v1144, %v1139
    %v1435 = vpack.c.b16 %v1145, %v1140
    %v1436 = vpack.c.b16 %v1146, %v1141
    %v1437 = vpack.c.b16 %v1152, %v1147
    %v1438 = vpack.c.b16 %v1153, %v1148
    %v1439 = vpack.c.b16 %v1154, %v1149
    %v1440 = vpack.c.b16 %v1155, %v1150
    %v1441 = vpack.c.b16 %v1156, %v1151
    %v1442 = vpack.c.b16 %v1162, %v1157
    %v1443 = vpack.c.b16 %v1163, %v1158
    %v1444 = vpack.c.b16 %v1164, %v1159
    %v1445 = vpack.c.b16 %v1165, %v1160
    %v1446 = vpack.c.b16 %v1166, %v1161
    %v1447 = vpack.c.b16 %v1172, %v1167
    %v1448 = vpack.c.b16 %v1173, %v1168
    %v1449 = vpack.c.b16 %v1174, %v1169
    %v1450 = vpack.c.b16 %v1175, %v1170
    %v1451 = vpack.c.b16 %v1176, %v1171
    %v1452 = vpack.c.b16 %v1182, %v1177
    %v1453 = vpack.c.b16 %v1183, %v1178
    %v1454 = vpack.c.b16 %v1184, %v1179
    %v1455 = vpack.c.b16 %v1185, %v1180
    %v1456 = vpack.c.b16 %v1186, %v1181
    %v1457 = vpack.c.b16 %v1192, %v1187
    %v1458 = vpack.c.b16 %v1193, %v1188
    %v1459 = vpack.c.b16 %v1194, %v1189
    %v1460 = vpack.c.b16 %v1195, %v1190
    %v1461 = vpack.c.b16 %v1196, %v1191
    %v1462 = vpack.c.b16 %v1202, %v1197
    %v1463 = vpack.c.b16 %v1203, %v1198
    %v1464 = vpack.c.b16 %v1204, %v1199
    %v1465 = vpack.c.b16 %v1205, %v1200
    %v1466 = vpack.c.b16 %v1206, %v1201
    %v1467 = vpack.c.b16 %v1212, %v1207
    %v1468 = vpack.c.b16 %v1213, %v1208
    %v1469 = vpack.c.b16 %v1214, %v1209
    %v1470 = vpack.c.b16 %v1215, %v1210
    %v1471 = vpack.c.b16 %v1216, %v1211
    %v1472 = vpack.c.b16 %v1222, %v1217
    %v1473 = vpack.c.b16 %v1223, %v1218
    %v1474 = vpack.c.b16 %v1224, %v1219
    %v1475 = vpack.c.b16 %v1225, %v1220
    %v1476 = vpack.c.b16 %v1226, %v1221
    %v1477 = vpack.c.b16 %v1232, %v1227
    %v1478 = vpack.c.b16 %v1233, %v1228
    %v1479 = vpack.c.b16 %v1234, %v1229
    %v1480 = vpack.c.b16 %v1235, %v1230
    %v1481 = vpack.c.b16 %v1236, %v1231
    %vm1727 = vcmask 130048
    %v1729 = vsel %vm1727, %v131, 0
    %1731 = vmatprep.subr.bf16.mxu0 %v1273
    %1732 = vmatpush1.bf16.msra.mxu0 %v1272
    %1733 = vmatprep.subr.bf16.mxu0 %v1268
    %1734 = vmatpush1.bf16.msra.mxu0 %v1267
    %1735 = vmatprep.subr.bf16.mxu0 %v1263
    %1736 = vmatpush1.bf16.msra.mxu0 %v1262
    %1737 = vmatprep.subr.bf16.mxu0 %v1258
    %1738 = vmatpush1.bf16.msra.mxu0 %v1257
    %1739 = vmatprep.subr.bf16.mxu0 %v1253
    %1740 = vmatpush1.bf16.msra.mxu0 %v1252
    %1741 = vmatprep.subr.bf16.mxu0 %v1248
    %1742 = vmatpush1.bf16.msra.mxu0 %v1247
    %1743 = vmatprep.subr.bf16.mxu0 %v1243
    %1744 = vmatpush1.bf16.msra.mxu0 %v1242
    %1745 = vmatprep.subr.bf16.mxu0 %v1238
    %1746 = vmatpush1.bf16.msra.mxu0 %v1237
    %1747 = vmatprep.subr.bf16.mxu0 %v1313
    %1748 = vmatpush2.bf16.msra.mxu0 %v1312
    %1749 = vmatprep.subr.bf16.mxu0 %v1308
    %1750 = vmatpush2.bf16.msra.mxu0 %v1307
    %1751 = vmatprep.subr.bf16.mxu0 %v1303
    %1752 = vmatpush2.bf16.msra.mxu0 %v1302
    %1753 = vmatprep.subr.bf16.mxu0 %v1298
    %1754 = vmatpush2.bf16.msra.mxu0 %v1297
    %1755 = vmatprep.subr.bf16.mxu0 %v1293
    %1756 = vmatpush2.bf16.msra.mxu0 %v1292
    %1757 = vmatprep.subr.bf16.mxu0 %v1288
    %1758 = vmatpush2.bf16.msra.mxu0 %v1287
    %1759 = vmatprep.subr.bf16.mxu0 %v1283
    %1760 = vmatpush2.bf16.msra.mxu0 %v1282
    %1761 = vmatprep.subr.bf16.mxu0 %v1278
    %1762 = vmatpush2.bf16.msra.mxu0 %v1277
    %1763 = vmatprep.mubr.bf16.mxu0 %v126
    %1764 = vmatmul.mubr.bf16.gmra.mxu0 %v125
    %v1765 = vpop.f32.mrf.mxu0
    %v1766 = vadd.f32 %v431, %v1765
    %v1767 = vpop.f32.mrf.mxu0
    %v1768 = vadd.f32 %v435, %v1767
    %v1769 = vpop.f32.mrf.mxu0
    %v1770 = vpop.f32.mrf.mxu0
    %1771 = vdwg.mxu0
    %1772 = vmatprep.subr.bf16.mxu0 %v1353
    %1773 = vmatpush1.bf16.msra.mxu0 %v1352
    %1774 = vmatprep.subr.bf16.mxu0 %v1348
    %1775 = vmatpush1.bf16.msra.mxu0 %v1347
    %1776 = vmatprep.subr.bf16.mxu0 %v1343
    %1777 = vmatpush1.bf16.msra.mxu0 %v1342
    %1778 = vmatprep.subr.bf16.mxu0 %v1338
    %1779 = vmatpush1.bf16.msra.mxu0 %v1337
    %1780 = vmatprep.subr.bf16.mxu0 %v1333
    %1781 = vmatpush1.bf16.msra.mxu0 %v1332
    %1782 = vmatprep.subr.bf16.mxu0 %v1328
    %1783 = vmatpush1.bf16.msra.mxu0 %v1327
    %1784 = vmatprep.subr.bf16.mxu0 %v1323
    %1785 = vmatpush1.bf16.msra.mxu0 %v1322
    %1786 = vmatprep.subr.bf16.mxu0 %v1318
    %1787 = vmatpush1.bf16.msra.mxu0 %v1317
    %1788 = vmatprep.subr.bf16.mxu0 %v1393
    %1789 = vmatpush2.bf16.msra.mxu0 %v1392
    %1790 = vmatprep.subr.bf16.mxu0 %v1388
    %1791 = vmatpush2.bf16.msra.mxu0 %v1387
    %1792 = vmatprep.subr.bf16.mxu0 %v1383
    %1793 = vmatpush2.bf16.msra.mxu0 %v1382
    %1794 = vmatprep.subr.bf16.mxu0 %v1378
    %1795 = vmatpush2.bf16.msra.mxu0 %v1377
    %1796 = vmatprep.subr.bf16.mxu0 %v1373
    %1797 = vmatpush2.bf16.msra.mxu0 %v1372
    %1798 = vmatprep.subr.bf16.mxu0 %v1368
    %1799 = vmatpush2.bf16.msra.mxu0 %v1367
    %1800 = vmatprep.subr.bf16.mxu0 %v1363
    %1801 = vmatpush2.bf16.msra.mxu0 %v1362
    %1802 = vmatprep.subr.bf16.mxu0 %v1358
    %1803 = vmatpush2.bf16.msra.mxu0 %v1357
    %1804 = vmatprep.mubr.bf16.mxu0 %v128
    %1805 = vmatmul.mubr.bf16.gmra.mxu0 %v127
    %v1806 = vpop.f32.mrf.mxu0
    %v1807 = vadd.f32 %v1766, %v1806
    %v1808 = vpop.f32.mrf.mxu0
    %v1809 = vadd.f32 %v1768, %v1808
    %v1810 = vpop.f32.mrf.mxu0
    %v1811 = vpop.f32.mrf.mxu0
    %1812 = vdwg.mxu0
    %1813 = vmatprep.subr.bf16.mxu0 %v1433
    %1814 = vmatpush1.bf16.msra.mxu0 %v1432
    %1815 = vmatprep.subr.bf16.mxu0 %v1428
    %1816 = vmatpush1.bf16.msra.mxu0 %v1427
    %1817 = vmatprep.subr.bf16.mxu0 %v1423
    %1818 = vmatpush1.bf16.msra.mxu0 %v1422
    %1819 = vmatprep.subr.bf16.mxu0 %v1418
    %1820 = vmatpush1.bf16.msra.mxu0 %v1417
    %1821 = vmatprep.subr.bf16.mxu0 %v1413
    %1822 = vmatpush1.bf16.msra.mxu0 %v1412
    %1823 = vmatprep.subr.bf16.mxu0 %v1408
    %1824 = vmatpush1.bf16.msra.mxu0 %v1407
    %1825 = vmatprep.subr.bf16.mxu0 %v1403
    %1826 = vmatpush1.bf16.msra.mxu0 %v1402
    %1827 = vmatprep.subr.bf16.mxu0 %v1398
    %1828 = vmatpush1.bf16.msra.mxu0 %v1397
    %1829 = vmatprep.subr.bf16.mxu0 %v1473
    %1830 = vmatpush2.bf16.msra.mxu0 %v1472
    %1831 = vmatprep.subr.bf16.mxu0 %v1468
    %1832 = vmatpush2.bf16.msra.mxu0 %v1467
    %1833 = vmatprep.subr.bf16.mxu0 %v1463
    %1834 = vmatpush2.bf16.msra.mxu0 %v1462
    %1835 = vmatprep.subr.bf16.mxu0 %v1458
    %1836 = vmatpush2.bf16.msra.mxu0 %v1457
    %1837 = vmatprep.subr.bf16.mxu0 %v1453
    %1838 = vmatpush2.bf16.msra.mxu0 %v1452
    %1839 = vmatprep.subr.bf16.mxu0 %v1448
    %1840 = vmatpush2.bf16.msra.mxu0 %v1447
    %1841 = vmatprep.subr.bf16.mxu0 %v1443
    %1842 = vmatpush2.bf16.msra.mxu0 %v1442
    %1843 = vmatprep.subr.bf16.mxu0 %v1438
    %1844 = vmatpush2.bf16.msra.mxu0 %v1437
    %1845 = vmatprep.mubr.bf16.mxu0 %v130
    %1846 = vmatmul.mubr.bf16.gmra.mxu0 %v129
    %v1847 = vpop.f32.mrf.mxu0
    %v1848 = vadd.f32 %v1807, %v1847
    %v1849 = vpop.f32.mrf.mxu0
    %v1850 = vadd.f32 %v1809, %v1849
    %v1851 = vpop.f32.mrf.mxu0
    %v1852 = vpop.f32.mrf.mxu0
    %1853 = vdwg.mxu0
    %1854 = vmatprep.subr.bf16.mxu0 0
    %1855 = vmatpush1.bf16.msra.mxu0 0
    %1856 = vmatprep.subr.bf16.mxu0 0
    %1857 = vmatpush1.bf16.msra.mxu0 0
    %1858 = vmatprep.subr.bf16.mxu0 0
    %1859 = vmatpush1.bf16.msra.mxu0 0
    %1860 = vmatprep.subr.bf16.mxu0 0
    %1861 = vmatpush1.bf16.msra.mxu0 0
    %1862 = vmatprep.subr.bf16.mxu0 0
    %1863 = vmatpush1.bf16.msra.mxu0 0
    %1864 = vmatprep.subr.bf16.mxu0 0
    %1865 = vmatpush1.bf16.msra.mxu0 0
    %1866 = vmatprep.subr.bf16.mxu0 0
    %1867 = vmatpush1.bf16.msra.mxu0 0
    %1868 = vmatprep.subr.bf16.mxu0 %v1478
    %1869 = vmatpush1.bf16.msra.mxu0 %v1477
    %1870 = vmatprep.subr.bf16.mxu0 0
    %1871 = vmatpush2.bf16.msra.mxu0 0
    %1872 = vmatprep.subr.bf16.mxu0 0
    %1873 = vmatpush2.bf16.msra.mxu0 0
    %1874 = vmatprep.subr.bf16.mxu0 0
    %1875 = vmatpush2.bf16.msra.mxu0 0
    %1876 = vmatprep.subr.bf16.mxu0 0
    %1877 = vmatpush2.bf16.msra.mxu0 0
    %1878 = vmatprep.subr.bf16.mxu0 0
    %1879 = vmatpush2.bf16.msra.mxu0 0
    %1880 = vmatprep.subr.bf16.mxu0 0
    %1881 = vmatpush2.bf16.msra.mxu0 0
    %1882 = vmatprep.subr.bf16.mxu0 0
    %1883 = vmatpush2.bf16.msra.mxu0 0
    %1884 = vmatprep.subr.bf16.mxu0 0
    %1885 = vmatpush2.bf16.msra.mxu0 0
    %1886 = vmatprep.mubr.bf16.mxu0 0
    %1887 = vmatmul.mubr.bf16.gmra.mxu0 %v1729
    %v1888 = vpop.f32.mrf.mxu0
    %v1889 = vadd.f32 %v1848, %v1888
    %v1890 = vpop.f32.mrf.mxu0
    %v1891 = vadd.f32 %v1850, %v1890
    %v1892 = vpop.f32.mrf.mxu0
    %v1893 = vpop.f32.mrf.mxu0
    %1894 = vdwg.mxu0
    %1895 = vmatprep.subr.bf16.mxu0 %v1275
    %1896 = vmatpush1.bf16.msra.mxu0 %v1274
    %1897 = vmatprep.subr.bf16.mxu0 %v1270
    %1898 = vmatpush1.bf16.msra.mxu0 %v1269
    %1899 = vmatprep.subr.bf16.mxu0 %v1265
    %1900 = vmatpush1.bf16.msra.mxu0 %v1264
    %1901 = vmatprep.subr.bf16.mxu0 %v1260
    %1902 = vmatpush1.bf16.msra.mxu0 %v1259
    %1903 = vmatprep.subr.bf16.mxu0 %v1255
    %1904 = vmatpush1.bf16.msra.mxu0 %v1254
    %1905 = vmatprep.subr.bf16.mxu0 %v1250
    %1906 = vmatpush1.bf16.msra.mxu0 %v1249
    %1907 = vmatprep.subr.bf16.mxu0 %v1245
    %1908 = vmatpush1.bf16.msra.mxu0 %v1244
    %1909 = vmatprep.subr.bf16.mxu0 %v1240
    %1910 = vmatpush1.bf16.msra.mxu0 %v1239
    %1911 = vmatprep.subr.bf16.mxu0 %v1315
    %1912 = vmatpush2.bf16.msra.mxu0 %v1314
    %1913 = vmatprep.subr.bf16.mxu0 %v1310
    %1914 = vmatpush2.bf16.msra.mxu0 %v1309
    %1915 = vmatprep.subr.bf16.mxu0 %v1305
    %1916 = vmatpush2.bf16.msra.mxu0 %v1304
    %1917 = vmatprep.subr.bf16.mxu0 %v1300
    %1918 = vmatpush2.bf16.msra.mxu0 %v1299
    %1919 = vmatprep.subr.bf16.mxu0 %v1295
    %1920 = vmatpush2.bf16.msra.mxu0 %v1294
    %1921 = vmatprep.subr.bf16.mxu0 %v1290
    %1922 = vmatpush2.bf16.msra.mxu0 %v1289
    %1923 = vmatprep.subr.bf16.mxu0 %v1285
    %1924 = vmatpush2.bf16.msra.mxu0 %v1284
    %1925 = vmatprep.subr.bf16.mxu0 %v1280
    %1926 = vmatpush2.bf16.msra.mxu0 %v1279
    %1927 = vmatprep.mubr.bf16.mxu0 %v126
    %1928 = vmatmul.mubr.bf16.gmra.mxu0 %v125
    %v1929 = vpop.f32.mrf.mxu0
    %v1930 = vadd.f32 %v439, %v1929
    %v1931 = vpop.f32.mrf.mxu0
    %v1932 = vadd.f32 %v443, %v1931
    %v1933 = vpop.f32.mrf.mxu0
    %v1934 = vpop.f32.mrf.mxu0
    %1935 = vdwg.mxu0
    %1936 = vmatprep.subr.bf16.mxu0 %v1355
    %1937 = vmatpush1.bf16.msra.mxu0 %v1354
    %1938 = vmatprep.subr.bf16.mxu0 %v1350
    %1939 = vmatpush1.bf16.msra.mxu0 %v1349
    %1940 = vmatprep.subr.bf16.mxu0 %v1345
    %1941 = vmatpush1.bf16.msra.mxu0 %v1344
    %1942 = vmatprep.subr.bf16.mxu0 %v1340
    %1943 = vmatpush1.bf16.msra.mxu0 %v1339
    %1944 = vmatprep.subr.bf16.mxu0 %v1335
    %1945 = vmatpush1.bf16.msra.mxu0 %v1334
    %1946 = vmatprep.subr.bf16.mxu0 %v1330
    %1947 = vmatpush1.bf16.msra.mxu0 %v1329
    %1948 = vmatprep.subr.bf16.mxu0 %v1325
    %1949 = vmatpush1.bf16.msra.mxu0 %v1324
    %1950 = vmatprep.subr.bf16.mxu0 %v1320
    %1951 = vmatpush1.bf16.msra.mxu0 %v1319
    %1952 = vmatprep.subr.bf16.mxu0 %v1395
    %1953 = vmatpush2.bf16.msra.mxu0 %v1394
    %1954 = vmatprep.subr.bf16.mxu0 %v1390
    %1955 = vmatpush2.bf16.msra.mxu0 %v1389
    %1956 = vmatprep.subr.bf16.mxu0 %v1385
    %1957 = vmatpush2.bf16.msra.mxu0 %v1384
    %1958 = vmatprep.subr.bf16.mxu0 %v1380
    %1959 = vmatpush2.bf16.msra.mxu0 %v1379
    %1960 = vmatprep.subr.bf16.mxu0 %v1375
    %1961 = vmatpush2.bf16.msra.mxu0 %v1374
    %1962 = vmatprep.subr.bf16.mxu0 %v1370
    %1963 = vmatpush2.bf16.msra.mxu0 %v1369
    %1964 = vmatprep.subr.bf16.mxu0 %v1365
    %1965 = vmatpush2.bf16.msra.mxu0 %v1364
    %1966 = vmatprep.subr.bf16.mxu0 %v1360
    %1967 = vmatpush2.bf16.msra.mxu0 %v1359
    %1968 = vmatprep.mubr.bf16.mxu0 %v128
    %1969 = vmatmul.mubr.bf16.gmra.mxu0 %v127
    %v1970 = vpop.f32.mrf.mxu0
    %v1971 = vadd.f32 %v1930, %v1970
    %v1972 = vpop.f32.mrf.mxu0
    %v1973 = vadd.f32 %v1932, %v1972
    %v1974 = vpop.f32.mrf.mxu0
    %v1975 = vpop.f32.mrf.mxu0
    %1976 = vdwg.mxu0
    %1977 = vmatprep.subr.bf16.mxu0 %v1435
    %1978 = vmatpush1.bf16.msra.mxu0 %v1434
    %1979 = vmatprep.subr.bf16.mxu0 %v1430
    %1980 = vmatpush1.bf16.msra.mxu0 %v1429
    %1981 = vmatprep.subr.bf16.mxu0 %v1425
    %1982 = vmatpush1.bf16.msra.mxu0 %v1424
    %1983 = vmatprep.subr.bf16.mxu0 %v1420
    %1984 = vmatpush1.bf16.msra.mxu0 %v1419
    %1985 = vmatprep.subr.bf16.mxu0 %v1415
    %1986 = vmatpush1.bf16.msra.mxu0 %v1414
    %1987 = vmatprep.subr.bf16.mxu0 %v1410
    %1988 = vmatpush1.bf16.msra.mxu0 %v1409
    %1989 = vmatprep.subr.bf16.mxu0 %v1405
    %1990 = vmatpush1.bf16.msra.mxu0 %v1404
    %1991 = vmatprep.subr.bf16.mxu0 %v1400
    %1992 = vmatpush1.bf16.msra.mxu0 %v1399
    %1993 = vmatprep.subr.bf16.mxu0 %v1475
    %1994 = vmatpush2.bf16.msra.mxu0 %v1474
    %1995 = vmatprep.subr.bf16.mxu0 %v1470
    %1996 = vmatpush2.bf16.msra.mxu0 %v1469
    %1997 = vmatprep.subr.bf16.mxu0 %v1465
    %1998 = vmatpush2.bf16.msra.mxu0 %v1464
    %1999 = vmatprep.subr.bf16.mxu0 %v1460
    %2000 = vmatpush2.bf16.msra.mxu0 %v1459
    %2001 = vmatprep.subr.bf16.mxu0 %v1455
    %2002 = vmatpush2.bf16.msra.mxu0 %v1454
    %2003 = vmatprep.subr.bf16.mxu0 %v1450
    %2004 = vmatpush2.bf16.msra.mxu0 %v1449
    %2005 = vmatprep.subr.bf16.mxu0 %v1445
    %2006 = vmatpush2.bf16.msra.mxu0 %v1444
    %2007 = vmatprep.subr.bf16.mxu0 %v1440
    %2008 = vmatpush2.bf16.msra.mxu0 %v1439
    %2009 = vmatprep.mubr.bf16.mxu0 %v130
    %2010 = vmatmul.mubr.bf16.gmra.mxu0 %v129
    %v2011 = vpop.f32.mrf.mxu0
    %v2012 = vadd.f32 %v1971, %v2011
    %v2013 = vpop.f32.mrf.mxu0
    %v2014 = vadd.f32 %v1973, %v2013
    %v2015 = vpop.f32.mrf.mxu0
    %v2016 = vpop.f32.mrf.mxu0
    %2017 = vdwg.mxu0
    %2018 = vmatprep.subr.bf16.mxu0 0
    %2019 = vmatpush1.bf16.msra.mxu0 0
    %2020 = vmatprep.subr.bf16.mxu0 0
    %2021 = vmatpush1.bf16.msra.mxu0 0
    %2022 = vmatprep.subr.bf16.mxu0 0
    %2023 = vmatpush1.bf16.msra.mxu0 0
    %2024 = vmatprep.subr.bf16.mxu0 0
    %2025 = vmatpush1.bf16.msra.mxu0 0
    %2026 = vmatprep.subr.bf16.mxu0 0
    %2027 = vmatpush1.bf16.msra.mxu0 0
    %2028 = vmatprep.subr.bf16.mxu0 0
    %2029 = vmatpush1.bf16.msra.mxu0 0
    %2030 = vmatprep.subr.bf16.mxu0 0
    %2031 = vmatpush1.bf16.msra.mxu0 0
    %2032 = vmatprep.subr.bf16.mxu0 %v1480
    %2033 = vmatpush1.bf16.msra.mxu0 %v1479
    %2034 = vmatprep.subr.bf16.mxu0 0
    %2035 = vmatpush2.bf16.msra.mxu0 0
    %2036 = vmatprep.subr.bf16.mxu0 0
    %2037 = vmatpush2.bf16.msra.mxu0 0
    %2038 = vmatprep.subr.bf16.mxu0 0
    %2039 = vmatpush2.bf16.msra.mxu0 0
    %2040 = vmatprep.subr.bf16.mxu0 0
    %2041 = vmatpush2.bf16.msra.mxu0 0
    %2042 = vmatprep.subr.bf16.mxu0 0
    %2043 = vmatpush2.bf16.msra.mxu0 0
    %2044 = vmatprep.subr.bf16.mxu0 0
    %2045 = vmatpush2.bf16.msra.mxu0 0
    %2046 = vmatprep.subr.bf16.mxu0 0
    %2047 = vmatpush2.bf16.msra.mxu0 0
    %2048 = vmatprep.subr.bf16.mxu0 0
    %2049 = vmatpush2.bf16.msra.mxu0 0
    %2050 = vmatprep.mubr.bf16.mxu0 0
    %2051 = vmatmul.mubr.bf16.gmra.mxu0 %v1729
    %v2052 = vpop.f32.mrf.mxu0
    %v2053 = vadd.f32 %v2012, %v2052
    %v2054 = vpop.f32.mrf.mxu0
    %v2055 = vadd.f32 %v2014, %v2054
    %v2056 = vpop.f32.mrf.mxu0
    %v2057 = vpop.f32.mrf.mxu0
    %2058 = vdwg.mxu0
    %2059 = vmatprep.subr.bf16.mxu0 0
    %2060 = vmatpush1.bf16.msra.mxu0 %v1276
    %2061 = vmatprep.subr.bf16.mxu0 0
    %2062 = vmatpush1.bf16.msra.mxu0 %v1271
    %2063 = vmatprep.subr.bf16.mxu0 0
    %2064 = vmatpush1.bf16.msra.mxu0 %v1266
    %2065 = vmatprep.subr.bf16.mxu0 0
    %2066 = vmatpush1.bf16.msra.mxu0 %v1261
    %2067 = vmatprep.subr.bf16.mxu0 0
    %2068 = vmatpush1.bf16.msra.mxu0 %v1256
    %2069 = vmatprep.subr.bf16.mxu0 0
    %2070 = vmatpush1.bf16.msra.mxu0 %v1251
    %2071 = vmatprep.subr.bf16.mxu0 0
    %2072 = vmatpush1.bf16.msra.mxu0 %v1246
    %2073 = vmatprep.subr.bf16.mxu0 0
    %2074 = vmatpush1.bf16.msra.mxu0 %v1241
    %2075 = vmatprep.subr.bf16.mxu0 0
    %2076 = vmatpush2.bf16.msra.mxu0 %v1316
    %2077 = vmatprep.subr.bf16.mxu0 0
    %2078 = vmatpush2.bf16.msra.mxu0 %v1311
    %2079 = vmatprep.subr.bf16.mxu0 0
    %2080 = vmatpush2.bf16.msra.mxu0 %v1306
    %2081 = vmatprep.subr.bf16.mxu0 0
    %2082 = vmatpush2.bf16.msra.mxu0 %v1301
    %2083 = vmatprep.subr.bf16.mxu0 0
    %2084 = vmatpush2.bf16.msra.mxu0 %v1296
    %2085 = vmatprep.subr.bf16.mxu0 0
    %2086 = vmatpush2.bf16.msra.mxu0 %v1291
    %2087 = vmatprep.subr.bf16.mxu0 0
    %2088 = vmatpush2.bf16.msra.mxu0 %v1286
    %2089 = vmatprep.subr.bf16.mxu0 0
    %2090 = vmatpush2.bf16.msra.mxu0 %v1281
    %2091 = vmatprep.mubr.bf16.mxu0 %v126
    %2092 = vmatmul.mubr.bf16.gmra.mxu0 %v125
    %v2093 = vpop.f32.mrf.mxu0
    %v2094 = vadd.f32 %v447, %v2093
    %v2095 = vpop.f32.mrf.mxu0
    %v2096 = vpop.f32.mrf.mxu0
    %v2097 = vpop.f32.mrf.mxu0
    %2098 = vdwg.mxu0
    %2099 = vmatprep.subr.bf16.mxu0 0
    %2100 = vmatpush1.bf16.msra.mxu0 %v1356
    %2101 = vmatprep.subr.bf16.mxu0 0
    %2102 = vmatpush1.bf16.msra.mxu0 %v1351
    %2103 = vmatprep.subr.bf16.mxu0 0
    %2104 = vmatpush1.bf16.msra.mxu0 %v1346
    %2105 = vmatprep.subr.bf16.mxu0 0
    %2106 = vmatpush1.bf16.msra.mxu0 %v1341
    %2107 = vmatprep.subr.bf16.mxu0 0
    %2108 = vmatpush1.bf16.msra.mxu0 %v1336
    %2109 = vmatprep.subr.bf16.mxu0 0
    %2110 = vmatpush1.bf16.msra.mxu0 %v1331
    %2111 = vmatprep.subr.bf16.mxu0 0
    %2112 = vmatpush1.bf16.msra.mxu0 %v1326
    %2113 = vmatprep.subr.bf16.mxu0 0
    %2114 = vmatpush1.bf16.msra.mxu0 %v1321
    %2115 = vmatprep.subr.bf16.mxu0 0
    %2116 = vmatpush2.bf16.msra.mxu0 %v1396
    %2117 = vmatprep.subr.bf16.mxu0 0
    %2118 = vmatpush2.bf16.msra.mxu0 %v1391
    %2119 = vmatprep.subr.bf16.mxu0 0
    %2120 = vmatpush2.bf16.msra.mxu0 %v1386
    %2121 = vmatprep.subr.bf16.mxu0 0
    %2122 = vmatpush2.bf16.msra.mxu0 %v1381
    %2123 = vmatprep.subr.bf16.mxu0 0
    %2124 = vmatpush2.bf16.msra.mxu0 %v1376
    %2125 = vmatprep.subr.bf16.mxu0 0
    %2126 = vmatpush2.bf16.msra.mxu0 %v1371
    %2127 = vmatprep.subr.bf16.mxu0 0
    %2128 = vmatpush2.bf16.msra.mxu0 %v1366
    %2129 = vmatprep.subr.bf16.mxu0 0
    %2130 = vmatpush2.bf16.msra.mxu0 %v1361
    %2131 = vmatprep.mubr.bf16.mxu0 %v128
    %2132 = vmatmul.mubr.bf16.gmra.mxu0 %v127
    %v2133 = vpop.f32.mrf.mxu0
    %v2134 = vadd.f32 %v2094, %v2133
    %v2135 = vpop.f32.mrf.mxu0
    %v2136 = vpop.f32.mrf.mxu0
    %v2137 = vpop.f32.mrf.mxu0
    %2138 = vdwg.mxu0
    %2139 = vmatprep.subr.bf16.mxu0 0
    %2140 = vmatpush1.bf16.msra.mxu0 %v1436
    %2141 = vmatprep.subr.bf16.mxu0 0
    %2142 = vmatpush1.bf16.msra.mxu0 %v1431
    %2143 = vmatprep.subr.bf16.mxu0 0
    %2144 = vmatpush1.bf16.msra.mxu0 %v1426
    %2145 = vmatprep.subr.bf16.mxu0 0
    %2146 = vmatpush1.bf16.msra.mxu0 %v1421
    %2147 = vmatprep.subr.bf16.mxu0 0
    %2148 = vmatpush1.bf16.msra.mxu0 %v1416
    %2149 = vmatprep.subr.bf16.mxu0 0
    %2150 = vmatpush1.bf16.msra.mxu0 %v1411
    %2151 = vmatprep.subr.bf16.mxu0 0
    %2152 = vmatpush1.bf16.msra.mxu0 %v1406
    %2153 = vmatprep.subr.bf16.mxu0 0
    %2154 = vmatpush1.bf16.msra.mxu0 %v1401
    %2155 = vmatprep.subr.bf16.mxu0 0
    %2156 = vmatpush2.bf16.msra.mxu0 %v1476
    %2157 = vmatprep.subr.bf16.mxu0 0
    %2158 = vmatpush2.bf16.msra.mxu0 %v1471
    %2159 = vmatprep.subr.bf16.mxu0 0
    %2160 = vmatpush2.bf16.msra.mxu0 %v1466
    %2161 = vmatprep.subr.bf16.mxu0 0
    %2162 = vmatpush2.bf16.msra.mxu0 %v1461
    %2163 = vmatprep.subr.bf16.mxu0 0
    %2164 = vmatpush2.bf16.msra.mxu0 %v1456
    %2165 = vmatprep.subr.bf16.mxu0 0
    %2166 = vmatpush2.bf16.msra.mxu0 %v1451
    %2167 = vmatprep.subr.bf16.mxu0 0
    %2168 = vmatpush2.bf16.msra.mxu0 %v1446
    %2169 = vmatprep.subr.bf16.mxu0 0
    %2170 = vmatpush2.bf16.msra.mxu0 %v1441
    %2171 = vmatprep.mubr.bf16.mxu0 %v130
    %2172 = vmatmul.mubr.bf16.gmra.mxu0 %v129
    %v2173 = vpop.f32.mrf.mxu0
    %v2174 = vadd.f32 %v2134, %v2173
    %v2175 = vpop.f32.mrf.mxu0
    %v2176 = vpop.f32.mrf.mxu0
    %v2177 = vpop.f32.mrf.mxu0
    %2178 = vdwg.mxu0
    %2179 = vmatprep.subr.bf16.mxu0 0
    %2180 = vmatpush1.bf16.msra.mxu0 0
    %2181 = vmatprep.subr.bf16.mxu0 0
    %2182 = vmatpush1.bf16.msra.mxu0 0
    %2183 = vmatprep.subr.bf16.mxu0 0
    %2184 = vmatpush1.bf16.msra.mxu0 0
    %2185 = vmatprep.subr.bf16.mxu0 0
    %2186 = vmatpush1.bf16.msra.mxu0 0
    %2187 = vmatprep.subr.bf16.mxu0 0
    %2188 = vmatpush1.bf16.msra.mxu0 0
    %2189 = vmatprep.subr.bf16.mxu0 0
    %2190 = vmatpush1.bf16.msra.mxu0 0
    %2191 = vmatprep.subr.bf16.mxu0 0
    %2192 = vmatpush1.bf16.msra.mxu0 0
    %2193 = vmatprep.subr.bf16.mxu0 0
    %2194 = vmatpush1.bf16.msra.mxu0 %v1481
    %2195 = vmatprep.subr.bf16.mxu0 0
    %2196 = vmatpush2.bf16.msra.mxu0 0
    %2197 = vmatprep.subr.bf16.mxu0 0
    %2198 = vmatpush2.bf16.msra.mxu0 0
    %2199 = vmatprep.subr.bf16.mxu0 0
    %2200 = vmatpush2.bf16.msra.mxu0 0
    %2201 = vmatprep.subr.bf16.mxu0 0
    %2202 = vmatpush2.bf16.msra.mxu0 0
    %2203 = vmatprep.subr.bf16.mxu0 0
    %2204 = vmatpush2.bf16.msra.mxu0 0
    %2205 = vmatprep.subr.bf16.mxu0 0
    %2206 = vmatpush2.bf16.msra.mxu0 0
    %2207 = vmatprep.subr.bf16.mxu0 0
    %2208 = vmatpush2.bf16.msra.mxu0 0
    %2209 = vmatprep.subr.bf16.mxu0 0
    %2210 = vmatpush2.bf16.msra.mxu0 0
    %2211 = vmatprep.mubr.bf16.mxu0 0
    %2212 = vmatmul.mubr.bf16.gmra.mxu0 %v1729
    %v2213 = vpop.f32.mrf.mxu0
    %v2214 = vadd.f32 %v2174, %v2213
    %v2215 = vpop.f32.mrf.mxu0
    %v2216 = vpop.f32.mrf.mxu0
    %v2217 = vpop.f32.mrf.mxu0
    %2218 = vdwg.mxu0
    %v2219 = vmax.f32 %v1889, 0.0
    %v2220 = vmax.f32 %v1891, 0.0
    %v2221 = vmax.f32 %v2053, 0.0
    %v2222 = vmax.f32 %v2055, 0.0
    %v2223 = vmax.f32 %v2214, 0.0
    %v2224 = vpack.c.bf16 %v2219, %v2219
    %v2225 = vpack.c.bf16 %v2220, %v2220
    %v2226 = vpack.c.bf16 %v2221, %v2221
    %v2227 = vpack.c.bf16 %v2222, %v2222
    %v2228 = vpack.c.bf16 %v2223, %v2223
    %v2229 = vld [vmem:[#allocation8] sm:$0xff]
    %v2230 = vld [vmem:[#allocation8 + $0x8] sm:$0xff]
    %v2231 = vld [vmem:[#allocation8 + $0x10] sm:$0xff]
    %v2232 = vld [vmem:[#allocation8 + $0x18] sm:$0xff]
    %v2233 = vld [vmem:[#allocation8 + $0x20] sm:$0xff]
    %v2234 = vld [vmem:[#allocation8 + $0x28] sm:$0xff]
    %v2235 = vld [vmem:[#allocation8 + $0x30] sm:$0xff]
    %v2236 = vld [vmem:[#allocation8 + $0x38] sm:$0xff]
    %v2237 = vld [vmem:[#allocation8 + $0x40] sm:$0xff]
    %v2238 = vld [vmem:[#allocation8 + $0x48] sm:$0xff]
    %v2239 = vld [vmem:[#allocation8 + $0x50] sm:$0xff]
    %v2240 = vld [vmem:[#allocation8 + $0x58] sm:$0xff]
    %v2241 = vld [vmem:[#allocation8 + $0x60] sm:$0xff]
    %v2242 = vld [vmem:[#allocation8 + $0x68] sm:$0xff]
    %v2243 = vld [vmem:[#allocation8 + $0x70] sm:$0xff]
    %v2244 = vld [vmem:[#allocation8 + $0x78] sm:$0xff]
    %v2245 = vld [vmem:[#allocation8 + $0x80] sm:$0xff]
    %v2246 = vld [vmem:[#allocation8 + $0x88] sm:$0xff]
    %v2247 = vld [vmem:[#allocation8 + $0x90] sm:$0xff]
    %v2248 = vld [vmem:[#allocation8 + $0x98] sm:$0xff]
    %v2249 = vld [vmem:[#allocation8 + $0xa0] sm:$0xff]
    %v2250 = vld [vmem:[#allocation8 + $0xa8] sm:$0xff]
    %v2251 = vld [vmem:[#allocation8 + $0xb0] sm:$0xff]
    %v2252 = vld [vmem:[#allocation8 + $0xb8] sm:$0xff]
    %v2253 = vld [vmem:[#allocation8 + $0xc0] sm:$0xff]
    %v2254 = vld [vmem:[#allocation8 + $0xc8] sm:$0xff]
    %v2255 = vld [vmem:[#allocation8 + $0xd0] sm:$0xff]
    %v2256 = vld [vmem:[#allocation8 + $0xd8] sm:$0xff]
    %v2257 = vld [vmem:[#allocation8 + $0xe0] sm:$0xff]
    %v2258 = vld [vmem:[#allocation8 + $0xe8] sm:$0xff]
    %v2259 = vld [vmem:[#allocation8 + $0xf0] sm:$0xff]
    %v2260 = vld [vmem:[#allocation8 + $0xf8] sm:$0xff]
    %v2261 = vld [vmem:[#allocation8 + $0x100] sm:$0xff]
    %v2262 = vld [vmem:[#allocation8 + $0x108] sm:$0xff]
    %v2263 = vld [vmem:[#allocation8 + $0x110] sm:$0xff]
    %v2264 = vld [vmem:[#allocation8 + $0x118] sm:$0xff]
    %v2265 = vld [vmem:[#allocation8 + $0x120] sm:$0xff]
    %v2266 = vld [vmem:[#allocation8 + $0x128] sm:$0xff]
    %v2267 = vld [vmem:[#allocation8 + $0x130] sm:$0xff]
    %v2268 = vld [vmem:[#allocation8 + $0x138] sm:$0xff]
    %v2269 = vld [vmem:[#allocation8 + $0x140] sm:$0xff]
    %v2270 = vld [vmem:[#allocation8 + $0x148] sm:$0xff]
    %v2271 = vld [vmem:[#allocation8 + $0x150] sm:$0xff]
    %v2272 = vld [vmem:[#allocation8 + $0x158] sm:$0xff]
    %v2273 = vld [vmem:[#allocation8 + $0x160] sm:$0xff]
    %v2274 = vld [vmem:[#allocation8 + $0x168] sm:$0xff]
    %v2275 = vld [vmem:[#allocation8 + $0x170] sm:$0xff]
    %v2276 = vld [vmem:[#allocation8 + $0x178] sm:$0xff]
    %v2277 = vld [vmem:[#allocation8 + $0x180] sm:$0xff]
    %v2278 = vld [vmem:[#allocation8 + $0x188] sm:$0xff]
    %v2279 = vld [vmem:[#allocation8 + $0x190] sm:$0xff]
    %v2280 = vld [vmem:[#allocation8 + $0x198] sm:$0xff]
    %v2281 = vld [vmem:[#allocation8 + $0x1a0] sm:$0xff]
    %v2282 = vld [vmem:[#allocation8 + $0x1a8] sm:$0xff]
    %v2283 = vld [vmem:[#allocation8 + $0x1b0] sm:$0xff]
    %v2284 = vld [vmem:[#allocation8 + $0x1b8] sm:$0xff]
    %v2285 = vld [vmem:[#allocation8 + $0x1c0] sm:$0xff]
    %v2286 = vld [vmem:[#allocation8 + $0x1c8] sm:$0xff]
    %v2287 = vld [vmem:[#allocation8 + $0x1d0] sm:$0xff]
    %v2288 = vld [vmem:[#allocation8 + $0x1d8] sm:$0xff]
    %v2289 = vld [vmem:[#allocation8 + $0x1e0] sm:$0xff]
    %v2290 = vld [vmem:[#allocation8 + $0x1e8] sm:$0xff]
    %v2291 = vld [vmem:[#allocation8 + $0x1f0] sm:$0xff]
    %v2292 = vld [vmem:[#allocation8 + $0x1f8] sm:$0xff]
    %v2293 = vld [vmem:[#allocation8 + $0x200] sm:$0xff]
    %v2294 = vld [vmem:[#allocation8 + $0x208] sm:$0xff]
    %v2295 = vld [vmem:[#allocation8 + $0x210] sm:$0xff]
    %v2296 = vld [vmem:[#allocation8 + $0x218] sm:$0xff]
    %v2297 = vld [vmem:[#allocation8 + $0x220] sm:$0xff]
    %v2298 = vld [vmem:[#allocation8 + $0x228] sm:$0xff]
    %v2299 = vld [vmem:[#allocation8 + $0x230] sm:$0xff]
    %v2300 = vld [vmem:[#allocation8 + $0x238] sm:$0xff]
    %v2301 = vld [vmem:[#allocation8 + $0x240] sm:$0xff]
    %v2302 = vld [vmem:[#allocation8 + $0x248] sm:$0xff]
    %v2303 = vld [vmem:[#allocation8 + $0x250] sm:$0xff]
    %v2304 = vld [vmem:[#allocation8 + $0x258] sm:$0xff]
    %v2305 = vld [vmem:[#allocation8 + $0x260] sm:$0xff]
    %v2306 = vld [vmem:[#allocation8 + $0x268] sm:$0xff]
    %v2307 = vld [vmem:[#allocation8 + $0x270] sm:$0xff]
    %v2308 = vld [vmem:[#allocation8 + $0x278] sm:$0xff]
    %v2309 = vld [vmem:[#allocation8 + $0x280] sm:$0xff]
    %v2310 = vld [vmem:[#allocation8 + $0x288] sm:$0xff]
    %v2311 = vld [vmem:[#allocation8 + $0x290] sm:$0xff]
    %v2312 = vld [vmem:[#allocation8 + $0x298] sm:$0xff]
    %v2313 = vld [vmem:[#allocation8 + $0x2a0] sm:$0xff]
    %v2314 = vld [vmem:[#allocation8 + $0x2a8] sm:$0xff]
    %v2315 = vld [vmem:[#allocation8 + $0x2b0] sm:$0xff]
    %v2316 = vld [vmem:[#allocation8 + $0x2b8] sm:$0xff]
    %v2317 = vld [vmem:[#allocation8 + $0x2c0] sm:$0xff]
    %v2318 = vld [vmem:[#allocation8 + $0x2c8] sm:$0xff]
    %v2319 = vld [vmem:[#allocation8 + $0x2d0] sm:$0xff]
    %v2320 = vld [vmem:[#allocation8 + $0x2d8] sm:$0xff]
    %v2321 = vld [vmem:[#allocation8 + $0x2e0] sm:$0xff]
    %v2322 = vld [vmem:[#allocation8 + $0x2e8] sm:$0xff]
    %v2323 = vld [vmem:[#allocation8 + $0x2f0] sm:$0xff]
    %v2324 = vld [vmem:[#allocation8 + $0x2f8] sm:$0xff]
    %v2325 = vld [vmem:[#allocation8 + $0x300] sm:$0xff]
    %v2326 = vld [vmem:[#allocation8 + $0x308] sm:$0xff]
    %v2327 = vld [vmem:[#allocation8 + $0x310] sm:$0xff]
    %v2328 = vld [vmem:[#allocation8 + $0x318] sm:$0xff]
    %v2329 = vld [vmem:[#allocation8 + $0x320] sm:$0xff]
    %v2330 = vld [vmem:[#allocation8 + $0x328] sm:$0xff]
    %v2331 = vld [vmem:[#allocation8 + $0x330] sm:$0xff]
    %v2332 = vld [vmem:[#allocation8 + $0x338] sm:$0xff]
    %v2333 = vld [vmem:[#allocation8 + $0x340] sm:$0xff]
    %v2334 = vld [vmem:[#allocation8 + $0x348] sm:$0xff]
    %v2335 = vld [vmem:[#allocation8 + $0x350] sm:$0xff]
    %v2336 = vld [vmem:[#allocation8 + $0x358] sm:$0xff]
    %v2337 = vld [vmem:[#allocation8 + $0x360] sm:$0xff]
    %v2338 = vld [vmem:[#allocation8 + $0x368] sm:$0xff]
    %v2339 = vld [vmem:[#allocation8 + $0x370] sm:$0xff]
    %v2340 = vld [vmem:[#allocation8 + $0x378] sm:$0xff]
    %v2341 = vld [vmem:[#allocation8 + $0x380] sm:$0xff]
    %v2342 = vld [vmem:[#allocation8 + $0x388] sm:$0xff]
    %v2343 = vld [vmem:[#allocation8 + $0x390] sm:$0xff]
    %v2344 = vld [vmem:[#allocation8 + $0x398] sm:$0xff]
    %v2345 = vld [vmem:[#allocation8 + $0x3a0] sm:$0xff]
    %v2346 = vld [vmem:[#allocation8 + $0x3a8] sm:$0xff]
    %v2347 = vld [vmem:[#allocation8 + $0x3b0] sm:$0xff]
    %v2348 = vld [vmem:[#allocation8 + $0x3b8] sm:$0xff]
    %v2349 = vld [vmem:[#allocation8 + $0x3c0] sm:$0xff]
    %v2350 = vld [vmem:[#allocation8 + $0x3c8] sm:$0xff]
    %v2351 = vld [vmem:[#allocation8 + $0x3d0] sm:$0xff]
    %v2352 = vld [vmem:[#allocation8 + $0x3d8] sm:$0xff]
    %v2353 = vld [vmem:[#allocation8 + $0x3e0] sm:$0xff]
    %v2354 = vld [vmem:[#allocation8 + $0x3e8] sm:$0xff]
    %v2355 = vld [vmem:[#allocation8 + $0x3f0] sm:$0xff]
    %v2356 = vld [vmem:[#allocation8 + $0x3f8] sm:$0xff]
    %v2357 = vld [vmem:[#allocation8 + $0x400] sm:$0xff]
    %v2358 = vld [vmem:[#allocation8 + $0x408] sm:$0xff]
    %v2359 = vld [vmem:[#allocation8 + $0x410] sm:$0xff]
    %v2360 = vld [vmem:[#allocation8 + $0x418] sm:$0xff]
    %v2361 = vld [vmem:[#allocation8 + $0x420] sm:$0xff]
    %v2362 = vld [vmem:[#allocation8 + $0x428] sm:$0xff]
    %v2363 = vld [vmem:[#allocation8 + $0x430] sm:$0xff]
    %v2364 = vld [vmem:[#allocation8 + $0x438] sm:$0xff]
    %v2365 = vld [vmem:[#allocation8 + $0x440] sm:$0xff]
    %v2366 = vld [vmem:[#allocation8 + $0x448] sm:$0xff]
    %v2367 = vld [vmem:[#allocation8 + $0x450] sm:$0xff]
    %v2368 = vld [vmem:[#allocation8 + $0x458] sm:$0xff]
    %v2369 = vld [vmem:[#allocation8 + $0x460] sm:$0xff]
    %v2370 = vld [vmem:[#allocation8 + $0x468] sm:$0xff]
    %v2371 = vld [vmem:[#allocation8 + $0x470] sm:$0xff]
    %v2372 = vld [vmem:[#allocation8 + $0x478] sm:$0xff]
    %v2373 = vld [vmem:[#allocation8 + $0x480] sm:$0xff]
    %v2374 = vld [vmem:[#allocation8 + $0x488] sm:$0xff]
    %v2375 = vld [vmem:[#allocation8 + $0x490] sm:$0xff]
    %v2376 = vld [vmem:[#allocation8 + $0x498] sm:$0xff]
    %v2377 = vld [vmem:[#allocation8 + $0x4a0] sm:$0xff]
    %v2378 = vld [vmem:[#allocation8 + $0x4a8] sm:$0xff]
    %v2379 = vld [vmem:[#allocation8 + $0x4b0] sm:$0xff]
    %v2380 = vld [vmem:[#allocation8 + $0x4b8] sm:$0xff]
    %v2381 = vld [vmem:[#allocation8 + $0x4c0] sm:$0xff]
    %v2382 = vld [vmem:[#allocation8 + $0x4c8] sm:$0xff]
    %v2383 = vld [vmem:[#allocation8 + $0x4d0] sm:$0xff]
    %v2384 = vld [vmem:[#allocation8 + $0x4d8] sm:$0xff]
    %v2385 = vld [vmem:[#allocation8 + $0x4e0] sm:$0xff]
    %v2386 = vld [vmem:[#allocation8 + $0x4e8] sm:$0xff]
    %v2387 = vld [vmem:[#allocation8 + $0x4f0] sm:$0xff]
    %v2388 = vld [vmem:[#allocation8 + $0x4f8] sm:$0xff]
    %v2389 = vld [vmem:[%s4] sm:$0xf]
    %v2391 = vlaneseq
    %v2392 = vshrl.u32 %v2391, 7
    %v2393 = vsub.s32 0, %v2392
    %v2394 = vrot.slane %v2389, %v2393
    %v2395 = vlaneseq
    %v2396 = vshrl.u32 %v2395, 7
    %v2397 = vsub.s32 1, %v2396
    %v2398 = vrot.slane %v2389, %v2397
    %v2399 = vlaneseq
    %v2400 = vshrl.u32 %v2399, 7
    %v2401 = vsub.s32 2, %v2400
    %v2402 = vrot.slane %v2389, %v2401
    %v2403 = vlaneseq
    %v2404 = vshrl.u32 %v2403, 7
    %v2405 = vsub.s32 3, %v2404
    %v2406 = vrot.slane %v2389, %v2405
    %v2571 = vunpack.c.l.b16 %v2229
    %v2572 = vunpack.c.h.b16 %v2229
    %v2573 = vunpack.c.l.b16 %v2230
    %v2574 = vunpack.c.h.b16 %v2230
    %v2575 = vunpack.c.l.b16 %v2231
    %v2576 = vunpack.c.h.b16 %v2231
    %v2577 = vunpack.c.l.b16 %v2232
    %v2578 = vunpack.c.h.b16 %v2232
    %v2579 = vunpack.c.l.b16 %v2233
    %v2580 = vunpack.c.h.b16 %v2233
    %v2581 = vunpack.c.l.b16 %v2234
    %v2582 = vunpack.c.h.b16 %v2234
    %v2583 = vunpack.c.l.b16 %v2235
    %v2584 = vunpack.c.h.b16 %v2235
    %v2585 = vunpack.c.l.b16 %v2236
    %v2586 = vunpack.c.h.b16 %v2236
    %v2587 = vunpack.c.l.b16 %v2237
    %v2588 = vunpack.c.h.b16 %v2237
    %v2589 = vunpack.c.l.b16 %v2238
    %v2590 = vunpack.c.h.b16 %v2238
    %v2591 = vunpack.c.l.b16 %v2239
    %v2592 = vunpack.c.h.b16 %v2239
    %v2593 = vunpack.c.l.b16 %v2240
    %v2594 = vunpack.c.h.b16 %v2240
    %v2595 = vunpack.c.l.b16 %v2241
    %v2596 = vunpack.c.h.b16 %v2241
    %v2597 = vunpack.c.l.b16 %v2242
    %v2598 = vunpack.c.h.b16 %v2242
    %v2599 = vunpack.c.l.b16 %v2243
    %v2600 = vunpack.c.h.b16 %v2243
    %v2601 = vunpack.c.l.b16 %v2244
    %v2602 = vunpack.c.h.b16 %v2244
    %v2603 = vunpack.c.l.b16 %v2245
    %v2604 = vunpack.c.h.b16 %v2245
    %v2605 = vunpack.c.l.b16 %v2246
    %v2606 = vunpack.c.h.b16 %v2246
    %v2607 = vunpack.c.l.b16 %v2247
    %v2608 = vunpack.c.h.b16 %v2247
    %v2609 = vunpack.c.l.b16 %v2248
    %v2610 = vunpack.c.h.b16 %v2248
    %v2611 = vunpack.c.l.b16 %v2249
    %v2612 = vunpack.c.h.b16 %v2249
    %v2613 = vunpack.c.l.b16 %v2250
    %v2614 = vunpack.c.h.b16 %v2250
    %v2615 = vunpack.c.l.b16 %v2251
    %v2616 = vunpack.c.h.b16 %v2251
    %v2617 = vunpack.c.l.b16 %v2252
    %v2618 = vunpack.c.h.b16 %v2252
    %v2619 = vunpack.c.l.b16 %v2253
    %v2620 = vunpack.c.h.b16 %v2253
    %v2621 = vunpack.c.l.b16 %v2254
    %v2622 = vunpack.c.h.b16 %v2254
    %v2623 = vunpack.c.l.b16 %v2255
    %v2624 = vunpack.c.h.b16 %v2255
    %v2625 = vunpack.c.l.b16 %v2256
    %v2626 = vunpack.c.h.b16 %v2256
    %v2627 = vunpack.c.l.b16 %v2257
    %v2628 = vunpack.c.h.b16 %v2257
    %v2629 = vunpack.c.l.b16 %v2258
    %v2630 = vunpack.c.h.b16 %v2258
    %v2631 = vunpack.c.l.b16 %v2259
    %v2632 = vunpack.c.h.b16 %v2259
    %v2633 = vunpack.c.l.b16 %v2260
    %v2634 = vunpack.c.h.b16 %v2260
    %v2635 = vunpack.c.l.b16 %v2261
    %v2636 = vunpack.c.h.b16 %v2261
    %v2637 = vunpack.c.l.b16 %v2262
    %v2638 = vunpack.c.h.b16 %v2262
    %v2639 = vunpack.c.l.b16 %v2263
    %v2640 = vunpack.c.h.b16 %v2263
    %v2641 = vunpack.c.l.b16 %v2264
    %v2642 = vunpack.c.h.b16 %v2264
    %v2643 = vunpack.c.l.b16 %v2265
    %v2644 = vunpack.c.h.b16 %v2265
    %v2645 = vunpack.c.l.b16 %v2266
    %v2646 = vunpack.c.h.b16 %v2266
    %v2647 = vunpack.c.l.b16 %v2267
    %v2648 = vunpack.c.h.b16 %v2267
    %v2649 = vunpack.c.l.b16 %v2268
    %v2650 = vunpack.c.h.b16 %v2268
    %v2651 = vunpack.c.l.b16 %v2269
    %v2652 = vunpack.c.h.b16 %v2269
    %v2653 = vunpack.c.l.b16 %v2270
    %v2654 = vunpack.c.h.b16 %v2270
    %v2655 = vunpack.c.l.b16 %v2271
    %v2656 = vunpack.c.h.b16 %v2271
    %v2657 = vunpack.c.l.b16 %v2272
    %v2658 = vunpack.c.h.b16 %v2272
    %v2659 = vunpack.c.l.b16 %v2273
    %v2660 = vunpack.c.h.b16 %v2273
    %v2661 = vunpack.c.l.b16 %v2274
    %v2662 = vunpack.c.h.b16 %v2274
    %v2663 = vunpack.c.l.b16 %v2275
    %v2664 = vunpack.c.h.b16 %v2275
    %v2665 = vunpack.c.l.b16 %v2276
    %v2666 = vunpack.c.h.b16 %v2276
    %v2667 = vunpack.c.l.b16 %v2277
    %v2668 = vunpack.c.h.b16 %v2277
    %v2669 = vunpack.c.l.b16 %v2278
    %v2670 = vunpack.c.h.b16 %v2278
    %v2671 = vunpack.c.l.b16 %v2279
    %v2672 = vunpack.c.h.b16 %v2279
    %v2673 = vunpack.c.l.b16 %v2280
    %v2674 = vunpack.c.h.b16 %v2280
    %v2675 = vunpack.c.l.b16 %v2281
    %v2676 = vunpack.c.h.b16 %v2281
    %v2677 = vunpack.c.l.b16 %v2282
    %v2678 = vunpack.c.h.b16 %v2282
    %v2679 = vunpack.c.l.b16 %v2283
    %v2680 = vunpack.c.h.b16 %v2283
    %v2681 = vunpack.c.l.b16 %v2284
    %v2682 = vunpack.c.h.b16 %v2284
    %v2683 = vunpack.c.l.b16 %v2285
    %v2684 = vunpack.c.h.b16 %v2285
    %v2685 = vunpack.c.l.b16 %v2286
    %v2686 = vunpack.c.h.b16 %v2286
    %v2687 = vunpack.c.l.b16 %v2287
    %v2688 = vunpack.c.h.b16 %v2287
    %v2689 = vunpack.c.l.b16 %v2288
    %v2690 = vunpack.c.h.b16 %v2288
    %v2691 = vunpack.c.l.b16 %v2289
    %v2692 = vunpack.c.h.b16 %v2289
    %v2693 = vunpack.c.l.b16 %v2290
    %v2694 = vunpack.c.h.b16 %v2290
    %v2695 = vunpack.c.l.b16 %v2291
    %v2696 = vunpack.c.h.b16 %v2291
    %v2697 = vunpack.c.l.b16 %v2292
    %v2698 = vunpack.c.h.b16 %v2292
    %v2699 = vunpack.c.l.b16 %v2293
    %v2700 = vunpack.c.h.b16 %v2293
    %v2701 = vunpack.c.l.b16 %v2294
    %v2702 = vunpack.c.h.b16 %v2294
    %v2703 = vunpack.c.l.b16 %v2295
    %v2704 = vunpack.c.h.b16 %v2295
    %v2705 = vunpack.c.l.b16 %v2296
    %v2706 = vunpack.c.h.b16 %v2296
    %v2707 = vunpack.c.l.b16 %v2297
    %v2708 = vunpack.c.h.b16 %v2297
    %v2709 = vunpack.c.l.b16 %v2298
    %v2710 = vunpack.c.h.b16 %v2298
    %v2711 = vunpack.c.l.b16 %v2299
    %v2712 = vunpack.c.h.b16 %v2299
    %v2713 = vunpack.c.l.b16 %v2300
    %v2714 = vunpack.c.h.b16 %v2300
    %v2715 = vunpack.c.l.b16 %v2301
    %v2716 = vunpack.c.h.b16 %v2301
    %v2717 = vunpack.c.l.b16 %v2302
    %v2718 = vunpack.c.h.b16 %v2302
    %v2719 = vunpack.c.l.b16 %v2303
    %v2720 = vunpack.c.h.b16 %v2303
    %v2721 = vunpack.c.l.b16 %v2304
    %v2722 = vunpack.c.h.b16 %v2304
    %v2723 = vunpack.c.l.b16 %v2305
    %v2724 = vunpack.c.h.b16 %v2305
    %v2725 = vunpack.c.l.b16 %v2306
    %v2726 = vunpack.c.h.b16 %v2306
    %v2727 = vunpack.c.l.b16 %v2307
    %v2728 = vunpack.c.h.b16 %v2307
    %v2729 = vunpack.c.l.b16 %v2308
    %v2730 = vunpack.c.h.b16 %v2308
    %v2731 = vunpack.c.l.b16 %v2309
    %v2732 = vunpack.c.h.b16 %v2309
    %v2733 = vunpack.c.l.b16 %v2310
    %v2734 = vunpack.c.h.b16 %v2310
    %v2735 = vunpack.c.l.b16 %v2311
    %v2736 = vunpack.c.h.b16 %v2311
    %v2737 = vunpack.c.l.b16 %v2312
    %v2738 = vunpack.c.h.b16 %v2312
    %v2739 = vunpack.c.l.b16 %v2313
    %v2740 = vunpack.c.h.b16 %v2313
    %v2741 = vunpack.c.l.b16 %v2314
    %v2742 = vunpack.c.h.b16 %v2314
    %v2743 = vunpack.c.l.b16 %v2315
    %v2744 = vunpack.c.h.b16 %v2315
    %v2745 = vunpack.c.l.b16 %v2316
    %v2746 = vunpack.c.h.b16 %v2316
    %v2747 = vunpack.c.l.b16 %v2317
    %v2748 = vunpack.c.h.b16 %v2317
    %v2749 = vunpack.c.l.b16 %v2318
    %v2750 = vunpack.c.h.b16 %v2318
    %v2751 = vunpack.c.l.b16 %v2319
    %v2752 = vunpack.c.h.b16 %v2319
    %v2753 = vunpack.c.l.b16 %v2320
    %v2754 = vunpack.c.h.b16 %v2320
    %v2755 = vunpack.c.l.b16 %v2321
    %v2756 = vunpack.c.h.b16 %v2321
    %v2757 = vunpack.c.l.b16 %v2322
    %v2758 = vunpack.c.h.b16 %v2322
    %v2759 = vunpack.c.l.b16 %v2323
    %v2760 = vunpack.c.h.b16 %v2323
    %v2761 = vunpack.c.l.b16 %v2324
    %v2762 = vunpack.c.h.b16 %v2324
    %v2763 = vunpack.c.l.b16 %v2325
    %v2764 = vunpack.c.h.b16 %v2325
    %v2765 = vunpack.c.l.b16 %v2326
    %v2766 = vunpack.c.h.b16 %v2326
    %v2767 = vunpack.c.l.b16 %v2327
    %v2768 = vunpack.c.h.b16 %v2327
    %v2769 = vunpack.c.l.b16 %v2328
    %v2770 = vunpack.c.h.b16 %v2328
    %v2771 = vunpack.c.l.b16 %v2329
    %v2772 = vunpack.c.h.b16 %v2329
    %v2773 = vunpack.c.l.b16 %v2330
    %v2774 = vunpack.c.h.b16 %v2330
    %v2775 = vunpack.c.l.b16 %v2331
    %v2776 = vunpack.c.h.b16 %v2331
    %v2777 = vunpack.c.l.b16 %v2332
    %v2778 = vunpack.c.h.b16 %v2332
    %v2779 = vunpack.c.l.b16 %v2333
    %v2780 = vunpack.c.h.b16 %v2333
    %v2781 = vunpack.c.l.b16 %v2334
    %v2782 = vunpack.c.h.b16 %v2334
    %v2783 = vunpack.c.l.b16 %v2335
    %v2784 = vunpack.c.h.b16 %v2335
    %v2785 = vunpack.c.l.b16 %v2336
    %v2786 = vunpack.c.h.b16 %v2336
    %v2787 = vunpack.c.l.b16 %v2337
    %v2788 = vunpack.c.h.b16 %v2337
    %v2789 = vunpack.c.l.b16 %v2338
    %v2790 = vunpack.c.h.b16 %v2338
    %v2791 = vunpack.c.l.b16 %v2339
    %v2792 = vunpack.c.h.b16 %v2339
    %v2793 = vunpack.c.l.b16 %v2340
    %v2794 = vunpack.c.h.b16 %v2340
    %v2795 = vunpack.c.l.b16 %v2341
    %v2796 = vunpack.c.h.b16 %v2341
    %v2797 = vunpack.c.l.b16 %v2342
    %v2798 = vunpack.c.h.b16 %v2342
    %v2799 = vunpack.c.l.b16 %v2343
    %v2800 = vunpack.c.h.b16 %v2343
    %v2801 = vunpack.c.l.b16 %v2344
    %v2802 = vunpack.c.h.b16 %v2344
    %v2803 = vunpack.c.l.b16 %v2345
    %v2804 = vunpack.c.h.b16 %v2345
    %v2805 = vunpack.c.l.b16 %v2346
    %v2806 = vunpack.c.h.b16 %v2346
    %v2807 = vunpack.c.l.b16 %v2347
    %v2808 = vunpack.c.h.b16 %v2347
    %v2809 = vunpack.c.l.b16 %v2348
    %v2810 = vunpack.c.h.b16 %v2348
    %v2811 = vunpack.c.l.b16 %v2349
    %v2812 = vunpack.c.h.b16 %v2349
    %v2813 = vunpack.c.l.b16 %v2350
    %v2814 = vunpack.c.h.b16 %v2350
    %v2815 = vunpack.c.l.b16 %v2351
    %v2816 = vunpack.c.h.b16 %v2351
    %v2817 = vunpack.c.l.b16 %v2352
    %v2818 = vunpack.c.h.b16 %v2352
    %v2819 = vunpack.c.l.b16 %v2353
    %v2820 = vunpack.c.h.b16 %v2353
    %v2821 = vunpack.c.l.b16 %v2354
    %v2822 = vunpack.c.h.b16 %v2354
    %v2823 = vunpack.c.l.b16 %v2355
    %v2824 = vunpack.c.h.b16 %v2355
    %v2825 = vunpack.c.l.b16 %v2356
    %v2826 = vunpack.c.h.b16 %v2356
    %v2827 = vunpack.c.l.b16 %v2357
    %v2828 = vunpack.c.h.b16 %v2357
    %v2829 = vunpack.c.l.b16 %v2358
    %v2830 = vunpack.c.h.b16 %v2358
    %v2831 = vunpack.c.l.b16 %v2359
    %v2832 = vunpack.c.h.b16 %v2359
    %v2833 = vunpack.c.l.b16 %v2360
    %v2834 = vunpack.c.h.b16 %v2360
    %v2835 = vunpack.c.l.b16 %v2361
    %v2836 = vunpack.c.h.b16 %v2361
    %v2837 = vunpack.c.l.b16 %v2362
    %v2838 = vunpack.c.h.b16 %v2362
    %v2839 = vunpack.c.l.b16 %v2363
    %v2840 = vunpack.c.h.b16 %v2363
    %v2841 = vunpack.c.l.b16 %v2364
    %v2842 = vunpack.c.h.b16 %v2364
    %v2843 = vunpack.c.l.b16 %v2365
    %v2844 = vunpack.c.h.b16 %v2365
    %v2845 = vunpack.c.l.b16 %v2366
    %v2846 = vunpack.c.h.b16 %v2366
    %v2847 = vunpack.c.l.b16 %v2367
    %v2848 = vunpack.c.h.b16 %v2367
    %v2849 = vunpack.c.l.b16 %v2368
    %v2850 = vunpack.c.h.b16 %v2368
    %v2851 = vunpack.c.l.b16 %v2369
    %v2852 = vunpack.c.h.b16 %v2369
    %v2853 = vunpack.c.l.b16 %v2370
    %v2854 = vunpack.c.h.b16 %v2370
    %v2855 = vunpack.c.l.b16 %v2371
    %v2856 = vunpack.c.h.b16 %v2371
    %v2857 = vunpack.c.l.b16 %v2372
    %v2858 = vunpack.c.h.b16 %v2372
    %v2859 = vunpack.c.l.b16 %v2373
    %v2860 = vunpack.c.h.b16 %v2373
    %v2861 = vunpack.c.l.b16 %v2374
    %v2862 = vunpack.c.h.b16 %v2374
    %v2863 = vunpack.c.l.b16 %v2375
    %v2864 = vunpack.c.h.b16 %v2375
    %v2865 = vunpack.c.l.b16 %v2376
    %v2866 = vunpack.c.h.b16 %v2376
    %v2867 = vunpack.c.l.b16 %v2377
    %v2868 = vunpack.c.h.b16 %v2377
    %v2869 = vunpack.c.l.b16 %v2378
    %v2870 = vunpack.c.h.b16 %v2378
    %v2871 = vunpack.c.l.b16 %v2379
    %v2872 = vunpack.c.h.b16 %v2379
    %v2873 = vunpack.c.l.b16 %v2380
    %v2874 = vunpack.c.h.b16 %v2380
    %v2875 = vunpack.c.l.b16 %v2381
    %v2876 = vunpack.c.h.b16 %v2381
    %v2877 = vunpack.c.l.b16 %v2382
    %v2878 = vunpack.c.h.b16 %v2382
    %v2879 = vunpack.c.l.b16 %v2383
    %v2880 = vunpack.c.h.b16 %v2383
    %v2881 = vunpack.c.l.b16 %v2384
    %v2882 = vunpack.c.h.b16 %v2384
    %v2883 = vunpack.c.l.b16 %v2385
    %v2884 = vunpack.c.h.b16 %v2385
    %v2885 = vunpack.c.l.b16 %v2386
    %v2886 = vunpack.c.h.b16 %v2386
    %v2887 = vunpack.c.l.b16 %v2387
    %v2888 = vunpack.c.h.b16 %v2387
    %v2889 = vunpack.c.l.b16 %v2388
    %v2890 = vunpack.c.h.b16 %v2388
    %v2891 = vpack.c.b16 %v2575, %v2571
    %v2892 = vpack.c.b16 %v2576, %v2572
    %v2893 = vpack.c.b16 %v2577, %v2573
    %v2894 = vpack.c.b16 %v2578, %v2574
    %v2895 = vpack.c.b16 %v2583, %v2579
    %v2896 = vpack.c.b16 %v2584, %v2580
    %v2897 = vpack.c.b16 %v2585, %v2581
    %v2898 = vpack.c.b16 %v2586, %v2582
    %v2899 = vpack.c.b16 %v2591, %v2587
    %v2900 = vpack.c.b16 %v2592, %v2588
    %v2901 = vpack.c.b16 %v2593, %v2589
    %v2902 = vpack.c.b16 %v2594, %v2590
    %v2903 = vpack.c.b16 %v2599, %v2595
    %v2904 = vpack.c.b16 %v2600, %v2596
    %v2905 = vpack.c.b16 %v2601, %v2597
    %v2906 = vpack.c.b16 %v2602, %v2598
    %v2907 = vpack.c.b16 %v2607, %v2603
    %v2908 = vpack.c.b16 %v2608, %v2604
    %v2909 = vpack.c.b16 %v2609, %v2605
    %v2910 = vpack.c.b16 %v2610, %v2606
    %v2911 = vpack.c.b16 %v2615, %v2611
    %v2912 = vpack.c.b16 %v2616, %v2612
    %v2913 = vpack.c.b16 %v2617, %v2613
    %v2914 = vpack.c.b16 %v2618, %v2614
    %v2915 = vpack.c.b16 %v2623, %v2619
    %v2916 = vpack.c.b16 %v2624, %v2620
    %v2917 = vpack.c.b16 %v2625, %v2621
    %v2918 = vpack.c.b16 %v2626, %v2622
    %v2919 = vpack.c.b16 %v2631, %v2627
    %v2920 = vpack.c.b16 %v2632, %v2628
    %v2921 = vpack.c.b16 %v2633, %v2629
    %v2922 = vpack.c.b16 %v2634, %v2630
    %v2923 = vpack.c.b16 %v2639, %v2635
    %v2924 = vpack.c.b16 %v2640, %v2636
    %v2925 = vpack.c.b16 %v2641, %v2637
    %v2926 = vpack.c.b16 %v2642, %v2638
    %v2927 = vpack.c.b16 %v2647, %v2643
    %v2928 = vpack.c.b16 %v2648, %v2644
    %v2929 = vpack.c.b16 %v2649, %v2645
    %v2930 = vpack.c.b16 %v2650, %v2646
    %v2931 = vpack.c.b16 %v2655, %v2651
    %v2932 = vpack.c.b16 %v2656, %v2652
    %v2933 = vpack.c.b16 %v2657, %v2653
    %v2934 = vpack.c.b16 %v2658, %v2654
    %v2935 = vpack.c.b16 %v2663, %v2659
    %v2936 = vpack.c.b16 %v2664, %v2660
    %v2937 = vpack.c.b16 %v2665, %v2661
    %v2938 = vpack.c.b16 %v2666, %v2662
    %v2939 = vpack.c.b16 %v2671, %v2667
    %v2940 = vpack.c.b16 %v2672, %v2668
    %v2941 = vpack.c.b16 %v2673, %v2669
    %v2942 = vpack.c.b16 %v2674, %v2670
    %v2943 = vpack.c.b16 %v2679, %v2675
    %v2944 = vpack.c.b16 %v2680, %v2676
    %v2945 = vpack.c.b16 %v2681, %v2677
    %v2946 = vpack.c.b16 %v2682, %v2678
    %v2947 = vpack.c.b16 %v2687, %v2683
    %v2948 = vpack.c.b16 %v2688, %v2684
    %v2949 = vpack.c.b16 %v2689, %v2685
    %v2950 = vpack.c.b16 %v2690, %v2686
    %v2951 = vpack.c.b16 %v2695, %v2691
    %v2952 = vpack.c.b16 %v2696, %v2692
    %v2953 = vpack.c.b16 %v2697, %v2693
    %v2954 = vpack.c.b16 %v2698, %v2694
    %v2955 = vpack.c.b16 %v2703, %v2699
    %v2956 = vpack.c.b16 %v2704, %v2700
    %v2957 = vpack.c.b16 %v2705, %v2701
    %v2958 = vpack.c.b16 %v2706, %v2702
    %v2959 = vpack.c.b16 %v2711, %v2707
    %v2960 = vpack.c.b16 %v2712, %v2708
    %v2961 = vpack.c.b16 %v2713, %v2709
    %v2962 = vpack.c.b16 %v2714, %v2710
    %v2963 = vpack.c.b16 %v2719, %v2715
    %v2964 = vpack.c.b16 %v2720, %v2716
    %v2965 = vpack.c.b16 %v2721, %v2717
    %v2966 = vpack.c.b16 %v2722, %v2718
    %v2967 = vpack.c.b16 %v2727, %v2723
    %v2968 = vpack.c.b16 %v2728, %v2724
    %v2969 = vpack.c.b16 %v2729, %v2725
    %v2970 = vpack.c.b16 %v2730, %v2726
    %v2971 = vpack.c.b16 %v2735, %v2731
    %v2972 = vpack.c.b16 %v2736, %v2732
    %v2973 = vpack.c.b16 %v2737, %v2733
    %v2974 = vpack.c.b16 %v2738, %v2734
    %v2975 = vpack.c.b16 %v2743, %v2739
    %v2976 = vpack.c.b16 %v2744, %v2740
    %v2977 = vpack.c.b16 %v2745, %v2741
    %v2978 = vpack.c.b16 %v2746, %v2742
    %v2979 = vpack.c.b16 %v2751, %v2747
    %v2980 = vpack.c.b16 %v2752, %v2748
    %v2981 = vpack.c.b16 %v2753, %v2749
    %v2982 = vpack.c.b16 %v2754, %v2750
    %v2983 = vpack.c.b16 %v2759, %v2755
    %v2984 = vpack.c.b16 %v2760, %v2756
    %v2985 = vpack.c.b16 %v2761, %v2757
    %v2986 = vpack.c.b16 %v2762, %v2758
    %v2987 = vpack.c.b16 %v2767, %v2763
    %v2988 = vpack.c.b16 %v2768, %v2764
    %v2989 = vpack.c.b16 %v2769, %v2765
    %v2990 = vpack.c.b16 %v2770, %v2766
    %v2991 = vpack.c.b16 %v2775, %v2771
    %v2992 = vpack.c.b16 %v2776, %v2772
    %v2993 = vpack.c.b16 %v2777, %v2773
    %v2994 = vpack.c.b16 %v2778, %v2774
    %v2995 = vpack.c.b16 %v2783, %v2779
    %v2996 = vpack.c.b16 %v2784, %v2780
    %v2997 = vpack.c.b16 %v2785, %v2781
    %v2998 = vpack.c.b16 %v2786, %v2782
    %v2999 = vpack.c.b16 %v2791, %v2787
    %v3000 = vpack.c.b16 %v2792, %v2788
    %v3001 = vpack.c.b16 %v2793, %v2789
    %v3002 = vpack.c.b16 %v2794, %v2790
    %v3003 = vpack.c.b16 %v2799, %v2795
    %v3004 = vpack.c.b16 %v2800, %v2796
    %v3005 = vpack.c.b16 %v2801, %v2797
    %v3006 = vpack.c.b16 %v2802, %v2798
    %v3007 = vpack.c.b16 %v2807, %v2803
    %v3008 = vpack.c.b16 %v2808, %v2804
    %v3009 = vpack.c.b16 %v2809, %v2805
    %v3010 = vpack.c.b16 %v2810, %v2806
    %v3011 = vpack.c.b16 %v2815, %v2811
    %v3012 = vpack.c.b16 %v2816, %v2812
    %v3013 = vpack.c.b16 %v2817, %v2813
    %v3014 = vpack.c.b16 %v2818, %v2814
    %v3015 = vpack.c.b16 %v2823, %v2819
    %v3016 = vpack.c.b16 %v2824, %v2820
    %v3017 = vpack.c.b16 %v2825, %v2821
    %v3018 = vpack.c.b16 %v2826, %v2822
    %v3019 = vpack.c.b16 %v2831, %v2827
    %v3020 = vpack.c.b16 %v2832, %v2828
    %v3021 = vpack.c.b16 %v2833, %v2829
    %v3022 = vpack.c.b16 %v2834, %v2830
    %v3023 = vpack.c.b16 %v2839, %v2835
    %v3024 = vpack.c.b16 %v2840, %v2836
    %v3025 = vpack.c.b16 %v2841, %v2837
    %v3026 = vpack.c.b16 %v2842, %v2838
    %v3027 = vpack.c.b16 %v2847, %v2843
    %v3028 = vpack.c.b16 %v2848, %v2844
    %v3029 = vpack.c.b16 %v2849, %v2845
    %v3030 = vpack.c.b16 %v2850, %v2846
    %v3031 = vpack.c.b16 %v2855, %v2851
    %v3032 = vpack.c.b16 %v2856, %v2852
    %v3033 = vpack.c.b16 %v2857, %v2853
    %v3034 = vpack.c.b16 %v2858, %v2854
    %v3035 = vpack.c.b16 %v2863, %v2859
    %v3036 = vpack.c.b16 %v2864, %v2860
    %v3037 = vpack.c.b16 %v2865, %v2861
    %v3038 = vpack.c.b16 %v2866, %v2862
    %v3039 = vpack.c.b16 %v2871, %v2867
    %v3040 = vpack.c.b16 %v2872, %v2868
    %v3041 = vpack.c.b16 %v2873, %v2869
    %v3042 = vpack.c.b16 %v2874, %v2870
    %v3043 = vpack.c.b16 %v2879, %v2875
    %v3044 = vpack.c.b16 %v2880, %v2876
    %v3045 = vpack.c.b16 %v2881, %v2877
    %v3046 = vpack.c.b16 %v2882, %v2878
    %v3047 = vpack.c.b16 %v2887, %v2883
    %v3048 = vpack.c.b16 %v2888, %v2884
    %v3049 = vpack.c.b16 %v2889, %v2885
    %v3050 = vpack.c.b16 %v2890, %v2886
    %3211 = vmatprep.subr.bf16.mxu0 %v2920
    %3212 = vmatpush1.bf16.msra.mxu0 %v2919
    %3213 = vmatprep.subr.bf16.mxu0 %v2916
    %3214 = vmatpush1.bf16.msra.mxu0 %v2915
    %3215 = vmatprep.subr.bf16.mxu0 %v2912
    %3216 = vmatpush1.bf16.msra.mxu0 %v2911
    %3217 = vmatprep.subr.bf16.mxu0 %v2908
    %3218 = vmatpush1.bf16.msra.mxu0 %v2907
    %3219 = vmatprep.subr.bf16.mxu0 %v2904
    %3220 = vmatpush1.bf16.msra.mxu0 %v2903
    %3221 = vmatprep.subr.bf16.mxu0 %v2900
    %3222 = vmatpush1.bf16.msra.mxu0 %v2899
    %3223 = vmatprep.subr.bf16.mxu0 %v2896
    %3224 = vmatpush1.bf16.msra.mxu0 %v2895
    %3225 = vmatprep.subr.bf16.mxu0 %v2892
    %3226 = vmatpush1.bf16.msra.mxu0 %v2891
    %3227 = vmatprep.subr.bf16.mxu0 %v2952
    %3228 = vmatpush2.bf16.msra.mxu0 %v2951
    %3229 = vmatprep.subr.bf16.mxu0 %v2948
    %3230 = vmatpush2.bf16.msra.mxu0 %v2947
    %3231 = vmatprep.subr.bf16.mxu0 %v2944
    %3232 = vmatpush2.bf16.msra.mxu0 %v2943
    %3233 = vmatprep.subr.bf16.mxu0 %v2940
    %3234 = vmatpush2.bf16.msra.mxu0 %v2939
    %3235 = vmatprep.subr.bf16.mxu0 %v2936
    %3236 = vmatpush2.bf16.msra.mxu0 %v2935
    %3237 = vmatprep.subr.bf16.mxu0 %v2932
    %3238 = vmatpush2.bf16.msra.mxu0 %v2931
    %3239 = vmatprep.subr.bf16.mxu0 %v2928
    %3240 = vmatpush2.bf16.msra.mxu0 %v2927
    %3241 = vmatprep.subr.bf16.mxu0 %v2924
    %3242 = vmatpush2.bf16.msra.mxu0 %v2923
    %3243 = vmatprep.mubr.bf16.mxu0 %v2225
    %3244 = vmatmul.mubr.bf16.gmra.mxu0 %v2224
    %v3245 = vpop.f32.mrf.mxu0
    %v3246 = vadd.f32 %v2394, %v3245
    %v3247 = vpop.f32.mrf.mxu0
    %v3248 = vadd.f32 %v2398, %v3247
    %v3249 = vpop.f32.mrf.mxu0
    %v3250 = vpop.f32.mrf.mxu0
    %3251 = vdwg.mxu0
    %3252 = vmatprep.subr.bf16.mxu0 %v2984
    %3253 = vmatpush1.bf16.msra.mxu0 %v2983
    %3254 = vmatprep.subr.bf16.mxu0 %v2980
    %3255 = vmatpush1.bf16.msra.mxu0 %v2979
    %3256 = vmatprep.subr.bf16.mxu0 %v2976
    %3257 = vmatpush1.bf16.msra.mxu0 %v2975
    %3258 = vmatprep.subr.bf16.mxu0 %v2972
    %3259 = vmatpush1.bf16.msra.mxu0 %v2971
    %3260 = vmatprep.subr.bf16.mxu0 %v2968
    %3261 = vmatpush1.bf16.msra.mxu0 %v2967
    %3262 = vmatprep.subr.bf16.mxu0 %v2964
    %3263 = vmatpush1.bf16.msra.mxu0 %v2963
    %3264 = vmatprep.subr.bf16.mxu0 %v2960
    %3265 = vmatpush1.bf16.msra.mxu0 %v2959
    %3266 = vmatprep.subr.bf16.mxu0 %v2956
    %3267 = vmatpush1.bf16.msra.mxu0 %v2955
    %3268 = vmatprep.subr.bf16.mxu0 %v3016
    %3269 = vmatpush2.bf16.msra.mxu0 %v3015
    %3270 = vmatprep.subr.bf16.mxu0 %v3012
    %3271 = vmatpush2.bf16.msra.mxu0 %v3011
    %3272 = vmatprep.subr.bf16.mxu0 %v3008
    %3273 = vmatpush2.bf16.msra.mxu0 %v3007
    %3274 = vmatprep.subr.bf16.mxu0 %v3004
    %3275 = vmatpush2.bf16.msra.mxu0 %v3003
    %3276 = vmatprep.subr.bf16.mxu0 %v3000
    %3277 = vmatpush2.bf16.msra.mxu0 %v2999
    %3278 = vmatprep.subr.bf16.mxu0 %v2996
    %3279 = vmatpush2.bf16.msra.mxu0 %v2995
    %3280 = vmatprep.subr.bf16.mxu0 %v2992
    %3281 = vmatpush2.bf16.msra.mxu0 %v2991
    %3282 = vmatprep.subr.bf16.mxu0 %v2988
    %3283 = vmatpush2.bf16.msra.mxu0 %v2987
    %3284 = vmatprep.mubr.bf16.mxu0 %v2227
    %3285 = vmatmul.mubr.bf16.gmra.mxu0 %v2226
    %v3286 = vpop.f32.mrf.mxu0
    %v3287 = vadd.f32 %v3246, %v3286
    %v3288 = vpop.f32.mrf.mxu0
    %v3289 = vadd.f32 %v3248, %v3288
    %v3290 = vpop.f32.mrf.mxu0
    %v3291 = vpop.f32.mrf.mxu0
    %3292 = vdwg.mxu0
    %3293 = vmatprep.subr.bf16.mxu0 %v3048
    %3294 = vmatpush1.bf16.msra.mxu0 %v3047
    %3295 = vmatprep.subr.bf16.mxu0 %v3044
    %3296 = vmatpush1.bf16.msra.mxu0 %v3043
    %3297 = vmatprep.subr.bf16.mxu0 %v3040
    %3298 = vmatpush1.bf16.msra.mxu0 %v3039
    %3299 = vmatprep.subr.bf16.mxu0 %v3036
    %3300 = vmatpush1.bf16.msra.mxu0 %v3035
    %3301 = vmatprep.subr.bf16.mxu0 %v3032
    %3302 = vmatpush1.bf16.msra.mxu0 %v3031
    %3303 = vmatprep.subr.bf16.mxu0 %v3028
    %3304 = vmatpush1.bf16.msra.mxu0 %v3027
    %3305 = vmatprep.subr.bf16.mxu0 %v3024
    %3306 = vmatpush1.bf16.msra.mxu0 %v3023
    %3307 = vmatprep.subr.bf16.mxu0 %v3020
    %3308 = vmatpush1.bf16.msra.mxu0 %v3019
    %3309 = vmatprep.subr.bf16.mxu0 0
    %3310 = vmatpush2.bf16.msra.mxu0 0
    %3311 = vmatprep.subr.bf16.mxu0 0
    %3312 = vmatpush2.bf16.msra.mxu0 0
    %3313 = vmatprep.subr.bf16.mxu0 0
    %3314 = vmatpush2.bf16.msra.mxu0 0
    %3315 = vmatprep.subr.bf16.mxu0 0
    %3316 = vmatpush2.bf16.msra.mxu0 0
    %3317 = vmatprep.subr.bf16.mxu0 0
    %3318 = vmatpush2.bf16.msra.mxu0 0
    %3319 = vmatprep.subr.bf16.mxu0 0
    %3320 = vmatpush2.bf16.msra.mxu0 0
    %3321 = vmatprep.subr.bf16.mxu0 0
    %3322 = vmatpush2.bf16.msra.mxu0 0
    %3323 = vmatprep.subr.bf16.mxu0 0
    %3324 = vmatpush2.bf16.msra.mxu0 0
    %3325 = vmatprep.mubr.bf16.mxu0 0
    %3326 = vmatmul.mubr.bf16.gmra.mxu0 %v2228
    %v3327 = vpop.f32.mrf.mxu0
    %v3328 = vadd.f32 %v3287, %v3327
    %v3329 = vpop.f32.mrf.mxu0
    %v3330 = vadd.f32 %v3289, %v3329
    %v3331 = vpop.f32.mrf.mxu0
    %v3332 = vpop.f32.mrf.mxu0
    %3333 = vdwg.mxu0
    %3334 = vmatprep.subr.bf16.mxu0 %v2922
    %3335 = vmatpush1.bf16.msra.mxu0 %v2921
    %3336 = vmatprep.subr.bf16.mxu0 %v2918
    %3337 = vmatpush1.bf16.msra.mxu0 %v2917
    %3338 = vmatprep.subr.bf16.mxu0 %v2914
    %3339 = vmatpush1.bf16.msra.mxu0 %v2913
    %3340 = vmatprep.subr.bf16.mxu0 %v2910
    %3341 = vmatpush1.bf16.msra.mxu0 %v2909
    %3342 = vmatprep.subr.bf16.mxu0 %v2906
    %3343 = vmatpush1.bf16.msra.mxu0 %v2905
    %3344 = vmatprep.subr.bf16.mxu0 %v2902
    %3345 = vmatpush1.bf16.msra.mxu0 %v2901
    %3346 = vmatprep.subr.bf16.mxu0 %v2898
    %3347 = vmatpush1.bf16.msra.mxu0 %v2897
    %3348 = vmatprep.subr.bf16.mxu0 %v2894
    %3349 = vmatpush1.bf16.msra.mxu0 %v2893
    %3350 = vmatprep.subr.bf16.mxu0 %v2954
    %3351 = vmatpush2.bf16.msra.mxu0 %v2953
    %3352 = vmatprep.subr.bf16.mxu0 %v2950
    %3353 = vmatpush2.bf16.msra.mxu0 %v2949
    %3354 = vmatprep.subr.bf16.mxu0 %v2946
    %3355 = vmatpush2.bf16.msra.mxu0 %v2945
    %3356 = vmatprep.subr.bf16.mxu0 %v2942
    %3357 = vmatpush2.bf16.msra.mxu0 %v2941
    %3358 = vmatprep.subr.bf16.mxu0 %v2938
    %3359 = vmatpush2.bf16.msra.mxu0 %v2937
    %3360 = vmatprep.subr.bf16.mxu0 %v2934
    %3361 = vmatpush2.bf16.msra.mxu0 %v2933
    %3362 = vmatprep.subr.bf16.mxu0 %v2930
    %3363 = vmatpush2.bf16.msra.mxu0 %v2929
    %3364 = vmatprep.subr.bf16.mxu0 %v2926
    %3365 = vmatpush2.bf16.msra.mxu0 %v2925
    %3366 = vmatprep.mubr.bf16.mxu0 %v2225
    %3367 = vmatmul.mubr.bf16.gmra.mxu0 %v2224
    %v3368 = vpop.f32.mrf.mxu0
    %v3369 = vadd.f32 %v2402, %v3368
    %v3370 = vpop.f32.mrf.mxu0
    %v3371 = vadd.f32 %v2406, %v3370
    %v3372 = vpop.f32.mrf.mxu0
    %v3373 = vpop.f32.mrf.mxu0
    %3374 = vdwg.mxu0
    %3375 = vmatprep.subr.bf16.mxu0 %v2986
    %3376 = vmatpush1.bf16.msra.mxu0 %v2985
    %3377 = vmatprep.subr.bf16.mxu0 %v2982
    %3378 = vmatpush1.bf16.msra.mxu0 %v2981
    %3379 = vmatprep.subr.bf16.mxu0 %v2978
    %3380 = vmatpush1.bf16.msra.mxu0 %v2977
    %3381 = vmatprep.subr.bf16.mxu0 %v2974
    %3382 = vmatpush1.bf16.msra.mxu0 %v2973
    %3383 = vmatprep.subr.bf16.mxu0 %v2970
    %3384 = vmatpush1.bf16.msra.mxu0 %v2969
    %3385 = vmatprep.subr.bf16.mxu0 %v2966
    %3386 = vmatpush1.bf16.msra.mxu0 %v2965
    %3387 = vmatprep.subr.bf16.mxu0 %v2962
    %3388 = vmatpush1.bf16.msra.mxu0 %v2961
    %3389 = vmatprep.subr.bf16.mxu0 %v2958
    %3390 = vmatpush1.bf16.msra.mxu0 %v2957
    %3391 = vmatprep.subr.bf16.mxu0 %v3018
    %3392 = vmatpush2.bf16.msra.mxu0 %v3017
    %3393 = vmatprep.subr.bf16.mxu0 %v3014
    %3394 = vmatpush2.bf16.msra.mxu0 %v3013
    %3395 = vmatprep.subr.bf16.mxu0 %v3010
    %3396 = vmatpush2.bf16.msra.mxu0 %v3009
    %3397 = vmatprep.subr.bf16.mxu0 %v3006
    %3398 = vmatpush2.bf16.msra.mxu0 %v3005
    %3399 = vmatprep.subr.bf16.mxu0 %v3002
    %3400 = vmatpush2.bf16.msra.mxu0 %v3001
    %3401 = vmatprep.subr.bf16.mxu0 %v2998
    %3402 = vmatpush2.bf16.msra.mxu0 %v2997
    %3403 = vmatprep.subr.bf16.mxu0 %v2994
    %3404 = vmatpush2.bf16.msra.mxu0 %v2993
    %3405 = vmatprep.subr.bf16.mxu0 %v2990
    %3406 = vmatpush2.bf16.msra.mxu0 %v2989
    %3407 = vmatprep.mubr.bf16.mxu0 %v2227
    %3408 = vmatmul.mubr.bf16.gmra.mxu0 %v2226
    %v3409 = vpop.f32.mrf.mxu0
    %v3410 = vadd.f32 %v3369, %v3409
    %v3411 = vpop.f32.mrf.mxu0
    %v3412 = vadd.f32 %v3371, %v3411
    %v3413 = vpop.f32.mrf.mxu0
    %v3414 = vpop.f32.mrf.mxu0
    %3415 = vdwg.mxu0
    %3416 = vmatprep.subr.bf16.mxu0 %v3050
    %3417 = vmatpush1.bf16.msra.mxu0 %v3049
    %3418 = vmatprep.subr.bf16.mxu0 %v3046
    %3419 = vmatpush1.bf16.msra.mxu0 %v3045
    %3420 = vmatprep.subr.bf16.mxu0 %v3042
    %3421 = vmatpush1.bf16.msra.mxu0 %v3041
    %3422 = vmatprep.subr.bf16.mxu0 %v3038
    %3423 = vmatpush1.bf16.msra.mxu0 %v3037
    %3424 = vmatprep.subr.bf16.mxu0 %v3034
    %3425 = vmatpush1.bf16.msra.mxu0 %v3033
    %3426 = vmatprep.subr.bf16.mxu0 %v3030
    %3427 = vmatpush1.bf16.msra.mxu0 %v3029
    %3428 = vmatprep.subr.bf16.mxu0 %v3026
    %3429 = vmatpush1.bf16.msra.mxu0 %v3025
    %3430 = vmatprep.subr.bf16.mxu0 %v3022
    %3431 = vmatpush1.bf16.msra.mxu0 %v3021
    %3432 = vmatprep.subr.bf16.mxu0 0
    %3433 = vmatpush2.bf16.msra.mxu0 0
    %3434 = vmatprep.subr.bf16.mxu0 0
    %3435 = vmatpush2.bf16.msra.mxu0 0
    %3436 = vmatprep.subr.bf16.mxu0 0
    %3437 = vmatpush2.bf16.msra.mxu0 0
    %3438 = vmatprep.subr.bf16.mxu0 0
    %3439 = vmatpush2.bf16.msra.mxu0 0
    %3440 = vmatprep.subr.bf16.mxu0 0
    %3441 = vmatpush2.bf16.msra.mxu0 0
    %3442 = vmatprep.subr.bf16.mxu0 0
    %3443 = vmatpush2.bf16.msra.mxu0 0
    %3444 = vmatprep.subr.bf16.mxu0 0
    %3445 = vmatpush2.bf16.msra.mxu0 0
    %3446 = vmatprep.subr.bf16.mxu0 0
    %3447 = vmatpush2.bf16.msra.mxu0 0
    %3448 = vmatprep.mubr.bf16.mxu0 0
    %3449 = vmatmul.mubr.bf16.gmra.mxu0 %v2228
    %v3450 = vpop.f32.mrf.mxu0
    %v3451 = vadd.f32 %v3410, %v3450
    %v3452 = vpop.f32.mrf.mxu0
    %v3453 = vadd.f32 %v3412, %v3452
    %v3454 = vpop.f32.mrf.mxu0
    %v3455 = vpop.f32.mrf.mxu0
    %3456 = vdwg.mxu0
    %v3457 = vmax.f32 %v3328, 0.0
    %v3458 = vmax.f32 %v3330, 0.0
    %v3459 = vmax.f32 %v3451, 0.0
    %v3460 = vmax.f32 %v3453, 0.0
    %v3461 = vpack.c.bf16 %v3457, %v3457
    %v3462 = vpack.c.bf16 %v3458, %v3458
    %v3463 = vpack.c.bf16 %v3459, %v3459
    %v3464 = vpack.c.bf16 %v3460, %v3460
    %v3465 = vld [vmem:[#allocation10] sm:$0xff]
    %v3466 = vld [vmem:[#allocation10 + $0x8] sm:$0xff]
    %v3467 = vld [vmem:[#allocation10 + $0x10] sm:$0xff]
    %v3468 = vld [vmem:[#allocation10 + $0x18] sm:$0xff]
    %v3469 = vld [vmem:[#allocation10 + $0x20] sm:$0xff]
    %v3470 = vld [vmem:[#allocation10 + $0x28] sm:$0xff]
    %v3471 = vld [vmem:[#allocation10 + $0x30] sm:$0xff]
    %v3472 = vld [vmem:[#allocation10 + $0x38] sm:$0xff]
    %v3473 = vld [vmem:[#allocation10 + $0x40] sm:$0xff]
    %v3474 = vld [vmem:[#allocation10 + $0x48] sm:$0xff]
    %v3475 = vld [vmem:[#allocation10 + $0x50] sm:$0xff]
    %v3476 = vld [vmem:[#allocation10 + $0x58] sm:$0xff]
    %v3477 = vld [vmem:[#allocation10 + $0x60] sm:$0xff]
    %v3478 = vld [vmem:[#allocation10 + $0x68] sm:$0xff]
    %v3479 = vld [vmem:[#allocation10 + $0x70] sm:$0xff]
    %v3480 = vld [vmem:[#allocation10 + $0x78] sm:$0xff]
    %v3481 = vld [vmem:[#allocation10 + $0x80] sm:$0xff]
    %v3482 = vld [vmem:[#allocation10 + $0x88] sm:$0xff]
    %v3483 = vld [vmem:[#allocation10 + $0x90] sm:$0xff]
    %v3484 = vld [vmem:[#allocation10 + $0x98] sm:$0xff]
    %v3485 = vld [vmem:[#allocation10 + $0xa0] sm:$0xff]
    %v3486 = vld [vmem:[#allocation10 + $0xa8] sm:$0xff]
    %v3487 = vld [vmem:[#allocation10 + $0xb0] sm:$0xff]
    %v3488 = vld [vmem:[#allocation10 + $0xb8] sm:$0xff]
    %v3489 = vld [vmem:[#allocation10 + $0xc0] sm:$0xff]
    %v3490 = vld [vmem:[#allocation10 + $0xc8] sm:$0xff]
    %v3491 = vld [vmem:[#allocation10 + $0xd0] sm:$0xff]
    %v3492 = vld [vmem:[#allocation10 + $0xd8] sm:$0xff]
    %v3493 = vld [vmem:[#allocation10 + $0xe0] sm:$0xff]
    %v3494 = vld [vmem:[#allocation10 + $0xe8] sm:$0xff]
    %v3495 = vld [vmem:[#allocation10 + $0xf0] sm:$0xff]
    %v3496 = vld [vmem:[#allocation10 + $0xf8] sm:$0xff]
    %v3497 = vld [vmem:[#allocation10 + $0x100] sm:$0xff]
    %v3498 = vld [vmem:[#allocation10 + $0x108] sm:$0xff]
    %v3499 = vld [vmem:[#allocation10 + $0x110] sm:$0xff]
    %v3500 = vld [vmem:[#allocation10 + $0x118] sm:$0xff]
    %v3501 = vld [vmem:[#allocation10 + $0x120] sm:$0xff]
    %v3502 = vld [vmem:[#allocation10 + $0x128] sm:$0xff]
    %v3503 = vld [vmem:[#allocation10 + $0x130] sm:$0xff]
    %v3504 = vld [vmem:[#allocation10 + $0x138] sm:$0xff]
    %v3505 = vld [vmem:[#allocation10 + $0x140] sm:$0xff]
    %v3506 = vld [vmem:[#allocation10 + $0x148] sm:$0xff]
    %v3507 = vld [vmem:[#allocation10 + $0x150] sm:$0xff]
    %v3508 = vld [vmem:[#allocation10 + $0x158] sm:$0xff]
    %v3509 = vld [vmem:[#allocation10 + $0x160] sm:$0xff]
    %v3510 = vld [vmem:[#allocation10 + $0x168] sm:$0xff]
    %v3511 = vld [vmem:[#allocation10 + $0x170] sm:$0xff]
    %v3512 = vld [vmem:[#allocation10 + $0x178] sm:$0xff]
    %v3513 = vld [vmem:[#allocation10 + $0x180] sm:$0xff]
    %v3514 = vld [vmem:[#allocation10 + $0x188] sm:$0xff]
    %v3515 = vld [vmem:[#allocation10 + $0x190] sm:$0xff]
    %v3516 = vld [vmem:[#allocation10 + $0x198] sm:$0xff]
    %v3517 = vld [vmem:[#allocation10 + $0x1a0] sm:$0xff]
    %v3518 = vld [vmem:[#allocation10 + $0x1a8] sm:$0xff]
    %v3519 = vld [vmem:[#allocation10 + $0x1b0] sm:$0xff]
    %v3520 = vld [vmem:[#allocation10 + $0x1b8] sm:$0xff]
    %v3521 = vld [vmem:[#allocation10 + $0x1c0] sm:$0xff]
    %v3522 = vld [vmem:[#allocation10 + $0x1c8] sm:$0xff]
    %v3523 = vld [vmem:[#allocation10 + $0x1d0] sm:$0xff]
    %v3524 = vld [vmem:[#allocation10 + $0x1d8] sm:$0xff]
    %v3525 = vld [vmem:[#allocation10 + $0x1e0] sm:$0xff]
    %v3526 = vld [vmem:[#allocation10 + $0x1e8] sm:$0xff]
    %v3527 = vld [vmem:[#allocation10 + $0x1f0] sm:$0xff]
    %v3528 = vld [vmem:[#allocation10 + $0x1f8] sm:$0xff]
    %v3529 = vld [vmem:[%s6] sm:$0x3]
    %v3531 = vlaneseq
    %v3532 = vshrl.u32 %v3531, 7
    %v3533 = vsub.s32 0, %v3532
    %v3534 = vrot.slane %v3529, %v3533
    %v3535 = vlaneseq
    %v3536 = vshrl.u32 %v3535, 7
    %v3537 = vsub.s32 1, %v3536
    %v3538 = vrot.slane %v3529, %v3537
    %v3605 = vunpack.c.l.b16 %v3465
    %v3606 = vunpack.c.h.b16 %v3465
    %v3607 = vunpack.c.l.b16 %v3466
    %v3608 = vunpack.c.h.b16 %v3466
    %v3609 = vunpack.c.l.b16 %v3467
    %v3610 = vunpack.c.h.b16 %v3467
    %v3611 = vunpack.c.l.b16 %v3468
    %v3612 = vunpack.c.h.b16 %v3468
    %v3613 = vunpack.c.l.b16 %v3469
    %v3614 = vunpack.c.h.b16 %v3469
    %v3615 = vunpack.c.l.b16 %v3470
    %v3616 = vunpack.c.h.b16 %v3470
    %v3617 = vunpack.c.l.b16 %v3471
    %v3618 = vunpack.c.h.b16 %v3471
    %v3619 = vunpack.c.l.b16 %v3472
    %v3620 = vunpack.c.h.b16 %v3472
    %v3621 = vunpack.c.l.b16 %v3473
    %v3622 = vunpack.c.h.b16 %v3473
    %v3623 = vunpack.c.l.b16 %v3474
    %v3624 = vunpack.c.h.b16 %v3474
    %v3625 = vunpack.c.l.b16 %v3475
    %v3626 = vunpack.c.h.b16 %v3475
    %v3627 = vunpack.c.l.b16 %v3476
    %v3628 = vunpack.c.h.b16 %v3476
    %v3629 = vunpack.c.l.b16 %v3477
    %v3630 = vunpack.c.h.b16 %v3477
    %v3631 = vunpack.c.l.b16 %v3478
    %v3632 = vunpack.c.h.b16 %v3478
    %v3633 = vunpack.c.l.b16 %v3479
    %v3634 = vunpack.c.h.b16 %v3479
    %v3635 = vunpack.c.l.b16 %v3480
    %v3636 = vunpack.c.h.b16 %v3480
    %v3637 = vunpack.c.l.b16 %v3481
    %v3638 = vunpack.c.h.b16 %v3481
    %v3639 = vunpack.c.l.b16 %v3482
    %v3640 = vunpack.c.h.b16 %v3482
    %v3641 = vunpack.c.l.b16 %v3483
    %v3642 = vunpack.c.h.b16 %v3483
    %v3643 = vunpack.c.l.b16 %v3484
    %v3644 = vunpack.c.h.b16 %v3484
    %v3645 = vunpack.c.l.b16 %v3485
    %v3646 = vunpack.c.h.b16 %v3485
    %v3647 = vunpack.c.l.b16 %v3486
    %v3648 = vunpack.c.h.b16 %v3486
    %v3649 = vunpack.c.l.b16 %v3487
    %v3650 = vunpack.c.h.b16 %v3487
    %v3651 = vunpack.c.l.b16 %v3488
    %v3652 = vunpack.c.h.b16 %v3488
    %v3653 = vunpack.c.l.b16 %v3489
    %v3654 = vunpack.c.h.b16 %v3489
    %v3655 = vunpack.c.l.b16 %v3490
    %v3656 = vunpack.c.h.b16 %v3490
    %v3657 = vunpack.c.l.b16 %v3491
    %v3658 = vunpack.c.h.b16 %v3491
    %v3659 = vunpack.c.l.b16 %v3492
    %v3660 = vunpack.c.h.b16 %v3492
    %v3661 = vunpack.c.l.b16 %v3493
    %v3662 = vunpack.c.h.b16 %v3493
    %v3663 = vunpack.c.l.b16 %v3494
    %v3664 = vunpack.c.h.b16 %v3494
    %v3665 = vunpack.c.l.b16 %v3495
    %v3666 = vunpack.c.h.b16 %v3495
    %v3667 = vunpack.c.l.b16 %v3496
    %v3668 = vunpack.c.h.b16 %v3496
    %v3669 = vunpack.c.l.b16 %v3497
    %v3670 = vunpack.c.h.b16 %v3497
    %v3671 = vunpack.c.l.b16 %v3498
    %v3672 = vunpack.c.h.b16 %v3498
    %v3673 = vunpack.c.l.b16 %v3499
    %v3674 = vunpack.c.h.b16 %v3499
    %v3675 = vunpack.c.l.b16 %v3500
    %v3676 = vunpack.c.h.b16 %v3500
    %v3677 = vunpack.c.l.b16 %v3501
    %v3678 = vunpack.c.h.b16 %v3501
    %v3679 = vunpack.c.l.b16 %v3502
    %v3680 = vunpack.c.h.b16 %v3502
    %v3681 = vunpack.c.l.b16 %v3503
    %v3682 = vunpack.c.h.b16 %v3503
    %v3683 = vunpack.c.l.b16 %v3504
    %v3684 = vunpack.c.h.b16 %v3504
    %v3685 = vunpack.c.l.b16 %v3505
    %v3686 = vunpack.c.h.b16 %v3505
    %v3687 = vunpack.c.l.b16 %v3506
    %v3688 = vunpack.c.h.b16 %v3506
    %v3689 = vunpack.c.l.b16 %v3507
    %v3690 = vunpack.c.h.b16 %v3507
    %v3691 = vunpack.c.l.b16 %v3508
    %v3692 = vunpack.c.h.b16 %v3508
    %v3693 = vunpack.c.l.b16 %v3509
    %v3694 = vunpack.c.h.b16 %v3509
    %v3695 = vunpack.c.l.b16 %v3510
    %v3696 = vunpack.c.h.b16 %v3510
    %v3697 = vunpack.c.l.b16 %v3511
    %v3698 = vunpack.c.h.b16 %v3511
    %v3699 = vunpack.c.l.b16 %v3512
    %v3700 = vunpack.c.h.b16 %v3512
    %v3701 = vunpack.c.l.b16 %v3513
    %v3702 = vunpack.c.h.b16 %v3513
    %v3703 = vunpack.c.l.b16 %v3514
    %v3704 = vunpack.c.h.b16 %v3514
    %v3705 = vunpack.c.l.b16 %v3515
    %v3706 = vunpack.c.h.b16 %v3515
    %v3707 = vunpack.c.l.b16 %v3516
    %v3708 = vunpack.c.h.b16 %v3516
    %v3709 = vunpack.c.l.b16 %v3517
    %v3710 = vunpack.c.h.b16 %v3517
    %v3711 = vunpack.c.l.b16 %v3518
    %v3712 = vunpack.c.h.b16 %v3518
    %v3713 = vunpack.c.l.b16 %v3519
    %v3714 = vunpack.c.h.b16 %v3519
    %v3715 = vunpack.c.l.b16 %v3520
    %v3716 = vunpack.c.h.b16 %v3520
    %v3717 = vunpack.c.l.b16 %v3521
    %v3718 = vunpack.c.h.b16 %v3521
    %v3719 = vunpack.c.l.b16 %v3522
    %v3720 = vunpack.c.h.b16 %v3522
    %v3721 = vunpack.c.l.b16 %v3523
    %v3722 = vunpack.c.h.b16 %v3523
    %v3723 = vunpack.c.l.b16 %v3524
    %v3724 = vunpack.c.h.b16 %v3524
    %v3725 = vunpack.c.l.b16 %v3525
    %v3726 = vunpack.c.h.b16 %v3525
    %v3727 = vunpack.c.l.b16 %v3526
    %v3728 = vunpack.c.h.b16 %v3526
    %v3729 = vunpack.c.l.b16 %v3527
    %v3730 = vunpack.c.h.b16 %v3527
    %v3731 = vunpack.c.l.b16 %v3528
    %v3732 = vunpack.c.h.b16 %v3528
    %v3733 = vpack.c.b16 %v3607, %v3605
    %v3734 = vpack.c.b16 %v3608, %v3606
    %v3735 = vpack.c.b16 %v3611, %v3609
    %v3736 = vpack.c.b16 %v3612, %v3610
    %v3737 = vpack.c.b16 %v3615, %v3613
    %v3738 = vpack.c.b16 %v3616, %v3614
    %v3739 = vpack.c.b16 %v3619, %v3617
    %v3740 = vpack.c.b16 %v3620, %v3618
    %v3741 = vpack.c.b16 %v3623, %v3621
    %v3742 = vpack.c.b16 %v3624, %v3622
    %v3743 = vpack.c.b16 %v3627, %v3625
    %v3744 = vpack.c.b16 %v3628, %v3626
    %v3745 = vpack.c.b16 %v3631, %v3629
    %v3746 = vpack.c.b16 %v3632, %v3630
    %v3747 = vpack.c.b16 %v3635, %v3633
    %v3748 = vpack.c.b16 %v3636, %v3634
    %v3749 = vpack.c.b16 %v3639, %v3637
    %v3750 = vpack.c.b16 %v3640, %v3638
    %v3751 = vpack.c.b16 %v3643, %v3641
    %v3752 = vpack.c.b16 %v3644, %v3642
    %v3753 = vpack.c.b16 %v3647, %v3645
    %v3754 = vpack.c.b16 %v3648, %v3646
    %v3755 = vpack.c.b16 %v3651, %v3649
    %v3756 = vpack.c.b16 %v3652, %v3650
    %v3757 = vpack.c.b16 %v3655, %v3653
    %v3758 = vpack.c.b16 %v3656, %v3654
    %v3759 = vpack.c.b16 %v3659, %v3657
    %v3760 = vpack.c.b16 %v3660, %v3658
    %v3761 = vpack.c.b16 %v3663, %v3661
    %v3762 = vpack.c.b16 %v3664, %v3662
    %v3763 = vpack.c.b16 %v3667, %v3665
    %v3764 = vpack.c.b16 %v3668, %v3666
    %v3765 = vpack.c.b16 %v3671, %v3669
    %v3766 = vpack.c.b16 %v3672, %v3670
    %v3767 = vpack.c.b16 %v3675, %v3673
    %v3768 = vpack.c.b16 %v3676, %v3674
    %v3769 = vpack.c.b16 %v3679, %v3677
    %v3770 = vpack.c.b16 %v3680, %v3678
    %v3771 = vpack.c.b16 %v3683, %v3681
    %v3772 = vpack.c.b16 %v3684, %v3682
    %v3773 = vpack.c.b16 %v3687, %v3685
    %v3774 = vpack.c.b16 %v3688, %v3686
    %v3775 = vpack.c.b16 %v3691, %v3689
    %v3776 = vpack.c.b16 %v3692, %v3690
    %v3777 = vpack.c.b16 %v3695, %v3693
    %v3778 = vpack.c.b16 %v3696, %v3694
    %v3779 = vpack.c.b16 %v3699, %v3697
    %v3780 = vpack.c.b16 %v3700, %v3698
    %v3781 = vpack.c.b16 %v3703, %v3701
    %v3782 = vpack.c.b16 %v3704, %v3702
    %v3783 = vpack.c.b16 %v3707, %v3705
    %v3784 = vpack.c.b16 %v3708, %v3706
    %v3785 = vpack.c.b16 %v3711, %v3709
    %v3786 = vpack.c.b16 %v3712, %v3710
    %v3787 = vpack.c.b16 %v3715, %v3713
    %v3788 = vpack.c.b16 %v3716, %v3714
    %v3789 = vpack.c.b16 %v3719, %v3717
    %v3790 = vpack.c.b16 %v3720, %v3718
    %v3791 = vpack.c.b16 %v3723, %v3721
    %v3792 = vpack.c.b16 %v3724, %v3722
    %v3793 = vpack.c.b16 %v3727, %v3725
    %v3794 = vpack.c.b16 %v3728, %v3726
    %v3795 = vpack.c.b16 %v3731, %v3729
    %v3796 = vpack.c.b16 %v3732, %v3730
    %3861 = vmatprep.subr.bf16.mxu0 %v3748
    %3862 = vmatpush1.bf16.msra.mxu0 %v3747
    %3863 = vmatprep.subr.bf16.mxu0 %v3746
    %3864 = vmatpush1.bf16.msra.mxu0 %v3745
    %3865 = vmatprep.subr.bf16.mxu0 %v3744
    %3866 = vmatpush1.bf16.msra.mxu0 %v3743
    %3867 = vmatprep.subr.bf16.mxu0 %v3742
    %3868 = vmatpush1.bf16.msra.mxu0 %v3741
    %3869 = vmatprep.subr.bf16.mxu0 %v3740
    %3870 = vmatpush1.bf16.msra.mxu0 %v3739
    %3871 = vmatprep.subr.bf16.mxu0 %v3738
    %3872 = vmatpush1.bf16.msra.mxu0 %v3737
    %3873 = vmatprep.subr.bf16.mxu0 %v3736
    %3874 = vmatpush1.bf16.msra.mxu0 %v3735
    %3875 = vmatprep.subr.bf16.mxu0 %v3734
    %3876 = vmatpush1.bf16.msra.mxu0 %v3733
    %3877 = vmatprep.subr.bf16.mxu0 %v3764
    %3878 = vmatpush2.bf16.msra.mxu0 %v3763
    %3879 = vmatprep.subr.bf16.mxu0 %v3762
    %3880 = vmatpush2.bf16.msra.mxu0 %v3761
    %3881 = vmatprep.subr.bf16.mxu0 %v3760
    %3882 = vmatpush2.bf16.msra.mxu0 %v3759
    %3883 = vmatprep.subr.bf16.mxu0 %v3758
    %3884 = vmatpush2.bf16.msra.mxu0 %v3757
    %3885 = vmatprep.subr.bf16.mxu0 %v3756
    %3886 = vmatpush2.bf16.msra.mxu0 %v3755
    %3887 = vmatprep.subr.bf16.mxu0 %v3754
    %3888 = vmatpush2.bf16.msra.mxu0 %v3753
    %3889 = vmatprep.subr.bf16.mxu0 %v3752
    %3890 = vmatpush2.bf16.msra.mxu0 %v3751
    %3891 = vmatprep.subr.bf16.mxu0 %v3750
    %3892 = vmatpush2.bf16.msra.mxu0 %v3749
    %3893 = vmatprep.mubr.bf16.mxu0 %v3462
    %3894 = vmatmul.mubr.bf16.gmra.mxu0 %v3461
    %v3895 = vpop.f32.mrf.mxu0
    %v3896 = vadd.f32 %v3534, %v3895
    %v3897 = vpop.f32.mrf.mxu0
    %v3898 = vadd.f32 %v3538, %v3897
    %v3899 = vpop.f32.mrf.mxu0
    %v3900 = vpop.f32.mrf.mxu0
    %3901 = vdwg.mxu0
    %3902 = vmatprep.subr.bf16.mxu0 %v3780
    %3903 = vmatpush1.bf16.msra.mxu0 %v3779
    %3904 = vmatprep.subr.bf16.mxu0 %v3778
    %3905 = vmatpush1.bf16.msra.mxu0 %v3777
    %3906 = vmatprep.subr.bf16.mxu0 %v3776
    %3907 = vmatpush1.bf16.msra.mxu0 %v3775
    %3908 = vmatprep.subr.bf16.mxu0 %v3774
    %3909 = vmatpush1.bf16.msra.mxu0 %v3773
    %3910 = vmatprep.subr.bf16.mxu0 %v3772
    %3911 = vmatpush1.bf16.msra.mxu0 %v3771
    %3912 = vmatprep.subr.bf16.mxu0 %v3770
    %3913 = vmatpush1.bf16.msra.mxu0 %v3769
    %3914 = vmatprep.subr.bf16.mxu0 %v3768
    %3915 = vmatpush1.bf16.msra.mxu0 %v3767
    %3916 = vmatprep.subr.bf16.mxu0 %v3766
    %3917 = vmatpush1.bf16.msra.mxu0 %v3765
    %3918 = vmatprep.subr.bf16.mxu0 %v3796
    %3919 = vmatpush2.bf16.msra.mxu0 %v3795
    %3920 = vmatprep.subr.bf16.mxu0 %v3794
    %3921 = vmatpush2.bf16.msra.mxu0 %v3793
    %3922 = vmatprep.subr.bf16.mxu0 %v3792
    %3923 = vmatpush2.bf16.msra.mxu0 %v3791
    %3924 = vmatprep.subr.bf16.mxu0 %v3790
    %3925 = vmatpush2.bf16.msra.mxu0 %v3789
    %3926 = vmatprep.subr.bf16.mxu0 %v3788
    %3927 = vmatpush2.bf16.msra.mxu0 %v3787
    %3928 = vmatprep.subr.bf16.mxu0 %v3786
    %3929 = vmatpush2.bf16.msra.mxu0 %v3785
    %3930 = vmatprep.subr.bf16.mxu0 %v3784
    %3931 = vmatpush2.bf16.msra.mxu0 %v3783
    %3932 = vmatprep.subr.bf16.mxu0 %v3782
    %3933 = vmatpush2.bf16.msra.mxu0 %v3781
    %3934 = vmatprep.mubr.bf16.mxu0 %v3464
    %3935 = vmatmul.mubr.bf16.gmra.mxu0 %v3463
    %v3936 = vpop.f32.mrf.mxu0
    %v3937 = vadd.f32 %v3896, %v3936
    %v3938 = vpop.f32.mrf.mxu0
    %v3939 = vadd.f32 %v3898, %v3938
    %v3940 = vpop.f32.mrf.mxu0
    %v3941 = vpop.f32.mrf.mxu0
    %3942 = vdwg.mxu0
    %v3943 = vmax.f32 %v3937, 0.0
    %v3944 = vmax.f32 %v3939, 0.0
    %v3945 = vpack.c.bf16 %v3943, %v3943
    %v3946 = vpack.c.bf16 %v3944, %v3944
    %v3947 = vld [vmem:[#allocation11] sm:$0xf]
    %v3948 = vld [vmem:[#allocation11 + $0x4] sm:$0xf]
    %v3949 = vld [vmem:[#allocation11 + $0x8] sm:$0xf]
    %v3950 = vld [vmem:[#allocation11 + $0xc] sm:$0xf]
    %v3951 = vld [vmem:[#allocation11 + $0x10] sm:$0xf]
    %v3952 = vld [vmem:[#allocation11 + $0x14] sm:$0xf]
    %v3953 = vld [vmem:[#allocation11 + $0x18] sm:$0xf]
    %v3954 = vld [vmem:[#allocation11 + $0x1c] sm:$0xf]
    %v3955 = vld [vmem:[#allocation11 + $0x20] sm:$0xf]
    %v3956 = vld [vmem:[#allocation11 + $0x24] sm:$0xf]
    %v3957 = vld [vmem:[#allocation11 + $0x28] sm:$0xf]
    %v3958 = vld [vmem:[#allocation11 + $0x2c] sm:$0xf]
    %v3959 = vld [vmem:[#allocation11 + $0x30] sm:$0xf]
    %v3960 = vld [vmem:[#allocation11 + $0x34] sm:$0xf]
    %v3961 = vld [vmem:[#allocation11 + $0x38] sm:$0xf]
    %v3962 = vld [vmem:[#allocation11 + $0x3c] sm:$0xf]
    %v3963 = vld [vmem:[#allocation11 + $0x40] sm:$0xf]
    %v3964 = vld [vmem:[#allocation11 + $0x44] sm:$0xf]
    %v3965 = vld [vmem:[#allocation11 + $0x48] sm:$0xf]
    %v3966 = vld [vmem:[#allocation11 + $0x4c] sm:$0xf]
    %v3967 = vld [vmem:[#allocation11 + $0x50] sm:$0xf]
    %v3968 = vld [vmem:[#allocation11 + $0x54] sm:$0xf]
    %v3969 = vld [vmem:[#allocation11 + $0x58] sm:$0xf]
    %v3970 = vld [vmem:[#allocation11 + $0x5c] sm:$0xf]
    %v3971 = vld [vmem:[#allocation11 + $0x60] sm:$0xf]
    %v3972 = vld [vmem:[#allocation11 + $0x64] sm:$0xf]
    %v3973 = vld [vmem:[#allocation11 + $0x68] sm:$0xf]
    %v3974 = vld [vmem:[#allocation11 + $0x6c] sm:$0xf]
    %v3975 = vld [vmem:[#allocation11 + $0x70] sm:$0xf]
    %v3976 = vld [vmem:[#allocation11 + $0x74] sm:$0xf]
    %v3977 = vld [vmem:[#allocation11 + $0x78] sm:$0xf]
    %v3978 = vld [vmem:[#allocation11 + $0x7c] sm:$0xf]
    %v3979 = vld [vmem:[%s8] sm:$0x1]
    %v3981 = vlaneseq
    %v3982 = vshrl.u32 %v3981, 7
    %v3983 = vsub.s32 0, %v3982
    %v3984 = vrot.slane %v3979, %v3983
    %v4018 = vunpack.c.l.b16 %v3947
    %v4019 = vunpack.c.l.b16 %v3948
    %v4020 = vunpack.c.l.b16 %v3949
    %v4021 = vunpack.c.l.b16 %v3950
    %v4022 = vunpack.c.l.b16 %v3951
    %v4023 = vunpack.c.l.b16 %v3952
    %v4024 = vunpack.c.l.b16 %v3953
    %v4025 = vunpack.c.l.b16 %v3954
    %v4026 = vunpack.c.l.b16 %v3955
    %v4027 = vunpack.c.l.b16 %v3956
    %v4028 = vunpack.c.l.b16 %v3957
    %v4029 = vunpack.c.l.b16 %v3958
    %v4030 = vunpack.c.l.b16 %v3959
    %v4031 = vunpack.c.l.b16 %v3960
    %v4032 = vunpack.c.l.b16 %v3961
    %v4033 = vunpack.c.l.b16 %v3962
    %v4034 = vunpack.c.l.b16 %v3963
    %v4035 = vunpack.c.l.b16 %v3964
    %v4036 = vunpack.c.l.b16 %v3965
    %v4037 = vunpack.c.l.b16 %v3966
    %v4038 = vunpack.c.l.b16 %v3967
    %v4039 = vunpack.c.l.b16 %v3968
    %v4040 = vunpack.c.l.b16 %v3969
    %v4041 = vunpack.c.l.b16 %v3970
    %v4042 = vunpack.c.l.b16 %v3971
    %v4043 = vunpack.c.l.b16 %v3972
    %v4044 = vunpack.c.l.b16 %v3973
    %v4045 = vunpack.c.l.b16 %v3974
    %v4046 = vunpack.c.l.b16 %v3975
    %v4047 = vunpack.c.l.b16 %v3976
    %v4048 = vunpack.c.l.b16 %v3977
    %v4049 = vunpack.c.l.b16 %v3978
    %v4050 = vpack.c.b16 %v4019, %v4018
    %v4051 = vpack.c.b16 %v4021, %v4020
    %v4052 = vpack.c.b16 %v4023, %v4022
    %v4053 = vpack.c.b16 %v4025, %v4024
    %v4054 = vpack.c.b16 %v4027, %v4026
    %v4055 = vpack.c.b16 %v4029, %v4028
    %v4056 = vpack.c.b16 %v4031, %v4030
    %v4057 = vpack.c.b16 %v4033, %v4032
    %v4058 = vpack.c.b16 %v4035, %v4034
    %v4059 = vpack.c.b16 %v4037, %v4036
    %v4060 = vpack.c.b16 %v4039, %v4038
    %v4061 = vpack.c.b16 %v4041, %v4040
    %v4062 = vpack.c.b16 %v4043, %v4042
    %v4063 = vpack.c.b16 %v4045, %v4044
    %v4064 = vpack.c.b16 %v4047, %v4046
    %v4065 = vpack.c.b16 %v4049, %v4048
    %4082 = vmatprep.subr.bf16.mxu0 0
    %4083 = vmatpush1.bf16.msra.mxu0 %v4057
    %4084 = vmatprep.subr.bf16.mxu0 0
    %4085 = vmatpush1.bf16.msra.mxu0 %v4056
    %4086 = vmatprep.subr.bf16.mxu0 0
    %4087 = vmatpush1.bf16.msra.mxu0 %v4055
    %4088 = vmatprep.subr.bf16.mxu0 0
    %4089 = vmatpush1.bf16.msra.mxu0 %v4054
    %4090 = vmatprep.subr.bf16.mxu0 0
    %4091 = vmatpush1.bf16.msra.mxu0 %v4053
    %4092 = vmatprep.subr.bf16.mxu0 0
    %4093 = vmatpush1.bf16.msra.mxu0 %v4052
    %4094 = vmatprep.subr.bf16.mxu0 0
    %4095 = vmatpush1.bf16.msra.mxu0 %v4051
    %4096 = vmatprep.subr.bf16.mxu0 0
    %4097 = vmatpush1.bf16.msra.mxu0 %v4050
    %4098 = vmatprep.subr.bf16.mxu0 0
    %4099 = vmatpush2.bf16.msra.mxu0 %v4065
    %4100 = vmatprep.subr.bf16.mxu0 0
    %4101 = vmatpush2.bf16.msra.mxu0 %v4064
    %4102 = vmatprep.subr.bf16.mxu0 0
    %4103 = vmatpush2.bf16.msra.mxu0 %v4063
    %4104 = vmatprep.subr.bf16.mxu0 0
    %4105 = vmatpush2.bf16.msra.mxu0 %v4062
    %4106 = vmatprep.subr.bf16.mxu0 0
    %4107 = vmatpush2.bf16.msra.mxu0 %v4061
    %4108 = vmatprep.subr.bf16.mxu0 0
    %4109 = vmatpush2.bf16.msra.mxu0 %v4060
    %4110 = vmatprep.subr.bf16.mxu0 0
    %4111 = vmatpush2.bf16.msra.mxu0 %v4059
    %4112 = vmatprep.subr.bf16.mxu0 0
    %4113 = vmatpush2.bf16.msra.mxu0 %v4058
    %4114 = vmatprep.mubr.bf16.mxu0 %v3946
    %4115 = vmatmul.mubr.bf16.gmra.mxu0 %v3945
    %v4116 = vpop.f32.mrf.mxu0
    %v4117 = vadd.f32 %v3984, %v4116
    %v4118 = vpop.f32.mrf.mxu0
    %v4119 = vpop.f32.mrf.mxu0
    %v4120 = vpop.f32.mrf.mxu0
    %4121 = vdwg.mxu0
    %4122 = vst [vmem:[#allocation13] sm:$0xf] %v4117
    // Predicated region
    $region62: #{tpu_custom_call.1} parent=1 // pred_check
      _
    $region63: #{tpu_custom_call.1} parent=1 // pred_check_branch
      %4124 = sbr.rel (0) target = $region65
    $region64: #{tpu_custom_call.1} parent=1 // pred_region
      %s4126 = ssub.s32 64, 64
      %4127 = vsyncadd [#allocation4], %s4126
      %s4129 = sshll.u32 [#allocation13], 4
      %s4130 = int_to_ptr.vmem [resolvable:$true] %s4129
      %4132 = dma.vmem_to_hbm [thread:$0]  %s4130, 64, %s9, [#allocation4]
    $region65: #{tpu_custom_call.1} parent=1 // pred_fallthru
      _
    // Predicated region
    $region66: #{tpu_custom_call.1} parent=1 // pred_check
      _
    $region67: #{tpu_custom_call.1} parent=1 // pred_check_branch
      %4134 = sbr.rel (0) target = $region69
    $region68: #{tpu_custom_call.1} parent=1 // pred_region
      %4135 = dma.done [#allocation4], 64
    $region69: #{tpu_custom_call.1} parent=1 // pred_fallthru
      _
    %4136 = vsyncpa [#allocation3], 1
    %4137 = vsyncpa [#allocation6], 1
    %4138 = vsyncpa [#allocation9], 1
    %4139 = vsyncpa [#allocation12], 1
    %4140 = vsyncpa [#allocation4], 1

</llo_original>
